<compile_context>
chip_gen: v7x
topology: tpu7x:2x2x1
jax: 0.10.0
libtpu: 0.0.40
codegen_flags: <defaults>
</compile_context>

<pallas_src>
import math

import jax
import jax.numpy as jnp
from jax.experimental import pallas as pl
from jax.experimental.pallas import tpu as pltpu  # noqa: F401  (TPU backend)

NEG_INF = -1e9  # finite stand-in for the -inf key-padding bias (same softmax result)


# ------------------------------ fused kernel -------------------------------- #

def _decoder_layer_kernel(acts_ref, bias_ref, qkv_add_ref, p32_ref, b1_ref,
                          w_in_ref, w_o_ref, w_ffn_ref, o_ref):
    """Whole decoder layer on the flat (bs*R*M, D) row stream, single grid step."""
    H = w_in_ref.shape[1]
    L, D = acts_ref.shape[1], acts_ref.shape[2]
    dh = D // H
    bf16 = jnp.bfloat16

    x = acts_ref[0]        # (L, D) f32 residual stream, row = b*R*M + r*M + m
    mem = acts_ref[1]      # (L, D) f32 zero-padded memory (cross-attn keys/values)
    valid = acts_ref[2]    # (L, D) f32 0/1 multiplier (torch scatter-into-zeros)
    pvec = p32_ref[...]    # (3, 4, 1, D): [LN gamma, LN beta, out-proj/FFN-out biases]

    def layer_norm(v, i):
        mu = jnp.mean(v, axis=-1, keepdims=True)
        c = v - mu
        var = jnp.mean(jnp.square(c), axis=-1, keepdims=True)
        return c * jax.lax.rsqrt(var + 1e-5) * pvec[0, i] + pvec[1, i]

    def in_proj(src, s):
        # head-major fused QKV projection: (L, D) -> (H, L, 3*dh), f32 accumulation.
        # in_proj bias, m_pos term and the 1/sqrt(dh) q-scale are pre-folded into
        # qkv_add / the weights by the wrapper.
        src_b = jnp.broadcast_to(src.astype(bf16)[None], (H, L, D))
        y = jax.lax.dot_general(src_b, w_in_ref[s],
                                (((2,), (1,)), ((0,), (0,))),
                                preferred_element_type=jnp.float32)
        return y + qkv_add_ref[s]

    def attend(q_src, kv_src, bias, stage):
        # q_src/kv_src: (H, L, 3*dh) head-major [q|k|v]; bias: (L, L) additive mask.
        q = q_src[..., :dh].astype(bf16)              # already scaled by 1/sqrt(dh)
        k = kv_src[..., dh:2 * dh].astype(bf16)
        v = kv_src[..., 2 * dh:].astype(bf16)
        s = jax.lax.dot_general(q, k, (((2,), (2,)), ((0,), (0,))),
                                preferred_element_type=jnp.float32)     # (H, L, L)
        s = s + bias[None]
        s = s - jnp.max(s, axis=-1, keepdims=True)
        p = jnp.exp(s)
        p = p / jnp.sum(p, axis=-1, keepdims=True)
        ctx = jax.lax.dot_general(p.astype(bf16), v,
                                  (((2,), (1,)), ((0,), (0,))),
                                  preferred_element_type=jnp.float32)   # (H, L, dh)
        outh = jax.lax.dot_general(ctx.astype(bf16), w_o_ref[stage],
                                   (((2,), (1,)), ((0,), (0,))),
                                   preferred_element_type=jnp.float32)  # (H, L, D)
        return jnp.sum(outh, axis=0) + pvec[2, stage]

    # ---- stage 1: route-to-route self-attention (rows sharing the same m) ----
    qkv = in_proj(layer_norm(x, 0), 0)
    x = x + attend(qkv, qkv, bias_ref[0], 0)

    # ---- stage 2: mode-to-mode self-attention (m_pos on q/k folded into
    # qkv_add[1]), then torch's scatter-into-zeros of invalid (b, r) rows --------
    qkv = in_proj(layer_norm(x, 1), 1)
    x = (x + attend(qkv, qkv, bias_ref[1], 1)) * valid

    # ---- stage 3: cross-attention against zero-padded, key-masked memory ------
    q3 = in_proj(layer_norm(x, 2), 2)
    kv3 = in_proj(mem, 3)
    x = x + attend(q3, kv3, bias_ref[2], 2)

    # ---- stage 4: FFN ----------------------------------------------------------
    x2 = layer_norm(x, 3)
    hid = jnp.maximum(
        jnp.dot(x2.astype(bf16), w_ffn_ref[0],
                preferred_element_type=jnp.float32) + b1_ref[...], 0.0)
    y = jax.lax.dot_general(hid.astype(bf16), w_ffn_ref[1],   # w_ffn[1] = W2^T
                            (((1,), (1,)), ((), ())),
                            preferred_element_type=jnp.float32) + pvec[2, 3]
    o_ref[...] = (x + y).astype(o_ref.dtype)


# ---------------------- one-time parameter / mask packing -------------------- #

def pack_decoder_params(params, m_pos, tgt_key_padding_mask,
                        memory_key_padding_mask, *, bs, R, M, Nm, num_heads):
    """Pre-pack weights, biases, masks and constants into the kernel layout.

    Weight conventions here: in-proj weights are (D, 3D) applied as x @ W with
    columns [Q|K|V]; out-proj weights are (D, D) applied as ctx @ W.  (A torch
    checkpoint would be transposed before calling this.)
    """
    D = m_pos.shape[-1]
    H = num_heads
    dh = D // H
    N = R * M
    L = bs * N
    scale = 1.0 / math.sqrt(dh)
    f32, bf16 = jnp.float32, jnp.bfloat16

    def heads_rows(a):  # (rows, 3D) [Q|K|V] -> (H, rows, 3*dh) head-major [q|k|v]
        aq, ak, av = a[:, :D], a[:, D:2 * D], a[:, 2 * D:]
        return jnp.stack([jnp.concatenate([aq[:, h * dh:(h + 1) * dh],
                                           ak[:, h * dh:(h + 1) * dh],
                                           av[:, h * dh:(h + 1) * dh]], axis=1)
                          for h in range(H)], axis=0)

    def scale_q(a3):    # fold 1/sqrt(dh) into the Q block of a (rows, 3D) matrix
        return jnp.concatenate([a3[:, :D] * scale, a3[:, D:]], axis=1)

    def bias_rows(b3):  # (3D,) -> (H, 1, 3*dh), q part pre-scaled
        return heads_rows(scale_q(b3[None, :]))

    # ---- input-projection weights, head-major: [r2r, m2m, cross-q, cross-kv] ----
    zD = jnp.zeros((D, D), f32)
    zv = jnp.zeros((D,), f32)
    w_r2r = scale_q(params["r2r_w_in"])
    w_m2m = scale_q(params["m2m_w_in"])
    w_cq = scale_q(jnp.concatenate([params["cross_w_in"][:, :D], zD, zD], axis=1))
    w_ckv = jnp.concatenate([zD, params["cross_w_in"][:, D:]], axis=1)
    w_in = jnp.stack([heads_rows(w_r2r), heads_rows(w_m2m),
                      heads_rows(w_cq), heads_rows(w_ckv)], 0).astype(bf16)

    # ---- per-row QKV add constants (in_proj biases, + m_pos term for m2m) -------
    b_r2r = jnp.broadcast_to(bias_rows(params["r2r_b_in"]), (H, L, 3 * dh))
    pos_full = jnp.tile(m_pos.astype(f32), (bs * R, 1))          # row j -> m_pos[j % M]
    pos_qkv = jnp.concatenate([pos_full @ w_m2m[:, :2 * D],      # m_pos hits q,k only
                               jnp.zeros((L, D), f32)], axis=1)
    b_m2m = heads_rows(pos_qkv) + bias_rows(params["m2m_b_in"])
    b_cq = jnp.broadcast_to(
        bias_rows(jnp.concatenate([params["cross_b_in"][:D], zv, zv])), (H, L, 3 * dh))
    b_ckv = jnp.broadcast_to(
        bias_rows(jnp.concatenate([zv, params["cross_b_in"][D:]])), (H, L, 3 * dh))
    qkv_add = jnp.stack([b_r2r, b_m2m, b_cq, b_ckv], 0)          # (4, H, L, 3dh)

    # ---- additive attention masks, block-diagonal over the folded batch --------
    row = jnp.arange(L)
    b_of, r_of, m_of = row // N, (row % N) // M, row % M
    same_b = b_of[:, None] == b_of[None, :]

    # stage 1: same batch & same m; key padding reproduces torch's `.repeat(M, 1)`
    # quirk: sequence (b, m) uses mask row (b*M + m) % bs for key position r.
    kpm_row = (b_of * M + m_of) % bs
    keypad1 = tgt_key_padding_mask[kpm_row[:, None], r_of[None, :]]
    ok1 = same_b & (m_of[:, None] == m_of[None, :]) & ~keypad1
    # stage 2: same batch & same r (no key padding)
    ok2 = same_b & (r_of[:, None] == r_of[None, :])
    # stage 3: key column j -> memory (b_j = j // Nm, n_j = j % Nm) for j < bs*Nm
    col = jnp.arange(L)
    memkey = memory_key_padding_mask[jnp.minimum(col // Nm, bs - 1), col % Nm]
    ok3 = (b_of[:, None] == (col // Nm)[None, :]) & (col < bs * Nm)[None, :] \
        & ~memkey[None, :]
    biases = jnp.where(jnp.stack([ok1, ok2, ok3], 0), 0.0, NEG_INF).astype(f32)

    # ---- stage-2 valid-row multiplier (invalid (b, r) rows scatter to zero) -----
    valid = jnp.repeat((~tgt_key_padding_mask.reshape(-1)).astype(f32), M)   # (L,)
    valid_b = jnp.broadcast_to(valid[:, None], (L, D))

    # ---- remaining small params, packed ----------------------------------------
    w_o = jnp.stack([params["r2r_w_out"].reshape(H, dh, D),
                     params["m2m_w_out"].reshape(H, dh, D),
                     params["cross_w_out"].reshape(H, dh, D)], 0).astype(bf16)
    p32 = jnp.stack([
        jnp.stack([params["ln1_g"], params["ln2_g"], params["ln3_g"], params["ln4_g"]], 0),
        jnp.stack([params["ln1_b"], params["ln2_b"], params["ln3_b"], params["ln4_b"]], 0),
        jnp.stack([params["r2r_b_out"], params["m2m_b_out"],
                   params["cross_b_out"], params["ffn_b2"]], 0),
    ], 0)[:, :, None, :].astype(f32)                             # (3, 4, 1, D)
    w_ffn = jnp.stack([params["ffn_w1"], params["ffn_w2"].T], 0).astype(bf16)
    b1 = params["ffn_b1"][None, :].astype(f32)

    return {"biases": biases, "valid": valid_b, "qkv_add": qkv_add, "p32": p32,
            "b1": b1, "w_in": w_in, "w_o": w_o, "w_ffn": w_ffn}


# --------------------------- DecoderLayer forward ---------------------------- #

def decoder_layer_forward(packed, tgt, memory):
    """tgt: (bs, R, M, D); memory: (bs, Nm, D).  Masks/m_pos live in `packed`."""
    bs, R, M, D = tgt.shape
    Nm = memory.shape[1]
    L = bs * R * M

    x_flat = tgt.reshape(L, D).astype(jnp.float32)
    mem_pad = jnp.zeros((L, D), jnp.float32).at[: bs * Nm].set(
        memory.reshape(bs * Nm, D).astype(jnp.float32))
    acts = jnp.stack([x_flat, mem_pad, packed["valid"]], axis=0)     # (3, L, D)

    out = pl.pallas_call(
        _decoder_layer_kernel,
        out_shape=jax.ShapeDtypeStruct((L, D), tgt.dtype),
        # Single grid step; whole problem (<200 KiB) lives in VMEM.
    )(acts, packed["biases"], packed["qkv_add"], packed["p32"], packed["b1"],
      packed["w_in"], packed["w_o"], packed["w_ffn"])
    return out.reshape(bs, R, M, D)


# ------------------------------ Param init ----------------------------------- #

def init_params(key, dim, mlp_ratio):
    hidden = dim * mlp_ratio
    it = iter(jax.random.split(key, 32))

    def rnd(shape, s=0.05):
        return s * jax.random.normal(next(it), shape, jnp.float32)

    p = {}
    for name in ("r2r", "m2m", "cross"):
        p[f"{name}_w_in"] = rnd((dim, 3 * dim))   # x @ W, columns [Q|K|V]
        p[f"{name}_b_in"] = rnd((3 * dim,), 0.02)
        p[f"{name}_w_out"] = rnd((dim, dim))      # ctx @ W
        p[f"{name}_b_out"] = rnd((dim,), 0.02)
    p["ffn_w1"] = rnd((dim, hidden))
    p["ffn_b1"] = rnd((hidden,), 0.02)
    p["ffn_w2"] = rnd((hidden, dim))
    p["ffn_b2"] = rnd((dim,), 0.02)
    for i in range(1, 5):
        p[f"ln{i}_g"] = jnp.ones((dim,), jnp.float32)
        p[f"ln{i}_b"] = jnp.zeros((dim,), jnp.float32)
    return p


# --------------------------------- Main --------------------------------------- #

if __name__ == "__main__":
    dim = 32
    num_heads = 4
    mlp_ratio = 4
    bs, R, M = 2, 4, 6
    N_mem = 8

    root = jax.random.PRNGKey(0)
    kp, kt, km, kpos = jax.random.split(root, 4)

    params = init_params(kp, dim, mlp_ratio)
    tgt = jax.random.normal(kt, (bs, R, M, dim), jnp.float32)
    memory = jax.random.normal(km, (bs, N_mem, dim), jnp.float32)
    m_pos = 0.1 * jax.random.normal(kpos, (M, dim), jnp.float32)

    tgt_key_padding_mask = jnp.array(
        [[False, False, False, True],
         [False, False, True, True]], dtype=bool)                      # (bs, R)
    memory_key_padding_mask = jnp.array(
        [[False] * 6 + [True] * 2,
         [False] * 7 + [True] * 1], dtype=bool)                        # (bs, N_mem)

    # One-time packing of params + mask/pos-derived constants (hoisted out of the
    # per-call path; padding masks and m_pos are static across calls).
    packed = pack_decoder_params(params, m_pos, tgt_key_padding_mask,
                                 memory_key_padding_mask,
                                 bs=bs, R=R, M=M, Nm=N_mem, num_heads=num_heads)

    fwd = jax.jit(decoder_layer_forward)
    out = fwd(packed, tgt, memory)
    out = jax.block_until_ready(out)

    assert out.shape == (bs, R, M, dim), out.shape
    assert bool(jnp.all(jnp.isfinite(out)))
    print("KERNEL_OK")
</pallas_src>

<mosaic_0001>
module attributes {stable_mosaic.version = 11 : i64} {
  func.func @_decoder_layer_kernel(%arg0: memref<3x48x32xf32, #tpu.memory_space<vmem>>, %arg1: memref<3x48x48xf32, #tpu.memory_space<vmem>>, %arg2: memref<4x4x48x24xf32, #tpu.memory_space<vmem>>, %arg3: memref<3x4x1x32xf32, #tpu.memory_space<vmem>>, %arg4: memref<1x128xf32, #tpu.memory_space<vmem>>, %arg5: memref<4x4x32x24xbf16, #tpu.memory_space<vmem>>, %arg6: memref<3x4x8x32xbf16, #tpu.memory_space<vmem>>, %arg7: memref<2x32x128xbf16, #tpu.memory_space<vmem>>, %arg8: memref<48x32xf32, #tpu.memory_space<vmem>>) attributes {dimension_semantics = [], scalar_prefetch = 0 : i64, scratch_operands = 0 : i64, tpu.core_type = #tpu.core_type<tc>} {
    %c0 = arith.constant 0 : index
    %c0_0 = arith.constant 0 : index
    %c0_1 = arith.constant 0 : index
    %0 = vector.load %arg0[%c0, %c0_0, %c0_1] : memref<3x48x32xf32, #tpu.memory_space<vmem>>, vector<1x48x32xf32>
    %1 = vector.shape_cast %0 : vector<1x48x32xf32> to vector<48x32xf32>
    %c1 = arith.constant 1 : index
    %c0_2 = arith.constant 0 : index
    %c0_3 = arith.constant 0 : index
    %2 = vector.load %arg0[%c1, %c0_2, %c0_3] : memref<3x48x32xf32, #tpu.memory_space<vmem>>, vector<1x48x32xf32>
    %3 = vector.shape_cast %2 : vector<1x48x32xf32> to vector<48x32xf32>
    %c2 = arith.constant 2 : index
    %c0_4 = arith.constant 0 : index
    %c0_5 = arith.constant 0 : index
    %4 = vector.load %arg0[%c2, %c0_4, %c0_5] : memref<3x48x32xf32, #tpu.memory_space<vmem>>, vector<1x48x32xf32>
    %5 = vector.shape_cast %4 : vector<1x48x32xf32> to vector<48x32xf32>
    %c0_6 = arith.constant 0 : index
    %c0_7 = arith.constant 0 : index
    %c0_8 = arith.constant 0 : index
    %c0_9 = arith.constant 0 : index
    %6 = vector.load %arg3[%c0_6, %c0_7, %c0_8, %c0_9] : memref<3x4x1x32xf32, #tpu.memory_space<vmem>>, vector<3x4x1x32xf32>
    %cst = arith.constant dense<0.000000e+00> : vector<48xf32>
    %7 = vector.multi_reduction <add>, %1, %cst [1] : vector<48x32xf32> to vector<48xf32>
    %8 = vector.shape_cast %7 : vector<48xf32> to vector<48x1xf32>
    %cst_10 = arith.constant 3.200000e+01 : f32
    %9 = vector.broadcast %cst_10 : f32 to vector<48x1xf32>
    %10 = arith.divf %8, %9 : vector<48x1xf32>
    %11 = vector.broadcast %10 : vector<48x1xf32> to vector<48x32xf32>
    %12 = arith.subf %1, %11 : vector<48x32xf32>
    %13 = arith.mulf %12, %12 : vector<48x32xf32>
    %cst_11 = arith.constant dense<0.000000e+00> : vector<48xf32>
    %14 = vector.multi_reduction <add>, %13, %cst_11 [1] : vector<48x32xf32> to vector<48xf32>
    %15 = vector.shape_cast %14 : vector<48xf32> to vector<48x1xf32>
    %cst_12 = arith.constant 3.200000e+01 : f32
    %16 = vector.broadcast %cst_12 : f32 to vector<48x1xf32>
    %17 = arith.divf %15, %16 : vector<48x1xf32>
    %cst_13 = arith.constant 9.99999974E-6 : f32
    %18 = vector.broadcast %cst_13 : f32 to vector<48x1xf32>
    %19 = arith.addf %17, %18 : vector<48x1xf32>
    %20 = math.rsqrt %19 : vector<48x1xf32>
    %21 = vector.broadcast %20 : vector<48x1xf32> to vector<48x32xf32>
    %22 = arith.mulf %12, %21 : vector<48x32xf32>
    %23 = vector.extract_strided_slice %6 {offsets = [0, 0, 0, 0], sizes = [1, 1, 1, 32], strides = [1, 1, 1, 1]} : vector<3x4x1x32xf32> to vector<1x1x1x32xf32>
    %24 = vector.shape_cast %23 : vector<1x1x1x32xf32> to vector<1x32xf32>
    %25 = vector.broadcast %24 : vector<1x32xf32> to vector<48x32xf32>
    %26 = arith.mulf %22, %25 : vector<48x32xf32>
    %27 = vector.extract_strided_slice %6 {offsets = [1, 0, 0, 0], sizes = [1, 1, 1, 32], strides = [1, 1, 1, 1]} : vector<3x4x1x32xf32> to vector<1x1x1x32xf32>
    %28 = vector.shape_cast %27 : vector<1x1x1x32xf32> to vector<1x32xf32>
    %29 = vector.broadcast %28 : vector<1x32xf32> to vector<48x32xf32>
    %30 = arith.addf %26, %29 : vector<48x32xf32>
    %31 = arith.truncf %30 : vector<48x32xf32> to vector<48x32xbf16>
    %32 = vector.shape_cast %31 : vector<48x32xbf16> to vector<1x48x32xbf16>
    %33 = vector.shape_cast %32 : vector<1x48x32xbf16> to vector<1x48x32xbf16>
    %34 = vector.broadcast %33 : vector<1x48x32xbf16> to vector<4x48x32xbf16>
    %c0_14 = arith.constant 0 : index
    %c0_15 = arith.constant 0 : index
    %c0_16 = arith.constant 0 : index
    %c0_17 = arith.constant 0 : index
    %35 = vector.load %arg5[%c0_14, %c0_15, %c0_16, %c0_17] : memref<4x4x32x24xbf16, #tpu.memory_space<vmem>>, vector<1x4x32x24xbf16>
    %36 = vector.shape_cast %35 : vector<1x4x32x24xbf16> to vector<4x32x24xbf16>
    %cst_18 = arith.constant dense<0.000000e+00> : vector<4x48x24xf32>
    %37 = tpu.matmul %34, %36, %cst_18 {dimension_numbers = #tpu.dot_dimension_numbers<[2], [1], [1], [2], [0, 0, 0, 1, 1, 2], [0], [0]>} : vector<4x48x32xbf16>, vector<4x32x24xbf16>, vector<4x48x24xf32> -> vector<4x48x24xf32>
    %c0_19 = arith.constant 0 : index
    %c0_20 = arith.constant 0 : index
    %c0_21 = arith.constant 0 : index
    %c0_22 = arith.constant 0 : index
    %38 = vector.load %arg2[%c0_19, %c0_20, %c0_21, %c0_22] : memref<4x4x48x24xf32, #tpu.memory_space<vmem>>, vector<1x4x48x24xf32>
    %39 = vector.shape_cast %38 : vector<1x4x48x24xf32> to vector<4x48x24xf32>
    %40 = arith.addf %37, %39 : vector<4x48x24xf32>
    %c0_23 = arith.constant 0 : index
    %c0_24 = arith.constant 0 : index
    %c0_25 = arith.constant 0 : index
    %41 = vector.load %arg1[%c0_23, %c0_24, %c0_25] : memref<3x48x48xf32, #tpu.memory_space<vmem>>, vector<1x48x48xf32>
    %42 = vector.shape_cast %41 : vector<1x48x48xf32> to vector<48x48xf32>
    %43 = vector.extract_strided_slice %40 {offsets = [0, 0, 0], sizes = [4, 48, 8], strides = [1, 1, 1]} : vector<4x48x24xf32> to vector<4x48x8xf32>
    %44 = arith.truncf %43 : vector<4x48x8xf32> to vector<4x48x8xbf16>
    %45 = vector.extract_strided_slice %40 {offsets = [0, 0, 8], sizes = [4, 48, 8], strides = [1, 1, 1]} : vector<4x48x24xf32> to vector<4x48x8xf32>
    %46 = arith.truncf %45 : vector<4x48x8xf32> to vector<4x48x8xbf16>
    %47 = vector.extract_strided_slice %40 {offsets = [0, 0, 16], sizes = [4, 48, 8], strides = [1, 1, 1]} : vector<4x48x24xf32> to vector<4x48x8xf32>
    %48 = arith.truncf %47 : vector<4x48x8xf32> to vector<4x48x8xbf16>
    %cst_26 = arith.constant dense<0.000000e+00> : vector<4x48x48xf32>
    %49 = tpu.matmul %44, %46, %cst_26 {dimension_numbers = #tpu.dot_dimension_numbers<[2], [2], [1], [1], [0, 0, 0, 1, 1, 1], [0], [0]>} : vector<4x48x8xbf16>, vector<4x48x8xbf16>, vector<4x48x48xf32> -> vector<4x48x48xf32>
    %50 = vector.shape_cast %42 : vector<48x48xf32> to vector<1x48x48xf32>
    %51 = vector.broadcast %50 : vector<1x48x48xf32> to vector<4x48x48xf32>
    %52 = arith.addf %49, %51 : vector<4x48x48xf32>
    %cst_27 = arith.constant dense<0xFF800000> : vector<4x48xf32>
    %53 = vector.multi_reduction <maximumf>, %52, %cst_27 [2] : vector<4x48x48xf32> to vector<4x48xf32>
    %54 = vector.shape_cast %53 : vector<4x48xf32> to vector<4x48x1xf32>
    %55 = vector.broadcast %54 : vector<4x48x1xf32> to vector<4x48x48xf32>
    %56 = arith.subf %52, %55 : vector<4x48x48xf32>
    %57 = math.exp %56 : vector<4x48x48xf32>
    %cst_28 = arith.constant dense<0.000000e+00> : vector<4x48xf32>
    %58 = vector.multi_reduction <add>, %57, %cst_28 [2] : vector<4x48x48xf32> to vector<4x48xf32>
    %59 = vector.shape_cast %58 : vector<4x48xf32> to vector<4x48x1xf32>
    %60 = vector.broadcast %59 : vector<4x48x1xf32> to vector<4x48x48xf32>
    %61 = arith.divf %57, %60 : vector<4x48x48xf32>
    %62 = arith.truncf %61 : vector<4x48x48xf32> to vector<4x48x48xbf16>
    %cst_29 = arith.constant dense<0.000000e+00> : vector<4x48x8xf32>
    %63 = tpu.matmul %62, %48, %cst_29 {dimension_numbers = #tpu.dot_dimension_numbers<[2], [1], [1], [2], [0, 0, 0, 1, 1, 2], [0], [0]>} : vector<4x48x48xbf16>, vector<4x48x8xbf16>, vector<4x48x8xf32> -> vector<4x48x8xf32>
    %64 = arith.truncf %63 : vector<4x48x8xf32> to vector<4x48x8xbf16>
    %c0_30 = arith.constant 0 : index
    %c0_31 = arith.constant 0 : index
    %c0_32 = arith.constant 0 : index
    %c0_33 = arith.constant 0 : index
    %65 = vector.load %arg6[%c0_30, %c0_31, %c0_32, %c0_33] : memref<3x4x8x32xbf16, #tpu.memory_space<vmem>>, vector<1x4x8x32xbf16>
    %66 = vector.shape_cast %65 : vector<1x4x8x32xbf16> to vector<4x8x32xbf16>
    %cst_34 = arith.constant dense<0.000000e+00> : vector<4x48x32xf32>
    %67 = tpu.matmul %64, %66, %cst_34 {dimension_numbers = #tpu.dot_dimension_numbers<[2], [1], [1], [2], [0, 0, 0, 1, 1, 2], [0], [0]>} : vector<4x48x8xbf16>, vector<4x8x32xbf16>, vector<4x48x32xf32> -> vector<4x48x32xf32>
    %cst_35 = arith.constant dense<0.000000e+00> : vector<48x32xf32>
    %68 = vector.multi_reduction <add>, %67, %cst_35 [0] : vector<4x48x32xf32> to vector<48x32xf32>
    %69 = vector.extract_strided_slice %6 {offsets = [2, 0, 0, 0], sizes = [1, 1, 1, 32], strides = [1, 1, 1, 1]} : vector<3x4x1x32xf32> to vector<1x1x1x32xf32>
    %70 = vector.shape_cast %69 : vector<1x1x1x32xf32> to vector<1x32xf32>
    %71 = vector.broadcast %70 : vector<1x32xf32> to vector<48x32xf32>
    %72 = arith.addf %68, %71 : vector<48x32xf32>
    %73 = arith.addf %1, %72 : vector<48x32xf32>
    %cst_36 = arith.constant dense<0.000000e+00> : vector<48xf32>
    %74 = vector.multi_reduction <add>, %73, %cst_36 [1] : vector<48x32xf32> to vector<48xf32>
    %75 = vector.shape_cast %74 : vector<48xf32> to vector<48x1xf32>
    %cst_37 = arith.constant 3.200000e+01 : f32
    %76 = vector.broadcast %cst_37 : f32 to vector<48x1xf32>
    %77 = arith.divf %75, %76 : vector<48x1xf32>
    %78 = vector.broadcast %77 : vector<48x1xf32> to vector<48x32xf32>
    %79 = arith.subf %73, %78 : vector<48x32xf32>
    %80 = arith.mulf %79, %79 : vector<48x32xf32>
    %cst_38 = arith.constant dense<0.000000e+00> : vector<48xf32>
    %81 = vector.multi_reduction <add>, %80, %cst_38 [1] : vector<48x32xf32> to vector<48xf32>
    %82 = vector.shape_cast %81 : vector<48xf32> to vector<48x1xf32>
    %cst_39 = arith.constant 3.200000e+01 : f32
    %83 = vector.broadcast %cst_39 : f32 to vector<48x1xf32>
    %84 = arith.divf %82, %83 : vector<48x1xf32>
    %cst_40 = arith.constant 9.99999974E-6 : f32
    %85 = vector.broadcast %cst_40 : f32 to vector<48x1xf32>
    %86 = arith.addf %84, %85 : vector<48x1xf32>
    %87 = math.rsqrt %86 : vector<48x1xf32>
    %88 = vector.broadcast %87 : vector<48x1xf32> to vector<48x32xf32>
    %89 = arith.mulf %79, %88 : vector<48x32xf32>
    %90 = vector.extract_strided_slice %6 {offsets = [0, 1, 0, 0], sizes = [1, 1, 1, 32], strides = [1, 1, 1, 1]} : vector<3x4x1x32xf32> to vector<1x1x1x32xf32>
    %91 = vector.shape_cast %90 : vector<1x1x1x32xf32> to vector<1x32xf32>
    %92 = vector.broadcast %91 : vector<1x32xf32> to vector<48x32xf32>
    %93 = arith.mulf %89, %92 : vector<48x32xf32>
    %94 = vector.extract_strided_slice %6 {offsets = [1, 1, 0, 0], sizes = [1, 1, 1, 32], strides = [1, 1, 1, 1]} : vector<3x4x1x32xf32> to vector<1x1x1x32xf32>
    %95 = vector.shape_cast %94 : vector<1x1x1x32xf32> to vector<1x32xf32>
    %96 = vector.broadcast %95 : vector<1x32xf32> to vector<48x32xf32>
    %97 = arith.addf %93, %96 : vector<48x32xf32>
    %98 = arith.truncf %97 : vector<48x32xf32> to vector<48x32xbf16>
    %99 = vector.shape_cast %98 : vector<48x32xbf16> to vector<1x48x32xbf16>
    %100 = vector.shape_cast %99 : vector<1x48x32xbf16> to vector<1x48x32xbf16>
    %101 = vector.broadcast %100 : vector<1x48x32xbf16> to vector<4x48x32xbf16>
    %c1_41 = arith.constant 1 : index
    %c0_42 = arith.constant 0 : index
    %c0_43 = arith.constant 0 : index
    %c0_44 = arith.constant 0 : index
    %102 = vector.load %arg5[%c1_41, %c0_42, %c0_43, %c0_44] : memref<4x4x32x24xbf16, #tpu.memory_space<vmem>>, vector<1x4x32x24xbf16>
    %103 = vector.shape_cast %102 : vector<1x4x32x24xbf16> to vector<4x32x24xbf16>
    %cst_45 = arith.constant dense<0.000000e+00> : vector<4x48x24xf32>
    %104 = tpu.matmul %101, %103, %cst_45 {dimension_numbers = #tpu.dot_dimension_numbers<[2], [1], [1], [2], [0, 0, 0, 1, 1, 2], [0], [0]>} : vector<4x48x32xbf16>, vector<4x32x24xbf16>, vector<4x48x24xf32> -> vector<4x48x24xf32>
    %c1_46 = arith.constant 1 : index
    %c0_47 = arith.constant 0 : index
    %c0_48 = arith.constant 0 : index
    %c0_49 = arith.constant 0 : index
    %105 = vector.load %arg2[%c1_46, %c0_47, %c0_48, %c0_49] : memref<4x4x48x24xf32, #tpu.memory_space<vmem>>, vector<1x4x48x24xf32>
    %106 = vector.shape_cast %105 : vector<1x4x48x24xf32> to vector<4x48x24xf32>
    %107 = arith.addf %104, %106 : vector<4x48x24xf32>
    %c1_50 = arith.constant 1 : index
    %c0_51 = arith.constant 0 : index
    %c0_52 = arith.constant 0 : index
    %108 = vector.load %arg1[%c1_50, %c0_51, %c0_52] : memref<3x48x48xf32, #tpu.memory_space<vmem>>, vector<1x48x48xf32>
    %109 = vector.shape_cast %108 : vector<1x48x48xf32> to vector<48x48xf32>
    %110 = vector.extract_strided_slice %107 {offsets = [0, 0, 0], sizes = [4, 48, 8], strides = [1, 1, 1]} : vector<4x48x24xf32> to vector<4x48x8xf32>
    %111 = arith.truncf %110 : vector<4x48x8xf32> to vector<4x48x8xbf16>
    %112 = vector.extract_strided_slice %107 {offsets = [0, 0, 8], sizes = [4, 48, 8], strides = [1, 1, 1]} : vector<4x48x24xf32> to vector<4x48x8xf32>
    %113 = arith.truncf %112 : vector<4x48x8xf32> to vector<4x48x8xbf16>
    %114 = vector.extract_strided_slice %107 {offsets = [0, 0, 16], sizes = [4, 48, 8], strides = [1, 1, 1]} : vector<4x48x24xf32> to vector<4x48x8xf32>
    %115 = arith.truncf %114 : vector<4x48x8xf32> to vector<4x48x8xbf16>
    %cst_53 = arith.constant dense<0.000000e+00> : vector<4x48x48xf32>
    %116 = tpu.matmul %111, %113, %cst_53 {dimension_numbers = #tpu.dot_dimension_numbers<[2], [2], [1], [1], [0, 0, 0, 1, 1, 1], [0], [0]>} : vector<4x48x8xbf16>, vector<4x48x8xbf16>, vector<4x48x48xf32> -> vector<4x48x48xf32>
    %117 = vector.shape_cast %109 : vector<48x48xf32> to vector<1x48x48xf32>
    %118 = vector.broadcast %117 : vector<1x48x48xf32> to vector<4x48x48xf32>
    %119 = arith.addf %116, %118 : vector<4x48x48xf32>
    %cst_54 = arith.constant dense<0xFF800000> : vector<4x48xf32>
    %120 = vector.multi_reduction <maximumf>, %119, %cst_54 [2] : vector<4x48x48xf32> to vector<4x48xf32>
    %121 = vector.shape_cast %120 : vector<4x48xf32> to vector<4x48x1xf32>
    %122 = vector.broadcast %121 : vector<4x48x1xf32> to vector<4x48x48xf32>
    %123 = arith.subf %119, %122 : vector<4x48x48xf32>
    %124 = math.exp %123 : vector<4x48x48xf32>
    %cst_55 = arith.constant dense<0.000000e+00> : vector<4x48xf32>
    %125 = vector.multi_reduction <add>, %124, %cst_55 [2] : vector<4x48x48xf32> to vector<4x48xf32>
    %126 = vector.shape_cast %125 : vector<4x48xf32> to vector<4x48x1xf32>
    %127 = vector.broadcast %126 : vector<4x48x1xf32> to vector<4x48x48xf32>
    %128 = arith.divf %124, %127 : vector<4x48x48xf32>
    %129 = arith.truncf %128 : vector<4x48x48xf32> to vector<4x48x48xbf16>
    %cst_56 = arith.constant dense<0.000000e+00> : vector<4x48x8xf32>
    %130 = tpu.matmul %129, %115, %cst_56 {dimension_numbers = #tpu.dot_dimension_numbers<[2], [1], [1], [2], [0, 0, 0, 1, 1, 2], [0], [0]>} : vector<4x48x48xbf16>, vector<4x48x8xbf16>, vector<4x48x8xf32> -> vector<4x48x8xf32>
    %131 = arith.truncf %130 : vector<4x48x8xf32> to vector<4x48x8xbf16>
    %c1_57 = arith.constant 1 : index
    %c0_58 = arith.constant 0 : index
    %c0_59 = arith.constant 0 : index
    %c0_60 = arith.constant 0 : index
    %132 = vector.load %arg6[%c1_57, %c0_58, %c0_59, %c0_60] : memref<3x4x8x32xbf16, #tpu.memory_space<vmem>>, vector<1x4x8x32xbf16>
    %133 = vector.shape_cast %132 : vector<1x4x8x32xbf16> to vector<4x8x32xbf16>
    %cst_61 = arith.constant dense<0.000000e+00> : vector<4x48x32xf32>
    %134 = tpu.matmul %131, %133, %cst_61 {dimension_numbers = #tpu.dot_dimension_numbers<[2], [1], [1], [2], [0, 0, 0, 1, 1, 2], [0], [0]>} : vector<4x48x8xbf16>, vector<4x8x32xbf16>, vector<4x48x32xf32> -> vector<4x48x32xf32>
    %cst_62 = arith.constant dense<0.000000e+00> : vector<48x32xf32>
    %135 = vector.multi_reduction <add>, %134, %cst_62 [0] : vector<4x48x32xf32> to vector<48x32xf32>
    %136 = vector.extract_strided_slice %6 {offsets = [2, 1, 0, 0], sizes = [1, 1, 1, 32], strides = [1, 1, 1, 1]} : vector<3x4x1x32xf32> to vector<1x1x1x32xf32>
    %137 = vector.shape_cast %136 : vector<1x1x1x32xf32> to vector<1x32xf32>
    %138 = vector.broadcast %137 : vector<1x32xf32> to vector<48x32xf32>
    %139 = arith.addf %135, %138 : vector<48x32xf32>
    %140 = arith.addf %73, %139 : vector<48x32xf32>
    %141 = arith.mulf %140, %5 : vector<48x32xf32>
    %cst_63 = arith.constant dense<0.000000e+00> : vector<48xf32>
    %142 = vector.multi_reduction <add>, %141, %cst_63 [1] : vector<48x32xf32> to vector<48xf32>
    %143 = vector.shape_cast %142 : vector<48xf32> to vector<48x1xf32>
    %cst_64 = arith.constant 3.200000e+01 : f32
    %144 = vector.broadcast %cst_64 : f32 to vector<48x1xf32>
    %145 = arith.divf %143, %144 : vector<48x1xf32>
    %146 = vector.broadcast %145 : vector<48x1xf32> to vector<48x32xf32>
    %147 = arith.subf %141, %146 : vector<48x32xf32>
    %148 = arith.mulf %147, %147 : vector<48x32xf32>
    %cst_65 = arith.constant dense<0.000000e+00> : vector<48xf32>
    %149 = vector.multi_reduction <add>, %148, %cst_65 [1] : vector<48x32xf32> to vector<48xf32>
    %150 = vector.shape_cast %149 : vector<48xf32> to vector<48x1xf32>
    %cst_66 = arith.constant 3.200000e+01 : f32
    %151 = vector.broadcast %cst_66 : f32 to vector<48x1xf32>
    %152 = arith.divf %150, %151 : vector<48x1xf32>
    %cst_67 = arith.constant 9.99999974E-6 : f32
    %153 = vector.broadcast %cst_67 : f32 to vector<48x1xf32>
    %154 = arith.addf %152, %153 : vector<48x1xf32>
    %155 = math.rsqrt %154 : vector<48x1xf32>
    %156 = vector.broadcast %155 : vector<48x1xf32> to vector<48x32xf32>
    %157 = arith.mulf %147, %156 : vector<48x32xf32>
    %158 = vector.extract_strided_slice %6 {offsets = [0, 2, 0, 0], sizes = [1, 1, 1, 32], strides = [1, 1, 1, 1]} : vector<3x4x1x32xf32> to vector<1x1x1x32xf32>
    %159 = vector.shape_cast %158 : vector<1x1x1x32xf32> to vector<1x32xf32>
    %160 = vector.broadcast %159 : vector<1x32xf32> to vector<48x32xf32>
    %161 = arith.mulf %157, %160 : vector<48x32xf32>
    %162 = vector.extract_strided_slice %6 {offsets = [1, 2, 0, 0], sizes = [1, 1, 1, 32], strides = [1, 1, 1, 1]} : vector<3x4x1x32xf32> to vector<1x1x1x32xf32>
    %163 = vector.shape_cast %162 : vector<1x1x1x32xf32> to vector<1x32xf32>
    %164 = vector.broadcast %163 : vector<1x32xf32> to vector<48x32xf32>
    %165 = arith.addf %161, %164 : vector<48x32xf32>
    %166 = arith.truncf %165 : vector<48x32xf32> to vector<48x32xbf16>
    %167 = vector.shape_cast %166 : vector<48x32xbf16> to vector<1x48x32xbf16>
    %168 = vector.shape_cast %167 : vector<1x48x32xbf16> to vector<1x48x32xbf16>
    %169 = vector.broadcast %168 : vector<1x48x32xbf16> to vector<4x48x32xbf16>
    %c2_68 = arith.constant 2 : index
    %c0_69 = arith.constant 0 : index
    %c0_70 = arith.constant 0 : index
    %c0_71 = arith.constant 0 : index
    %170 = vector.load %arg5[%c2_68, %c0_69, %c0_70, %c0_71] : memref<4x4x32x24xbf16, #tpu.memory_space<vmem>>, vector<1x4x32x24xbf16>
    %171 = vector.shape_cast %170 : vector<1x4x32x24xbf16> to vector<4x32x24xbf16>
    %cst_72 = arith.constant dense<0.000000e+00> : vector<4x48x24xf32>
    %172 = tpu.matmul %169, %171, %cst_72 {dimension_numbers = #tpu.dot_dimension_numbers<[2], [1], [1], [2], [0, 0, 0, 1, 1, 2], [0], [0]>} : vector<4x48x32xbf16>, vector<4x32x24xbf16>, vector<4x48x24xf32> -> vector<4x48x24xf32>
    %c2_73 = arith.constant 2 : index
    %c0_74 = arith.constant 0 : index
    %c0_75 = arith.constant 0 : index
    %c0_76 = arith.constant 0 : index
    %173 = vector.load %arg2[%c2_73, %c0_74, %c0_75, %c0_76] : memref<4x4x48x24xf32, #tpu.memory_space<vmem>>, vector<1x4x48x24xf32>
    %174 = vector.shape_cast %173 : vector<1x4x48x24xf32> to vector<4x48x24xf32>
    %175 = arith.addf %172, %174 : vector<4x48x24xf32>
    %176 = arith.truncf %3 : vector<48x32xf32> to vector<48x32xbf16>
    %177 = vector.shape_cast %176 : vector<48x32xbf16> to vector<1x48x32xbf16>
    %178 = vector.shape_cast %177 : vector<1x48x32xbf16> to vector<1x48x32xbf16>
    %179 = vector.broadcast %178 : vector<1x48x32xbf16> to vector<4x48x32xbf16>
    %c3 = arith.constant 3 : index
    %c0_77 = arith.constant 0 : index
    %c0_78 = arith.constant 0 : index
    %c0_79 = arith.constant 0 : index
    %180 = vector.load %arg5[%c3, %c0_77, %c0_78, %c0_79] : memref<4x4x32x24xbf16, #tpu.memory_space<vmem>>, vector<1x4x32x24xbf16>
    %181 = vector.shape_cast %180 : vector<1x4x32x24xbf16> to vector<4x32x24xbf16>
    %cst_80 = arith.constant dense<0.000000e+00> : vector<4x48x24xf32>
    %182 = tpu.matmul %179, %181, %cst_80 {dimension_numbers = #tpu.dot_dimension_numbers<[2], [1], [1], [2], [0, 0, 0, 1, 1, 2], [0], [0]>} : vector<4x48x32xbf16>, vector<4x32x24xbf16>, vector<4x48x24xf32> -> vector<4x48x24xf32>
    %c3_81 = arith.constant 3 : index
    %c0_82 = arith.constant 0 : index
    %c0_83 = arith.constant 0 : index
    %c0_84 = arith.constant 0 : index
    %183 = vector.load %arg2[%c3_81, %c0_82, %c0_83, %c0_84] : memref<4x4x48x24xf32, #tpu.memory_space<vmem>>, vector<1x4x48x24xf32>
    %184 = vector.shape_cast %183 : vector<1x4x48x24xf32> to vector<4x48x24xf32>
    %185 = arith.addf %182, %184 : vector<4x48x24xf32>
    %c2_85 = arith.constant 2 : index
    %c0_86 = arith.constant 0 : index
    %c0_87 = arith.constant 0 : index
    %186 = vector.load %arg1[%c2_85, %c0_86, %c0_87] : memref<3x48x48xf32, #tpu.memory_space<vmem>>, vector<1x48x48xf32>
    %187 = vector.shape_cast %186 : vector<1x48x48xf32> to vector<48x48xf32>
    %188 = vector.extract_strided_slice %175 {offsets = [0, 0, 0], sizes = [4, 48, 8], strides = [1, 1, 1]} : vector<4x48x24xf32> to vector<4x48x8xf32>
    %189 = arith.truncf %188 : vector<4x48x8xf32> to vector<4x48x8xbf16>
    %190 = vector.extract_strided_slice %185 {offsets = [0, 0, 8], sizes = [4, 48, 8], strides = [1, 1, 1]} : vector<4x48x24xf32> to vector<4x48x8xf32>
    %191 = arith.truncf %190 : vector<4x48x8xf32> to vector<4x48x8xbf16>
    %192 = vector.extract_strided_slice %185 {offsets = [0, 0, 16], sizes = [4, 48, 8], strides = [1, 1, 1]} : vector<4x48x24xf32> to vector<4x48x8xf32>
    %193 = arith.truncf %192 : vector<4x48x8xf32> to vector<4x48x8xbf16>
    %cst_88 = arith.constant dense<0.000000e+00> : vector<4x48x48xf32>
    %194 = tpu.matmul %189, %191, %cst_88 {dimension_numbers = #tpu.dot_dimension_numbers<[2], [2], [1], [1], [0, 0, 0, 1, 1, 1], [0], [0]>} : vector<4x48x8xbf16>, vector<4x48x8xbf16>, vector<4x48x48xf32> -> vector<4x48x48xf32>
    %195 = vector.shape_cast %187 : vector<48x48xf32> to vector<1x48x48xf32>
    %196 = vector.broadcast %195 : vector<1x48x48xf32> to vector<4x48x48xf32>
    %197 = arith.addf %194, %196 : vector<4x48x48xf32>
    %cst_89 = arith.constant dense<0xFF800000> : vector<4x48xf32>
    %198 = vector.multi_reduction <maximumf>, %197, %cst_89 [2] : vector<4x48x48xf32> to vector<4x48xf32>
    %199 = vector.shape_cast %198 : vector<4x48xf32> to vector<4x48x1xf32>
    %200 = vector.broadcast %199 : vector<4x48x1xf32> to vector<4x48x48xf32>
    %201 = arith.subf %197, %200 : vector<4x48x48xf32>
    %202 = math.exp %201 : vector<4x48x48xf32>
    %cst_90 = arith.constant dense<0.000000e+00> : vector<4x48xf32>
    %203 = vector.multi_reduction <add>, %202, %cst_90 [2] : vector<4x48x48xf32> to vector<4x48xf32>
    %204 = vector.shape_cast %203 : vector<4x48xf32> to vector<4x48x1xf32>
    %205 = vector.broadcast %204 : vector<4x48x1xf32> to vector<4x48x48xf32>
    %206 = arith.divf %202, %205 : vector<4x48x48xf32>
    %207 = arith.truncf %206 : vector<4x48x48xf32> to vector<4x48x48xbf16>
    %cst_91 = arith.constant dense<0.000000e+00> : vector<4x48x8xf32>
    %208 = tpu.matmul %207, %193, %cst_91 {dimension_numbers = #tpu.dot_dimension_numbers<[2], [1], [1], [2], [0, 0, 0, 1, 1, 2], [0], [0]>} : vector<4x48x48xbf16>, vector<4x48x8xbf16>, vector<4x48x8xf32> -> vector<4x48x8xf32>
    %209 = arith.truncf %208 : vector<4x48x8xf32> to vector<4x48x8xbf16>
    %c2_92 = arith.constant 2 : index
    %c0_93 = arith.constant 0 : index
    %c0_94 = arith.constant 0 : index
    %c0_95 = arith.constant 0 : index
    %210 = vector.load %arg6[%c2_92, %c0_93, %c0_94, %c0_95] : memref<3x4x8x32xbf16, #tpu.memory_space<vmem>>, vector<1x4x8x32xbf16>
    %211 = vector.shape_cast %210 : vector<1x4x8x32xbf16> to vector<4x8x32xbf16>
    %cst_96 = arith.constant dense<0.000000e+00> : vector<4x48x32xf32>
    %212 = tpu.matmul %209, %211, %cst_96 {dimension_numbers = #tpu.dot_dimension_numbers<[2], [1], [1], [2], [0, 0, 0, 1, 1, 2], [0], [0]>} : vector<4x48x8xbf16>, vector<4x8x32xbf16>, vector<4x48x32xf32> -> vector<4x48x32xf32>
    %cst_97 = arith.constant dense<0.000000e+00> : vector<48x32xf32>
    %213 = vector.multi_reduction <add>, %212, %cst_97 [0] : vector<4x48x32xf32> to vector<48x32xf32>
    %214 = vector.extract_strided_slice %6 {offsets = [2, 2, 0, 0], sizes = [1, 1, 1, 32], strides = [1, 1, 1, 1]} : vector<3x4x1x32xf32> to vector<1x1x1x32xf32>
    %215 = vector.shape_cast %214 : vector<1x1x1x32xf32> to vector<1x32xf32>
    %216 = vector.broadcast %215 : vector<1x32xf32> to vector<48x32xf32>
    %217 = arith.addf %213, %216 : vector<48x32xf32>
    %218 = arith.addf %141, %217 : vector<48x32xf32>
    %cst_98 = arith.constant dense<0.000000e+00> : vector<48xf32>
    %219 = vector.multi_reduction <add>, %218, %cst_98 [1] : vector<48x32xf32> to vector<48xf32>
    %220 = vector.shape_cast %219 : vector<48xf32> to vector<48x1xf32>
    %cst_99 = arith.constant 3.200000e+01 : f32
    %221 = vector.broadcast %cst_99 : f32 to vector<48x1xf32>
    %222 = arith.divf %220, %221 : vector<48x1xf32>
    %223 = vector.broadcast %222 : vector<48x1xf32> to vector<48x32xf32>
    %224 = arith.subf %218, %223 : vector<48x32xf32>
    %225 = arith.mulf %224, %224 : vector<48x32xf32>
    %cst_100 = arith.constant dense<0.000000e+00> : vector<48xf32>
    %226 = vector.multi_reduction <add>, %225, %cst_100 [1] : vector<48x32xf32> to vector<48xf32>
    %227 = vector.shape_cast %226 : vector<48xf32> to vector<48x1xf32>
    %cst_101 = arith.constant 3.200000e+01 : f32
    %228 = vector.broadcast %cst_101 : f32 to vector<48x1xf32>
    %229 = arith.divf %227, %228 : vector<48x1xf32>
    %cst_102 = arith.constant 9.99999974E-6 : f32
    %230 = vector.broadcast %cst_102 : f32 to vector<48x1xf32>
    %231 = arith.addf %229, %230 : vector<48x1xf32>
    %232 = math.rsqrt %231 : vector<48x1xf32>
    %233 = vector.broadcast %232 : vector<48x1xf32> to vector<48x32xf32>
    %234 = arith.mulf %224, %233 : vector<48x32xf32>
    %235 = vector.extract_strided_slice %6 {offsets = [0, 3, 0, 0], sizes = [1, 1, 1, 32], strides = [1, 1, 1, 1]} : vector<3x4x1x32xf32> to vector<1x1x1x32xf32>
    %236 = vector.shape_cast %235 : vector<1x1x1x32xf32> to vector<1x32xf32>
    %237 = vector.broadcast %236 : vector<1x32xf32> to vector<48x32xf32>
    %238 = arith.mulf %234, %237 : vector<48x32xf32>
    %239 = vector.extract_strided_slice %6 {offsets = [1, 3, 0, 0], sizes = [1, 1, 1, 32], strides = [1, 1, 1, 1]} : vector<3x4x1x32xf32> to vector<1x1x1x32xf32>
    %240 = vector.shape_cast %239 : vector<1x1x1x32xf32> to vector<1x32xf32>
    %241 = vector.broadcast %240 : vector<1x32xf32> to vector<48x32xf32>
    %242 = arith.addf %238, %241 : vector<48x32xf32>
    %243 = arith.truncf %242 : vector<48x32xf32> to vector<48x32xbf16>
    %c0_103 = arith.constant 0 : index
    %c0_104 = arith.constant 0 : index
    %c0_105 = arith.constant 0 : index
    %244 = vector.load %arg7[%c0_103, %c0_104, %c0_105] : memref<2x32x128xbf16, #tpu.memory_space<vmem>>, vector<1x32x128xbf16>
    %245 = vector.shape_cast %244 : vector<1x32x128xbf16> to vector<32x128xbf16>
    %cst_106 = arith.constant dense<0.000000e+00> : vector<48x128xf32>
    %246 = tpu.matmul %243, %245, %cst_106 {dimension_numbers = #tpu.dot_dimension_numbers<[1], [0], [0], [1], [0, 0, 1, 1], [], []>} : vector<48x32xbf16>, vector<32x128xbf16>, vector<48x128xf32> -> vector<48x128xf32>
    %c0_107 = arith.constant 0 : index
    %c0_108 = arith.constant 0 : index
    %247 = vector.load %arg4[%c0_107, %c0_108] : memref<1x128xf32, #tpu.memory_space<vmem>>, vector<1x128xf32>
    %248 = vector.broadcast %247 : vector<1x128xf32> to vector<48x128xf32>
    %249 = arith.addf %246, %248 : vector<48x128xf32>
    %cst_109 = arith.constant 0.000000e+00 : f32
    %250 = vector.broadcast %cst_109 : f32 to vector<48x128xf32>
    %251 = arith.maximumf %249, %250 : vector<48x128xf32>
    %252 = arith.truncf %251 : vector<48x128xf32> to vector<48x128xbf16>
    %c1_110 = arith.constant 1 : index
    %c0_111 = arith.constant 0 : index
    %c0_112 = arith.constant 0 : index
    %253 = vector.load %arg7[%c1_110, %c0_111, %c0_112] : memref<2x32x128xbf16, #tpu.memory_space<vmem>>, vector<1x32x128xbf16>
    %254 = vector.shape_cast %253 : vector<1x32x128xbf16> to vector<32x128xbf16>
    %cst_113 = arith.constant dense<0.000000e+00> : vector<48x32xf32>
    %255 = tpu.matmul %252, %254, %cst_113 {dimension_numbers = #tpu.dot_dimension_numbers<[1], [1], [0], [0], [0, 0, 1, 0], [], []>} : vector<48x128xbf16>, vector<32x128xbf16>, vector<48x32xf32> -> vector<48x32xf32>
    %256 = vector.extract_strided_slice %6 {offsets = [2, 3, 0, 0], sizes = [1, 1, 1, 32], strides = [1, 1, 1, 1]} : vector<3x4x1x32xf32> to vector<1x1x1x32xf32>
    %257 = vector.shape_cast %256 : vector<1x1x1x32xf32> to vector<1x32xf32>
    %258 = vector.broadcast %257 : vector<1x32xf32> to vector<48x32xf32>
    %259 = arith.addf %255, %258 : vector<48x32xf32>
    %260 = arith.addf %218, %259 : vector<48x32xf32>
    %c0_114 = arith.constant 0 : index
    %c0_115 = arith.constant 0 : index
    %261 = vector.load %arg8[%c0_114, %c0_115] : memref<48x32xf32, #tpu.memory_space<vmem>>, vector<48x32xf32>
    tpu.vector_store %arg8[%c0_114, %c0_115], %260 {strides = array<i32>} : memref<48x32xf32, #tpu.memory_space<vmem>>, vector<48x32xf32>,
    return
  }
}

</mosaic_0001>

<llo_original>
// kernel: decoder_layer_forward.1
$region0: #{decoder_layer_forward.1}
  #allocation0 [shape = 'u32[]', space=smem, size = 0x4, offset = 0x4, fixed_abs, tag = 'smem constant byte address 0x4 - core index']
  #allocation1 [shape = 'u32[144,128]{1,0:T(1,128)}', space=vmem, size = 0x12000, scoped, tag = 'internal scratch']
  %s0 = inlined_call_operand.vmem [shape: f32[3,48,32], index: 0, kind: input, shape index: {}]
  %s1 = inlined_call_operand.vmem [shape: f32[3,48,48], index: 1, kind: input, shape index: {}]
  %s2 = inlined_call_operand.vmem [shape: f32[4,4,48,24], index: 2, kind: input, shape index: {}]
  %s3 = inlined_call_operand.vmem [shape: f32[3,4,1,32], index: 3, kind: input, shape index: {}]
  %s4 = inlined_call_operand.vmem [shape: f32[1,128], index: 4, kind: input, shape index: {}]
  %s5 = inlined_call_operand.vmem [shape: bf16[4,4,32,24], index: 5, kind: input, shape index: {}]
  %s6 = inlined_call_operand.vmem [shape: bf16[3,4,8,32], index: 6, kind: input, shape index: {}]
  %s7 = inlined_call_operand.vmem [shape: bf16[2,32,128], index: 7, kind: input, shape index: {}]
  %s8 = inlined_call_operand.vmem [shape: f32[48,32], index: 8, kind: output, shape index: {}]
  %s9 = sld [smem:[#allocation0]]
  $region42: #{decoder_layer_forward.1} parent=0
    _
  %s11 = ssub.s32 1, %s9
  %s12 = scalar_select 0, %s11, %s9
  // Predicated region
  $region2: #{decoder_layer_forward.1} parent=0 // pred_check
    _
  $region3: #{decoder_layer_forward.1} parent=0 // pred_check_branch
    %14 = sbr.rel (0) target = $region5
  $region4: #{decoder_layer_forward.1} parent=0 // pred_region
    _
  $region5: #{decoder_layer_forward.1} parent=0 // pred_fallthru
    _
  // Predicated region
  $region6: #{decoder_layer_forward.1} parent=0 // pred_check
    _
  $region7: #{decoder_layer_forward.1} parent=0 // pred_check_branch
    %16 = sbr.rel (0) target = $region9
  $region8: #{decoder_layer_forward.1} parent=0 // pred_region
    _
  $region9: #{decoder_layer_forward.1} parent=0 // pred_fallthru
    _
  // Predicated region
  $region10: #{decoder_layer_forward.1} parent=0 // pred_check
    _
  $region11: #{decoder_layer_forward.1} parent=0 // pred_check_branch
    %18 = sbr.rel (0) target = $region13
  $region12: #{decoder_layer_forward.1} parent=0 // pred_region
    _
  $region13: #{decoder_layer_forward.1} parent=0 // pred_fallthru
    _
  // Predicated region
  $region14: #{decoder_layer_forward.1} parent=0 // pred_check
    _
  $region15: #{decoder_layer_forward.1} parent=0 // pred_check_branch
    %20 = sbr.rel (0) target = $region17
  $region16: #{decoder_layer_forward.1} parent=0 // pred_region
    _
  $region17: #{decoder_layer_forward.1} parent=0 // pred_fallthru
    _
  // Predicated region
  $region18: #{decoder_layer_forward.1} parent=0 // pred_check
    _
  $region19: #{decoder_layer_forward.1} parent=0 // pred_check_branch
    %22 = sbr.rel (0) target = $region21
  $region20: #{decoder_layer_forward.1} parent=0 // pred_region
    _
  $region21: #{decoder_layer_forward.1} parent=0 // pred_fallthru
    _
  // Predicated region
  $region22: #{decoder_layer_forward.1} parent=0 // pred_check
    _
  $region23: #{decoder_layer_forward.1} parent=0 // pred_check_branch
    %24 = sbr.rel (0) target = $region25
  $region24: #{decoder_layer_forward.1} parent=0 // pred_region
    _
  $region25: #{decoder_layer_forward.1} parent=0 // pred_fallthru
    _
  // Predicated region
  $region26: #{decoder_layer_forward.1} parent=0 // pred_check
    _
  $region27: #{decoder_layer_forward.1} parent=0 // pred_check_branch
    %26 = sbr.rel (0) target = $region29
  $region28: #{decoder_layer_forward.1} parent=0 // pred_region
    _
  $region29: #{decoder_layer_forward.1} parent=0 // pred_fallthru
    _
  // Predicated region
  $region30: #{decoder_layer_forward.1} parent=0 // pred_check
    _
  $region31: #{decoder_layer_forward.1} parent=0 // pred_check_branch
    %28 = sbr.rel (0) target = $region33
  $region32: #{decoder_layer_forward.1} parent=0 // pred_region
    _
  $region33: #{decoder_layer_forward.1} parent=0 // pred_fallthru
    _
  %v30 = vld [vmem:[%s0] sm:$0xff]
  %v31 = vld [vmem:[%s0 + $0x8] sm:$0xff]
  %v32 = vld [vmem:[%s0 + $0x10] sm:$0xff]
  %v33 = vld [vmem:[%s0 + $0x18] sm:$0xff]
  %v34 = vld [vmem:[%s0 + $0x20] sm:$0xff]
  %v35 = vld [vmem:[%s0 + $0x28] sm:$0xff]
  %s36 = scalar_lea.vmem %s0, 48
  %v37 = vld [vmem:[%s36] sm:$0xff]
  %v38 = vld [vmem:[%s36 + $0x8] sm:$0xff]
  %v39 = vld [vmem:[%s36 + $0x10] sm:$0xff]
  %v40 = vld [vmem:[%s36 + $0x18] sm:$0xff]
  %v41 = vld [vmem:[%s36 + $0x20] sm:$0xff]
  %v42 = vld [vmem:[%s36 + $0x28] sm:$0xff]
  %s43 = scalar_lea.vmem %s0, 96
  %v44 = vld [vmem:[%s43] sm:$0xff]
  %v45 = vld [vmem:[%s43 + $0x8] sm:$0xff]
  %v46 = vld [vmem:[%s43 + $0x10] sm:$0xff]
  %v47 = vld [vmem:[%s43 + $0x18] sm:$0xff]
  %v48 = vld [vmem:[%s43 + $0x20] sm:$0xff]
  %v49 = vld [vmem:[%s43 + $0x28] sm:$0xff]
  %v50 = vld [vmem:[%s3] sm:$0x1]
  %v51 = vld [vmem:[%s3 + $0x1] sm:$0x1]
  %v52 = vld [vmem:[%s3 + $0x2] sm:$0x1]
  %v53 = vld [vmem:[%s3 + $0x3] sm:$0x1]
  %v54 = vld [vmem:[%s3 + $0x4] sm:$0x1]
  %v55 = vld [vmem:[%s3 + $0x5] sm:$0x1]
  %v56 = vld [vmem:[%s3 + $0x6] sm:$0x1]
  %v57 = vld [vmem:[%s3 + $0x7] sm:$0x1]
  %v58 = vld [vmem:[%s3 + $0x8] sm:$0x1]
  %v59 = vld [vmem:[%s3 + $0x9] sm:$0x1]
  %v60 = vld [vmem:[%s3 + $0xa] sm:$0x1]
  %v61 = vld [vmem:[%s3 + $0xb] sm:$0x1]
  %vm62 = vcmask 261120
  %v63 = vsel %vm62, %v30, 0.0
  %64 = vadd.xlane.f32.xlu0 %v63
  %v65 = vpop.xlane.xlu0 %64
  %v66 = vsel %vm62, %v31, 0.0
  %67 = vadd.xlane.f32.xlu0 %v66
  %v68 = vpop.xlane.xlu0 %67
  %v69 = vsel %vm62, %v32, 0.0
  %70 = vadd.xlane.f32.xlu0 %v69
  %v71 = vpop.xlane.xlu0 %70
  %v72 = vsel %vm62, %v33, 0.0
  %73 = vadd.xlane.f32.xlu0 %v72
  %v74 = vpop.xlane.xlu0 %73
  %v75 = vsel %vm62, %v34, 0.0
  %76 = vadd.xlane.f32.xlu0 %v75
  %v77 = vpop.xlane.xlu0 %76
  %v78 = vsel %vm62, %v35, 0.0
  %79 = vadd.xlane.f32.xlu0 %v78
  %v80 = vpop.xlane.xlu0 %79
  %v81 = vrcp.pop 32.0
  %v82 = vmul.f32 %v65, %v81
  %v83 = vmul.f32 %v68, %v81
  %v84 = vmul.f32 %v71, %v81
  %v85 = vmul.f32 %v74, %v81
  %v86 = vmul.f32 %v77, %v81
  %v87 = vmul.f32 %v80, %v81
  %v88 = vsub.f32 %v30, %v82
  %v89 = vsub.f32 %v31, %v83
  %v90 = vsub.f32 %v32, %v84
  %v91 = vsub.f32 %v33, %v85
  %v92 = vsub.f32 %v34, %v86
  %v93 = vsub.f32 %v35, %v87
  %v94 = vmul.f32 %v88, %v88
  %v95 = vmul.f32 %v89, %v89
  %v96 = vmul.f32 %v90, %v90
  %v97 = vmul.f32 %v91, %v91
  %v98 = vmul.f32 %v92, %v92
  %v99 = vmul.f32 %v93, %v93
  %v100 = vsel %vm62, %v94, 0.0
  %101 = vadd.xlane.f32.xlu0 %v100
  %v102 = vpop.xlane.xlu0 %101
  %v103 = vsel %vm62, %v95, 0.0
  %104 = vadd.xlane.f32.xlu0 %v103
  %v105 = vpop.xlane.xlu0 %104
  %v106 = vsel %vm62, %v96, 0.0
  %107 = vadd.xlane.f32.xlu0 %v106
  %v108 = vpop.xlane.xlu0 %107
  %v109 = vsel %vm62, %v97, 0.0
  %110 = vadd.xlane.f32.xlu0 %v109
  %v111 = vpop.xlane.xlu0 %110
  %v112 = vsel %vm62, %v98, 0.0
  %113 = vadd.xlane.f32.xlu0 %v112
  %v114 = vpop.xlane.xlu0 %113
  %v115 = vsel %vm62, %v99, 0.0
  %116 = vadd.xlane.f32.xlu0 %v115
  %v117 = vpop.xlane.xlu0 %116
  %v118 = vmul.f32 %v102, %v81
  %v119 = vmul.f32 %v105, %v81
  %v120 = vmul.f32 %v108, %v81
  %v121 = vmul.f32 %v111, %v81
  %v122 = vmul.f32 %v114, %v81
  %v123 = vmul.f32 %v117, %v81
  %v124 = vadd.f32 %v118, 1e-05
  %v125 = vadd.f32 %v119, 1e-05
  %v126 = vadd.f32 %v120, 1e-05
  %v127 = vadd.f32 %v121, 1e-05
  %v128 = vadd.f32 %v122, 1e-05
  %v129 = vadd.f32 %v123, 1e-05
  %v130 = vrsqrt.pop %v124
  %v131 = vrsqrt.pop %v125
  %v132 = vrsqrt.pop %v126
  %v133 = vrsqrt.pop %v127
  %v134 = vrsqrt.pop %v128
  %v135 = vrsqrt.pop %v129
  %v136 = vmul.f32 %v88, %v130
  %v137 = vmul.f32 %v89, %v131
  %v138 = vmul.f32 %v90, %v132
  %v139 = vmul.f32 %v91, %v133
  %v140 = vmul.f32 %v92, %v134
  %v141 = vmul.f32 %v93, %v135
  %v143 = vlaneseq
  %v144 = vshrl.u32 %v143, 7
  %v145 = vsub.s32 0, %v144
  %v146 = vrot.slane %v50, %v145
  %v148 = vmul.f32 %v136, %v146
  %v149 = vmul.f32 %v137, %v146
  %v150 = vmul.f32 %v138, %v146
  %v151 = vmul.f32 %v139, %v146
  %v152 = vmul.f32 %v140, %v146
  %v153 = vmul.f32 %v141, %v146
  %v155 = vlaneseq
  %v156 = vshrl.u32 %v155, 7
  %v157 = vsub.s32 0, %v156
  %v158 = vrot.slane %v54, %v157
  %v160 = vadd.f32 %v148, %v158
  %v161 = vadd.f32 %v149, %v158
  %v162 = vadd.f32 %v150, %v158
  %v163 = vadd.f32 %v151, %v158
  %v164 = vadd.f32 %v152, %v158
  %v165 = vadd.f32 %v153, %v158
  %v166 = vpack.c.bf16 %v161, %v160
  %v167 = vpack.c.bf16 %v163, %v162
  %v168 = vpack.c.bf16 %v165, %v164
  %v169 = vld [vmem:[%s5] sm:$0xf]
  %v170 = vld [vmem:[%s5 + $0x4] sm:$0xf]
  %v171 = vld [vmem:[%s5 + $0x8] sm:$0xf]
  %v172 = vld [vmem:[%s5 + $0xc] sm:$0xf]
  %v173 = vld [vmem:[%s5 + $0x10] sm:$0xf]
  %v174 = vld [vmem:[%s5 + $0x14] sm:$0xf]
  %v175 = vld [vmem:[%s5 + $0x18] sm:$0xf]
  %v176 = vld [vmem:[%s5 + $0x1c] sm:$0xf]
  %v177 = vld [vmem:[%s5 + $0x20] sm:$0xf]
  %v178 = vld [vmem:[%s5 + $0x24] sm:$0xf]
  %v179 = vld [vmem:[%s5 + $0x28] sm:$0xf]
  %v180 = vld [vmem:[%s5 + $0x2c] sm:$0xf]
  %v181 = vld [vmem:[%s5 + $0x30] sm:$0xf]
  %v182 = vld [vmem:[%s5 + $0x34] sm:$0xf]
  %v183 = vld [vmem:[%s5 + $0x38] sm:$0xf]
  %v184 = vld [vmem:[%s5 + $0x3c] sm:$0xf]
  %v185 = vld [vmem:[%s2] sm:$0xff]
  %v186 = vld [vmem:[%s2 + $0x8] sm:$0xff]
  %v187 = vld [vmem:[%s2 + $0x10] sm:$0xff]
  %v188 = vld [vmem:[%s2 + $0x18] sm:$0xff]
  %v189 = vld [vmem:[%s2 + $0x20] sm:$0xff]
  %v190 = vld [vmem:[%s2 + $0x28] sm:$0xff]
  %v191 = vld [vmem:[%s2 + $0x30] sm:$0xff]
  %v192 = vld [vmem:[%s2 + $0x38] sm:$0xff]
  %v193 = vld [vmem:[%s2 + $0x40] sm:$0xff]
  %v194 = vld [vmem:[%s2 + $0x48] sm:$0xff]
  %v195 = vld [vmem:[%s2 + $0x50] sm:$0xff]
  %v196 = vld [vmem:[%s2 + $0x58] sm:$0xff]
  %v197 = vld [vmem:[%s2 + $0x60] sm:$0xff]
  %v198 = vld [vmem:[%s2 + $0x68] sm:$0xff]
  %v199 = vld [vmem:[%s2 + $0x70] sm:$0xff]
  %v200 = vld [vmem:[%s2 + $0x78] sm:$0xff]
  %v201 = vld [vmem:[%s2 + $0x80] sm:$0xff]
  %v202 = vld [vmem:[%s2 + $0x88] sm:$0xff]
  %v203 = vld [vmem:[%s2 + $0x90] sm:$0xff]
  %v204 = vld [vmem:[%s2 + $0x98] sm:$0xff]
  %v205 = vld [vmem:[%s2 + $0xa0] sm:$0xff]
  %v206 = vld [vmem:[%s2 + $0xa8] sm:$0xff]
  %v207 = vld [vmem:[%s2 + $0xb0] sm:$0xff]
  %v208 = vld [vmem:[%s2 + $0xb8] sm:$0xff]
  %v213 = vunpack.c.l.b16 %v169
  %v214 = vunpack.c.l.b16 %v170
  %v215 = vunpack.c.l.b16 %v171
  %v216 = vunpack.c.l.b16 %v172
  %v217 = vpack.c.b16 %v214, %v213
  %v218 = vpack.c.b16 %v216, %v215
  %v222 = vsel %vm62, %v166, 0
  %v225 = vsel %vm62, %v167, 0
  %v228 = vsel %vm62, %v168, 0
  %230 = vmatprep.subr.bf16.mxu0 0
  %231 = vmatpush1.bf16.msra.mxu0 %v217
  %232 = vmatprep.subr.bf16.mxu0 0
  %233 = vmatpush1.bf16.msra.mxu0 %v218
  %234 = vmatprep.subr.bf16.mxu0 0
  %235 = vmatpush1.bf16.msra.mxu0 0
  %236 = vmatprep.subr.bf16.mxu0 0
  %237 = vmatpush1.bf16.msra.mxu0 0
  %238 = vmatprep.subr.bf16.mxu0 0
  %239 = vmatpush1.bf16.msra.mxu0 0
  %240 = vmatprep.subr.bf16.mxu0 0
  %241 = vmatpush1.bf16.msra.mxu0 0
  %242 = vmatprep.subr.bf16.mxu0 0
  %243 = vmatpush1.bf16.msra.mxu0 0
  %244 = vmatprep.subr.bf16.mxu0 0
  %245 = vmatpush1.bf16.msra.mxu0 0
  %246 = vmatprep.subr.bf16.mxu0 0
  %247 = vmatpush1.bf16.msra.mxu0 0
  %248 = vmatprep.subr.bf16.mxu0 0
  %249 = vmatpush1.bf16.msra.mxu0 0
  %250 = vmatprep.subr.bf16.mxu0 0
  %251 = vmatpush1.bf16.msra.mxu0 0
  %252 = vmatprep.subr.bf16.mxu0 0
  %253 = vmatpush1.bf16.msra.mxu0 0
  %254 = vmatprep.subr.bf16.mxu0 0
  %255 = vmatpush1.bf16.msra.mxu0 0
  %256 = vmatprep.subr.bf16.mxu0 0
  %257 = vmatpush1.bf16.msra.mxu0 0
  %258 = vmatprep.subr.bf16.mxu0 0
  %259 = vmatpush1.bf16.msra.mxu0 0
  %260 = vmatprep.subr.bf16.mxu0 0
  %261 = vmatpush1.bf16.msra.mxu0 0
  %262 = vmatprep.mubr.bf16.mxu0 0
  %263 = vmatmul.mubr.bf16.gmra.mrb[0].mxu0 %v222
  %v264 = vpop.f32.mrb[0].mxu0
  %v265 = vadd.f32 %v185, %v264
  %v266 = vpop.f32.mrb[0].mxu0
  %v267 = vpop.f32.mrb[0].mxu0
  %v268 = vadd.f32 %v186, %v267
  %v269 = vpop.f32.mrb[0].mxu0
  %270 = vmatprep.mubr.bf16.mxu0 0
  %271 = vmatmul.mubr.bf16.gmra.mrb[0].mxu0 %v225
  %v272 = vpop.f32.mrb[0].mxu0
  %v273 = vadd.f32 %v187, %v272
  %v274 = vpop.f32.mrb[0].mxu0
  %v275 = vpop.f32.mrb[0].mxu0
  %v276 = vadd.f32 %v188, %v275
  %v277 = vpop.f32.mrb[0].mxu0
  %278 = vmatprep.mubr.bf16.mxu0 0
  %279 = vmatmul.mubr.bf16.gmra.mrb[0].mxu0 %v228
  %v280 = vpop.f32.mrb[0].mxu0
  %v281 = vadd.f32 %v189, %v280
  %v282 = vpop.f32.mrb[0].mxu0
  %v283 = vpop.f32.mrb[0].mxu0
  %v284 = vadd.f32 %v190, %v283
  %v285 = vpop.f32.mrb[0].mxu0
  %286 = vdwg.mxu0
  %v291 = vunpack.c.l.b16 %v173
  %v292 = vunpack.c.l.b16 %v174
  %v293 = vunpack.c.l.b16 %v175
  %v294 = vunpack.c.l.b16 %v176
  %v295 = vpack.c.b16 %v292, %v291
  %v296 = vpack.c.b16 %v294, %v293
  %299 = vmatprep.subr.bf16.mxu0 0
  %300 = vmatpush1.bf16.msra.mxu0 %v295
  %301 = vmatprep.subr.bf16.mxu0 0
  %302 = vmatpush1.bf16.msra.mxu0 %v296
  %303 = vmatprep.subr.bf16.mxu0 0
  %304 = vmatpush1.bf16.msra.mxu0 0
  %305 = vmatprep.subr.bf16.mxu0 0
  %306 = vmatpush1.bf16.msra.mxu0 0
  %307 = vmatprep.subr.bf16.mxu0 0
  %308 = vmatpush1.bf16.msra.mxu0 0
  %309 = vmatprep.subr.bf16.mxu0 0
  %310 = vmatpush1.bf16.msra.mxu0 0
  %311 = vmatprep.subr.bf16.mxu0 0
  %312 = vmatpush1.bf16.msra.mxu0 0
  %313 = vmatprep.subr.bf16.mxu0 0
  %314 = vmatpush1.bf16.msra.mxu0 0
  %315 = vmatprep.subr.bf16.mxu0 0
  %316 = vmatpush1.bf16.msra.mxu0 0
  %317 = vmatprep.subr.bf16.mxu0 0
  %318 = vmatpush1.bf16.msra.mxu0 0
  %319 = vmatprep.subr.bf16.mxu0 0
  %320 = vmatpush1.bf16.msra.mxu0 0
  %321 = vmatprep.subr.bf16.mxu0 0
  %322 = vmatpush1.bf16.msra.mxu0 0
  %323 = vmatprep.subr.bf16.mxu0 0
  %324 = vmatpush1.bf16.msra.mxu0 0
  %325 = vmatprep.subr.bf16.mxu0 0
  %326 = vmatpush1.bf16.msra.mxu0 0
  %327 = vmatprep.subr.bf16.mxu0 0
  %328 = vmatpush1.bf16.msra.mxu0 0
  %329 = vmatprep.subr.bf16.mxu0 0
  %330 = vmatpush1.bf16.msra.mxu0 0
  %331 = vmatprep.mubr.bf16.mxu0 0
  %332 = vmatmul.mubr.bf16.gmra.mrb[0].mxu0 %v222
  %v333 = vpop.f32.mrb[0].mxu0
  %v334 = vadd.f32 %v191, %v333
  %v335 = vpop.f32.mrb[0].mxu0
  %v336 = vpop.f32.mrb[0].mxu0
  %v337 = vadd.f32 %v192, %v336
  %v338 = vpop.f32.mrb[0].mxu0
  %339 = vmatprep.mubr.bf16.mxu0 0
  %340 = vmatmul.mubr.bf16.gmra.mrb[0].mxu0 %v225
  %v341 = vpop.f32.mrb[0].mxu0
  %v342 = vadd.f32 %v193, %v341
  %v343 = vpop.f32.mrb[0].mxu0
  %v344 = vpop.f32.mrb[0].mxu0
  %v345 = vadd.f32 %v194, %v344
  %v346 = vpop.f32.mrb[0].mxu0
  %347 = vmatprep.mubr.bf16.mxu0 0
  %348 = vmatmul.mubr.bf16.gmra.mrb[0].mxu0 %v228
  %v349 = vpop.f32.mrb[0].mxu0
  %v350 = vadd.f32 %v195, %v349
  %v351 = vpop.f32.mrb[0].mxu0
  %v352 = vpop.f32.mrb[0].mxu0
  %v353 = vadd.f32 %v196, %v352
  %v354 = vpop.f32.mrb[0].mxu0
  %355 = vdwg.mxu0
  %v360 = vunpack.c.l.b16 %v177
  %v361 = vunpack.c.l.b16 %v178
  %v362 = vunpack.c.l.b16 %v179
  %v363 = vunpack.c.l.b16 %v180
  %v364 = vpack.c.b16 %v361, %v360
  %v365 = vpack.c.b16 %v363, %v362
  %368 = vmatprep.subr.bf16.mxu0 0
  %369 = vmatpush1.bf16.msra.mxu0 %v364
  %370 = vmatprep.subr.bf16.mxu0 0
  %371 = vmatpush1.bf16.msra.mxu0 %v365
  %372 = vmatprep.subr.bf16.mxu0 0
  %373 = vmatpush1.bf16.msra.mxu0 0
  %374 = vmatprep.subr.bf16.mxu0 0
  %375 = vmatpush1.bf16.msra.mxu0 0
  %376 = vmatprep.subr.bf16.mxu0 0
  %377 = vmatpush1.bf16.msra.mxu0 0
  %378 = vmatprep.subr.bf16.mxu0 0
  %379 = vmatpush1.bf16.msra.mxu0 0
  %380 = vmatprep.subr.bf16.mxu0 0
  %381 = vmatpush1.bf16.msra.mxu0 0
  %382 = vmatprep.subr.bf16.mxu0 0
  %383 = vmatpush1.bf16.msra.mxu0 0
  %384 = vmatprep.subr.bf16.mxu0 0
  %385 = vmatpush1.bf16.msra.mxu0 0
  %386 = vmatprep.subr.bf16.mxu0 0
  %387 = vmatpush1.bf16.msra.mxu0 0
  %388 = vmatprep.subr.bf16.mxu0 0
  %389 = vmatpush1.bf16.msra.mxu0 0
  %390 = vmatprep.subr.bf16.mxu0 0
  %391 = vmatpush1.bf16.msra.mxu0 0
  %392 = vmatprep.subr.bf16.mxu0 0
  %393 = vmatpush1.bf16.msra.mxu0 0
  %394 = vmatprep.subr.bf16.mxu0 0
  %395 = vmatpush1.bf16.msra.mxu0 0
  %396 = vmatprep.subr.bf16.mxu0 0
  %397 = vmatpush1.bf16.msra.mxu0 0
  %398 = vmatprep.subr.bf16.mxu0 0
  %399 = vmatpush1.bf16.msra.mxu0 0
  %400 = vmatprep.mubr.bf16.mxu0 0
  %401 = vmatmul.mubr.bf16.gmra.mrb[0].mxu0 %v222
  %v402 = vpop.f32.mrb[0].mxu0
  %v403 = vadd.f32 %v197, %v402
  %v404 = vpop.f32.mrb[0].mxu0
  %v405 = vpop.f32.mrb[0].mxu0
  %v406 = vadd.f32 %v198, %v405
  %v407 = vpop.f32.mrb[0].mxu0
  %408 = vmatprep.mubr.bf16.mxu0 0
  %409 = vmatmul.mubr.bf16.gmra.mrb[0].mxu0 %v225
  %v410 = vpop.f32.mrb[0].mxu0
  %v411 = vadd.f32 %v199, %v410
  %v412 = vpop.f32.mrb[0].mxu0
  %v413 = vpop.f32.mrb[0].mxu0
  %v414 = vadd.f32 %v200, %v413
  %v415 = vpop.f32.mrb[0].mxu0
  %416 = vmatprep.mubr.bf16.mxu0 0
  %417 = vmatmul.mubr.bf16.gmra.mrb[0].mxu0 %v228
  %v418 = vpop.f32.mrb[0].mxu0
  %v419 = vadd.f32 %v201, %v418
  %v420 = vpop.f32.mrb[0].mxu0
  %v421 = vpop.f32.mrb[0].mxu0
  %v422 = vadd.f32 %v202, %v421
  %v423 = vpop.f32.mrb[0].mxu0
  %424 = vdwg.mxu0
  %v429 = vunpack.c.l.b16 %v181
  %v430 = vunpack.c.l.b16 %v182
  %v431 = vunpack.c.l.b16 %v183
  %v432 = vunpack.c.l.b16 %v184
  %v433 = vpack.c.b16 %v430, %v429
  %v434 = vpack.c.b16 %v432, %v431
  %437 = vmatprep.subr.bf16.mxu0 0
  %438 = vmatpush1.bf16.msra.mxu0 %v433
  %439 = vmatprep.subr.bf16.mxu0 0
  %440 = vmatpush1.bf16.msra.mxu0 %v434
  %441 = vmatprep.subr.bf16.mxu0 0
  %442 = vmatpush1.bf16.msra.mxu0 0
  %443 = vmatprep.subr.bf16.mxu0 0
  %444 = vmatpush1.bf16.msra.mxu0 0
  %445 = vmatprep.subr.bf16.mxu0 0
  %446 = vmatpush1.bf16.msra.mxu0 0
  %447 = vmatprep.subr.bf16.mxu0 0
  %448 = vmatpush1.bf16.msra.mxu0 0
  %449 = vmatprep.subr.bf16.mxu0 0
  %450 = vmatpush1.bf16.msra.mxu0 0
  %451 = vmatprep.subr.bf16.mxu0 0
  %452 = vmatpush1.bf16.msra.mxu0 0
  %453 = vmatprep.subr.bf16.mxu0 0
  %454 = vmatpush1.bf16.msra.mxu0 0
  %455 = vmatprep.subr.bf16.mxu0 0
  %456 = vmatpush1.bf16.msra.mxu0 0
  %457 = vmatprep.subr.bf16.mxu0 0
  %458 = vmatpush1.bf16.msra.mxu0 0
  %459 = vmatprep.subr.bf16.mxu0 0
  %460 = vmatpush1.bf16.msra.mxu0 0
  %461 = vmatprep.subr.bf16.mxu0 0
  %462 = vmatpush1.bf16.msra.mxu0 0
  %463 = vmatprep.subr.bf16.mxu0 0
  %464 = vmatpush1.bf16.msra.mxu0 0
  %465 = vmatprep.subr.bf16.mxu0 0
  %466 = vmatpush1.bf16.msra.mxu0 0
  %467 = vmatprep.subr.bf16.mxu0 0
  %468 = vmatpush1.bf16.msra.mxu0 0
  %469 = vmatprep.mubr.bf16.mxu0 0
  %470 = vmatmul.mubr.bf16.gmra.mrb[0].mxu0 %v222
  %v471 = vpop.f32.mrb[0].mxu0
  %v472 = vadd.f32 %v203, %v471
  %v473 = vpop.f32.mrb[0].mxu0
  %v474 = vpop.f32.mrb[0].mxu0
  %v475 = vadd.f32 %v204, %v474
  %v476 = vpop.f32.mrb[0].mxu0
  %477 = vmatprep.mubr.bf16.mxu0 0
  %478 = vmatmul.mubr.bf16.gmra.mrb[0].mxu0 %v225
  %v479 = vpop.f32.mrb[0].mxu0
  %v480 = vadd.f32 %v205, %v479
  %v481 = vpop.f32.mrb[0].mxu0
  %v482 = vpop.f32.mrb[0].mxu0
  %v483 = vadd.f32 %v206, %v482
  %v484 = vpop.f32.mrb[0].mxu0
  %485 = vmatprep.mubr.bf16.mxu0 0
  %486 = vmatmul.mubr.bf16.gmra.mrb[0].mxu0 %v228
  %v487 = vpop.f32.mrb[0].mxu0
  %v488 = vadd.f32 %v207, %v487
  %v489 = vpop.f32.mrb[0].mxu0
  %v490 = vpop.f32.mrb[0].mxu0
  %v491 = vadd.f32 %v208, %v490
  %v492 = vpop.f32.mrb[0].mxu0
  %493 = vdwg.mxu0
  %v494 = vld [vmem:[%s1] sm:$0xff]
  %v495 = vld [vmem:[%s1 + $0x8] sm:$0xff]
  %v496 = vld [vmem:[%s1 + $0x10] sm:$0xff]
  %v497 = vld [vmem:[%s1 + $0x18] sm:$0xff]
  %v498 = vld [vmem:[%s1 + $0x20] sm:$0xff]
  %v499 = vld [vmem:[%s1 + $0x28] sm:$0xff]
  %v500 = vpack.c.bf16 %v268, %v265
  %v501 = vpack.c.bf16 %v276, %v273
  %v502 = vpack.c.bf16 %v284, %v281
  %v503 = vpack.c.bf16 %v337, %v334
  %v504 = vpack.c.bf16 %v345, %v342
  %v505 = vpack.c.bf16 %v353, %v350
  %v506 = vpack.c.bf16 %v406, %v403
  %v507 = vpack.c.bf16 %v414, %v411
  %v508 = vpack.c.bf16 %v422, %v419
  %v509 = vpack.c.bf16 %v475, %v472
  %v510 = vpack.c.bf16 %v483, %v480
  %v511 = vpack.c.bf16 %v491, %v488
  %515 = vrot.lane.b32.xlu0 %v500, 120
  %v516 = vpop.permute.xlu0 %515
  %517 = vrot.lane.b32.xlu0 %v501, 120
  %v518 = vpop.permute.xlu0 %517
  %519 = vrot.lane.b32.xlu0 %v502, 120
  %v520 = vpop.permute.xlu0 %519
  %vm521 = vcmask 64512
  %v523 = vsel %vm521, %v500, 0
  %v526 = vsel %vm521, %v501, 0
  %v529 = vsel %vm521, %v502, 0
  %v532 = vsel %vm521, %v516, 0
  %v535 = vsel %vm521, %v518, 0
  %v538 = vsel %vm521, %v520, 0
  %540 = vmatprep.subr.bf16.mxu0 0
  %541 = vmatpush1.bf16.xpose.msra.mxu0 %v532
  %542 = vmatprep.subr.bf16.mxu0 0
  %543 = vmatpush1.bf16.xpose.msra.mxu0 %v535
  %544 = vmatprep.subr.bf16.mxu0 0
  %545 = vmatpush1.bf16.xpose.msra.mxu0 %v538
  %546 = vmatprep.subr.bf16.mxu0 0
  %547 = vmatpush1.bf16.xpose.msra.mxu0 0
  %548 = vmatprep.subr.bf16.mxu0 0
  %549 = vmatpush1.bf16.xpose.msra.mxu0 0
  %550 = vmatprep.subr.bf16.mxu0 0
  %551 = vmatpush1.bf16.xpose.msra.mxu0 0
  %552 = vmatprep.subr.bf16.mxu0 0
  %553 = vmatpush1.bf16.xpose.msra.mxu0 0
  %554 = vmatprep.subr.bf16.mxu0 0
  %555 = vmatpush1.bf16.xpose.msra.mxu0 0
  %556 = vmatprep.subr.bf16.mxu0 0
  %557 = vmatpush1.bf16.xpose.msra.mxu0 0
  %558 = vmatprep.subr.bf16.mxu0 0
  %559 = vmatpush1.bf16.xpose.msra.mxu0 0
  %560 = vmatprep.subr.bf16.mxu0 0
  %561 = vmatpush1.bf16.xpose.msra.mxu0 0
  %562 = vmatprep.subr.bf16.mxu0 0
  %563 = vmatpush1.bf16.xpose.msra.mxu0 0
  %564 = vmatprep.subr.bf16.mxu0 0
  %565 = vmatpush1.bf16.xpose.msra.mxu0 0
  %566 = vmatprep.subr.bf16.mxu0 0
  %567 = vmatpush1.bf16.xpose.msra.mxu0 0
  %568 = vmatprep.subr.bf16.mxu0 0
  %569 = vmatpush1.bf16.xpose.msra.mxu0 0
  %570 = vmatprep.subr.bf16.mxu0 0
  %571 = vmatpush1.bf16.xpose.msra.mxu0 0
  %572 = vmatprep.mubr.bf16.mxu0 0
  %573 = vmatmul.mubr.bf16.gmra.mrb[0].mxu0 %v523
  %v574 = vpop.f32.mrb[0].mxu0
  %v575 = vadd.f32 %v494, %v574
  %v576 = vpop.f32.mrb[0].mxu0
  %v577 = vpop.f32.mrb[0].mxu0
  %v578 = vadd.f32 %v495, %v577
  %v579 = vpop.f32.mrb[0].mxu0
  %580 = vmatprep.mubr.bf16.mxu0 0
  %581 = vmatmul.mubr.bf16.gmra.mrb[0].mxu0 %v526
  %v582 = vpop.f32.mrb[0].mxu0
  %v583 = vadd.f32 %v496, %v582
  %v584 = vpop.f32.mrb[0].mxu0
  %v585 = vpop.f32.mrb[0].mxu0
  %v586 = vadd.f32 %v497, %v585
  %v587 = vpop.f32.mrb[0].mxu0
  %588 = vmatprep.mubr.bf16.mxu0 0
  %589 = vmatmul.mubr.bf16.gmra.mrb[0].mxu0 %v529
  %v590 = vpop.f32.mrb[0].mxu0
  %v591 = vadd.f32 %v498, %v590
  %v592 = vpop.f32.mrb[0].mxu0
  %v593 = vpop.f32.mrb[0].mxu0
  %v594 = vadd.f32 %v499, %v593
  %v595 = vpop.f32.mrb[0].mxu0
  %596 = vdwg.mxu0
  %600 = vrot.lane.b32.xlu0 %v503, 120
  %v601 = vpop.permute.xlu0 %600
  %602 = vrot.lane.b32.xlu0 %v504, 120
  %v603 = vpop.permute.xlu0 %602
  %604 = vrot.lane.b32.xlu0 %v505, 120
  %v605 = vpop.permute.xlu0 %604
  %v607 = vsel %vm521, %v503, 0
  %v610 = vsel %vm521, %v504, 0
  %v613 = vsel %vm521, %v505, 0
  %v616 = vsel %vm521, %v601, 0
  %v619 = vsel %vm521, %v603, 0
  %v622 = vsel %vm521, %v605, 0
  %624 = vmatprep.subr.bf16.mxu0 0
  %625 = vmatpush1.bf16.xpose.msra.mxu0 %v616
  %626 = vmatprep.subr.bf16.mxu0 0
  %627 = vmatpush1.bf16.xpose.msra.mxu0 %v619
  %628 = vmatprep.subr.bf16.mxu0 0
  %629 = vmatpush1.bf16.xpose.msra.mxu0 %v622
  %630 = vmatprep.subr.bf16.mxu0 0
  %631 = vmatpush1.bf16.xpose.msra.mxu0 0
  %632 = vmatprep.subr.bf16.mxu0 0
  %633 = vmatpush1.bf16.xpose.msra.mxu0 0
  %634 = vmatprep.subr.bf16.mxu0 0
  %635 = vmatpush1.bf16.xpose.msra.mxu0 0
  %636 = vmatprep.subr.bf16.mxu0 0
  %637 = vmatpush1.bf16.xpose.msra.mxu0 0
  %638 = vmatprep.subr.bf16.mxu0 0
  %639 = vmatpush1.bf16.xpose.msra.mxu0 0
  %640 = vmatprep.subr.bf16.mxu0 0
  %641 = vmatpush1.bf16.xpose.msra.mxu0 0
  %642 = vmatprep.subr.bf16.mxu0 0
  %643 = vmatpush1.bf16.xpose.msra.mxu0 0
  %644 = vmatprep.subr.bf16.mxu0 0
  %645 = vmatpush1.bf16.xpose.msra.mxu0 0
  %646 = vmatprep.subr.bf16.mxu0 0
  %647 = vmatpush1.bf16.xpose.msra.mxu0 0
  %648 = vmatprep.subr.bf16.mxu0 0
  %649 = vmatpush1.bf16.xpose.msra.mxu0 0
  %650 = vmatprep.subr.bf16.mxu0 0
  %651 = vmatpush1.bf16.xpose.msra.mxu0 0
  %652 = vmatprep.subr.bf16.mxu0 0
  %653 = vmatpush1.bf16.xpose.msra.mxu0 0
  %654 = vmatprep.subr.bf16.mxu0 0
  %655 = vmatpush1.bf16.xpose.msra.mxu0 0
  %656 = vmatprep.mubr.bf16.mxu0 0
  %657 = vmatmul.mubr.bf16.gmra.mrb[0].mxu0 %v607
  %v658 = vpop.f32.mrb[0].mxu0
  %v659 = vadd.f32 %v494, %v658
  %v660 = vpop.f32.mrb[0].mxu0
  %v661 = vpop.f32.mrb[0].mxu0
  %v662 = vadd.f32 %v495, %v661
  %v663 = vpop.f32.mrb[0].mxu0
  %664 = vmatprep.mubr.bf16.mxu0 0
  %665 = vmatmul.mubr.bf16.gmra.mrb[0].mxu0 %v610
  %v666 = vpop.f32.mrb[0].mxu0
  %v667 = vadd.f32 %v496, %v666
  %v668 = vpop.f32.mrb[0].mxu0
  %v669 = vpop.f32.mrb[0].mxu0
  %v670 = vadd.f32 %v497, %v669
  %v671 = vpop.f32.mrb[0].mxu0
  %672 = vmatprep.mubr.bf16.mxu0 0
  %673 = vmatmul.mubr.bf16.gmra.mrb[0].mxu0 %v613
  %v674 = vpop.f32.mrb[0].mxu0
  %v675 = vadd.f32 %v498, %v674
  %v676 = vpop.f32.mrb[0].mxu0
  %v677 = vpop.f32.mrb[0].mxu0
  %v678 = vadd.f32 %v499, %v677
  %v679 = vpop.f32.mrb[0].mxu0
  %680 = vdwg.mxu0
  %684 = vrot.lane.b32.xlu0 %v506, 120
  %v685 = vpop.permute.xlu0 %684
  %686 = vrot.lane.b32.xlu0 %v507, 120
  %v687 = vpop.permute.xlu0 %686
  %688 = vrot.lane.b32.xlu0 %v508, 120
  %v689 = vpop.permute.xlu0 %688
  %v691 = vsel %vm521, %v506, 0
  %v694 = vsel %vm521, %v507, 0
  %v697 = vsel %vm521, %v508, 0
  %v700 = vsel %vm521, %v685, 0
  %v703 = vsel %vm521, %v687, 0
  %v706 = vsel %vm521, %v689, 0
  %708 = vmatprep.subr.bf16.mxu0 0
  %709 = vmatpush1.bf16.xpose.msra.mxu0 %v700
  %710 = vmatprep.subr.bf16.mxu0 0
  %711 = vmatpush1.bf16.xpose.msra.mxu0 %v703
  %712 = vmatprep.subr.bf16.mxu0 0
  %713 = vmatpush1.bf16.xpose.msra.mxu0 %v706
  %714 = vmatprep.subr.bf16.mxu0 0
  %715 = vmatpush1.bf16.xpose.msra.mxu0 0
  %716 = vmatprep.subr.bf16.mxu0 0
  %717 = vmatpush1.bf16.xpose.msra.mxu0 0
  %718 = vmatprep.subr.bf16.mxu0 0
  %719 = vmatpush1.bf16.xpose.msra.mxu0 0
  %720 = vmatprep.subr.bf16.mxu0 0
  %721 = vmatpush1.bf16.xpose.msra.mxu0 0
  %722 = vmatprep.subr.bf16.mxu0 0
  %723 = vmatpush1.bf16.xpose.msra.mxu0 0
  %724 = vmatprep.subr.bf16.mxu0 0
  %725 = vmatpush1.bf16.xpose.msra.mxu0 0
  %726 = vmatprep.subr.bf16.mxu0 0
  %727 = vmatpush1.bf16.xpose.msra.mxu0 0
  %728 = vmatprep.subr.bf16.mxu0 0
  %729 = vmatpush1.bf16.xpose.msra.mxu0 0
  %730 = vmatprep.subr.bf16.mxu0 0
  %731 = vmatpush1.bf16.xpose.msra.mxu0 0
  %732 = vmatprep.subr.bf16.mxu0 0
  %733 = vmatpush1.bf16.xpose.msra.mxu0 0
  %734 = vmatprep.subr.bf16.mxu0 0
  %735 = vmatpush1.bf16.xpose.msra.mxu0 0
  %736 = vmatprep.subr.bf16.mxu0 0
  %737 = vmatpush1.bf16.xpose.msra.mxu0 0
  %738 = vmatprep.subr.bf16.mxu0 0
  %739 = vmatpush1.bf16.xpose.msra.mxu0 0
  %740 = vmatprep.mubr.bf16.mxu0 0
  %741 = vmatmul.mubr.bf16.gmra.mrb[0].mxu0 %v691
  %v742 = vpop.f32.mrb[0].mxu0
  %v743 = vadd.f32 %v494, %v742
  %v744 = vpop.f32.mrb[0].mxu0
  %v745 = vpop.f32.mrb[0].mxu0
  %v746 = vadd.f32 %v495, %v745
  %v747 = vpop.f32.mrb[0].mxu0
  %748 = vmatprep.mubr.bf16.mxu0 0
  %749 = vmatmul.mubr.bf16.gmra.mrb[0].mxu0 %v694
  %v750 = vpop.f32.mrb[0].mxu0
  %v751 = vadd.f32 %v496, %v750
  %v752 = vpop.f32.mrb[0].mxu0
  %v753 = vpop.f32.mrb[0].mxu0
  %v754 = vadd.f32 %v497, %v753
  %v755 = vpop.f32.mrb[0].mxu0
  %756 = vmatprep.mubr.bf16.mxu0 0
  %757 = vmatmul.mubr.bf16.gmra.mrb[0].mxu0 %v697
  %v758 = vpop.f32.mrb[0].mxu0
  %v759 = vadd.f32 %v498, %v758
  %v760 = vpop.f32.mrb[0].mxu0
  %v761 = vpop.f32.mrb[0].mxu0
  %v762 = vadd.f32 %v499, %v761
  %v763 = vpop.f32.mrb[0].mxu0
  %764 = vdwg.mxu0
  %768 = vrot.lane.b32.xlu0 %v509, 120
  %v769 = vpop.permute.xlu0 %768
  %770 = vrot.lane.b32.xlu0 %v510, 120
  %v771 = vpop.permute.xlu0 %770
  %772 = vrot.lane.b32.xlu0 %v511, 120
  %v773 = vpop.permute.xlu0 %772
  %v775 = vsel %vm521, %v509, 0
  %v778 = vsel %vm521, %v510, 0
  %v781 = vsel %vm521, %v511, 0
  %v784 = vsel %vm521, %v769, 0
  %v787 = vsel %vm521, %v771, 0
  %v790 = vsel %vm521, %v773, 0
  %792 = vmatprep.subr.bf16.mxu0 0
  %793 = vmatpush1.bf16.xpose.msra.mxu0 %v784
  %794 = vmatprep.subr.bf16.mxu0 0
  %795 = vmatpush1.bf16.xpose.msra.mxu0 %v787
  %796 = vmatprep.subr.bf16.mxu0 0
  %797 = vmatpush1.bf16.xpose.msra.mxu0 %v790
  %798 = vmatprep.subr.bf16.mxu0 0
  %799 = vmatpush1.bf16.xpose.msra.mxu0 0
  %800 = vmatprep.subr.bf16.mxu0 0
  %801 = vmatpush1.bf16.xpose.msra.mxu0 0
  %802 = vmatprep.subr.bf16.mxu0 0
  %803 = vmatpush1.bf16.xpose.msra.mxu0 0
  %804 = vmatprep.subr.bf16.mxu0 0
  %805 = vmatpush1.bf16.xpose.msra.mxu0 0
  %806 = vmatprep.subr.bf16.mxu0 0
  %807 = vmatpush1.bf16.xpose.msra.mxu0 0
  %808 = vmatprep.subr.bf16.mxu0 0
  %809 = vmatpush1.bf16.xpose.msra.mxu0 0
  %810 = vmatprep.subr.bf16.mxu0 0
  %811 = vmatpush1.bf16.xpose.msra.mxu0 0
  %812 = vmatprep.subr.bf16.mxu0 0
  %813 = vmatpush1.bf16.xpose.msra.mxu0 0
  %814 = vmatprep.subr.bf16.mxu0 0
  %815 = vmatpush1.bf16.xpose.msra.mxu0 0
  %816 = vmatprep.subr.bf16.mxu0 0
  %817 = vmatpush1.bf16.xpose.msra.mxu0 0
  %818 = vmatprep.subr.bf16.mxu0 0
  %819 = vmatpush1.bf16.xpose.msra.mxu0 0
  %820 = vmatprep.subr.bf16.mxu0 0
  %821 = vmatpush1.bf16.xpose.msra.mxu0 0
  %822 = vmatprep.subr.bf16.mxu0 0
  %823 = vmatpush1.bf16.xpose.msra.mxu0 0
  %824 = vmatprep.mubr.bf16.mxu0 0
  %825 = vmatmul.mubr.bf16.gmra.mrb[0].mxu0 %v775
  %v826 = vpop.f32.mrb[0].mxu0
  %v827 = vadd.f32 %v494, %v826
  %v828 = vpop.f32.mrb[0].mxu0
  %v829 = vpop.f32.mrb[0].mxu0
  %v830 = vadd.f32 %v495, %v829
  %v831 = vpop.f32.mrb[0].mxu0
  %832 = vmatprep.mubr.bf16.mxu0 0
  %833 = vmatmul.mubr.bf16.gmra.mrb[0].mxu0 %v778
  %v834 = vpop.f32.mrb[0].mxu0
  %v835 = vadd.f32 %v496, %v834
  %v836 = vpop.f32.mrb[0].mxu0
  %v837 = vpop.f32.mrb[0].mxu0
  %v838 = vadd.f32 %v497, %v837
  %v839 = vpop.f32.mrb[0].mxu0
  %840 = vmatprep.mubr.bf16.mxu0 0
  %841 = vmatmul.mubr.bf16.gmra.mrb[0].mxu0 %v781
  %v842 = vpop.f32.mrb[0].mxu0
  %v843 = vadd.f32 %v498, %v842
  %v844 = vpop.f32.mrb[0].mxu0
  %v845 = vpop.f32.mrb[0].mxu0
  %v846 = vadd.f32 %v499, %v845
  %v847 = vpop.f32.mrb[0].mxu0
  %848 = vdwg.mxu0
  %vm849 = vcmask 392192
  %v850 = vsel %vm849, %v575, -inf
  %851 = vmax.xlane.f32.xlu0 %v850
  %v852 = vpop.xlane.xlu0 %851
  %v853 = vsel %vm849, %v578, -inf
  %854 = vmax.xlane.f32.xlu0 %v853
  %v855 = vpop.xlane.xlu0 %854
  %v856 = vsel %vm849, %v583, -inf
  %857 = vmax.xlane.f32.xlu0 %v856
  %v858 = vpop.xlane.xlu0 %857
  %v859 = vsel %vm849, %v586, -inf
  %860 = vmax.xlane.f32.xlu0 %v859
  %v861 = vpop.xlane.xlu0 %860
  %v862 = vsel %vm849, %v591, -inf
  %863 = vmax.xlane.f32.xlu0 %v862
  %v864 = vpop.xlane.xlu0 %863
  %v865 = vsel %vm849, %v594, -inf
  %866 = vmax.xlane.f32.xlu0 %v865
  %v867 = vpop.xlane.xlu0 %866
  %v868 = vsel %vm849, %v659, -inf
  %869 = vmax.xlane.f32.xlu0 %v868
  %v870 = vpop.xlane.xlu0 %869
  %v871 = vsel %vm849, %v662, -inf
  %872 = vmax.xlane.f32.xlu0 %v871
  %v873 = vpop.xlane.xlu0 %872
  %v874 = vsel %vm849, %v667, -inf
  %875 = vmax.xlane.f32.xlu0 %v874
  %v876 = vpop.xlane.xlu0 %875
  %v877 = vsel %vm849, %v670, -inf
  %878 = vmax.xlane.f32.xlu0 %v877
  %v879 = vpop.xlane.xlu0 %878
  %v880 = vsel %vm849, %v675, -inf
  %881 = vmax.xlane.f32.xlu0 %v880
  %v882 = vpop.xlane.xlu0 %881
  %v883 = vsel %vm849, %v678, -inf
  %884 = vmax.xlane.f32.xlu0 %v883
  %v885 = vpop.xlane.xlu0 %884
  %v886 = vsel %vm849, %v743, -inf
  %887 = vmax.xlane.f32.xlu0 %v886
  %v888 = vpop.xlane.xlu0 %887
  %v889 = vsel %vm849, %v746, -inf
  %890 = vmax.xlane.f32.xlu0 %v889
  %v891 = vpop.xlane.xlu0 %890
  %v892 = vsel %vm849, %v751, -inf
  %893 = vmax.xlane.f32.xlu0 %v892
  %v894 = vpop.xlane.xlu0 %893
  %v895 = vsel %vm849, %v754, -inf
  %896 = vmax.xlane.f32.xlu0 %v895
  %v897 = vpop.xlane.xlu0 %896
  %v898 = vsel %vm849, %v759, -inf
  %899 = vmax.xlane.f32.xlu0 %v898
  %v900 = vpop.xlane.xlu0 %899
  %v901 = vsel %vm849, %v762, -inf
  %902 = vmax.xlane.f32.xlu0 %v901
  %v903 = vpop.xlane.xlu0 %902
  %v904 = vsel %vm849, %v827, -inf
  %905 = vmax.xlane.f32.xlu0 %v904
  %v906 = vpop.xlane.xlu0 %905
  %v907 = vsel %vm849, %v830, -inf
  %908 = vmax.xlane.f32.xlu0 %v907
  %v909 = vpop.xlane.xlu0 %908
  %v910 = vsel %vm849, %v835, -inf
  %911 = vmax.xlane.f32.xlu0 %v910
  %v912 = vpop.xlane.xlu0 %911
  %v913 = vsel %vm849, %v838, -inf
  %914 = vmax.xlane.f32.xlu0 %v913
  %v915 = vpop.xlane.xlu0 %914
  %v916 = vsel %vm849, %v843, -inf
  %917 = vmax.xlane.f32.xlu0 %v916
  %v918 = vpop.xlane.xlu0 %917
  %v919 = vsel %vm849, %v846, -inf
  %920 = vmax.xlane.f32.xlu0 %v919
  %v921 = vpop.xlane.xlu0 %920
  %v922 = vsub.f32 %v575, %v852
  %v923 = vsub.f32 %v578, %v855
  %v924 = vsub.f32 %v583, %v858
  %v925 = vsub.f32 %v586, %v861
  %v926 = vsub.f32 %v591, %v864
  %v927 = vsub.f32 %v594, %v867
  %v928 = vsub.f32 %v659, %v870
  %v929 = vsub.f32 %v662, %v873
  %v930 = vsub.f32 %v667, %v876
  %v931 = vsub.f32 %v670, %v879
  %v932 = vsub.f32 %v675, %v882
  %v933 = vsub.f32 %v678, %v885
  %v934 = vsub.f32 %v743, %v888
  %v935 = vsub.f32 %v746, %v891
  %v936 = vsub.f32 %v751, %v894
  %v937 = vsub.f32 %v754, %v897
  %v938 = vsub.f32 %v759, %v900
  %v939 = vsub.f32 %v762, %v903
  %v940 = vsub.f32 %v827, %v906
  %v941 = vsub.f32 %v830, %v909
  %v942 = vsub.f32 %v835, %v912
  %v943 = vsub.f32 %v838, %v915
  %v944 = vsub.f32 %v843, %v918
  %v945 = vsub.f32 %v846, %v921
  %v946 = vmul.f32 %v922, 1.442695
  %v947 = vpow.pop %v946
  %v948 = vmul.f32 %v923, 1.442695
  %v949 = vpow.pop %v948
  %v950 = vmul.f32 %v924, 1.442695
  %v951 = vpow.pop %v950
  %v952 = vmul.f32 %v925, 1.442695
  %v953 = vpow.pop %v952
  %v954 = vmul.f32 %v926, 1.442695
  %v955 = vpow.pop %v954
  %v956 = vmul.f32 %v927, 1.442695
  %v957 = vpow.pop %v956
  %v958 = vmul.f32 %v928, 1.442695
  %v959 = vpow.pop %v958
  %v960 = vmul.f32 %v929, 1.442695
  %v961 = vpow.pop %v960
  %v962 = vmul.f32 %v930, 1.442695
  %v963 = vpow.pop %v962
  %v964 = vmul.f32 %v931, 1.442695
  %v965 = vpow.pop %v964
  %v966 = vmul.f32 %v932, 1.442695
  %v967 = vpow.pop %v966
  %v968 = vmul.f32 %v933, 1.442695
  %v969 = vpow.pop %v968
  %v970 = vmul.f32 %v934, 1.442695
  %v971 = vpow.pop %v970
  %v972 = vmul.f32 %v935, 1.442695
  %v973 = vpow.pop %v972
  %v974 = vmul.f32 %v936, 1.442695
  %v975 = vpow.pop %v974
  %v976 = vmul.f32 %v937, 1.442695
  %v977 = vpow.pop %v976
  %v978 = vmul.f32 %v938, 1.442695
  %v979 = vpow.pop %v978
  %v980 = vmul.f32 %v939, 1.442695
  %v981 = vpow.pop %v980
  %v982 = vmul.f32 %v940, 1.442695
  %v983 = vpow.pop %v982
  %v984 = vmul.f32 %v941, 1.442695
  %v985 = vpow.pop %v984
  %v986 = vmul.f32 %v942, 1.442695
  %v987 = vpow.pop %v986
  %v988 = vmul.f32 %v943, 1.442695
  %v989 = vpow.pop %v988
  %v990 = vmul.f32 %v944, 1.442695
  %v991 = vpow.pop %v990
  %v992 = vmul.f32 %v945, 1.442695
  %v993 = vpow.pop %v992
  %v994 = vsel %vm849, %v947, 0.0
  %995 = vadd.xlane.f32.xlu0 %v994
  %v996 = vpop.xlane.xlu0 %995
  %v997 = vsel %vm849, %v949, 0.0
  %998 = vadd.xlane.f32.xlu0 %v997
  %v999 = vpop.xlane.xlu0 %998
  %v1000 = vsel %vm849, %v951, 0.0
  %1001 = vadd.xlane.f32.xlu0 %v1000
  %v1002 = vpop.xlane.xlu0 %1001
  %v1003 = vsel %vm849, %v953, 0.0
  %1004 = vadd.xlane.f32.xlu0 %v1003
  %v1005 = vpop.xlane.xlu0 %1004
  %v1006 = vsel %vm849, %v955, 0.0
  %1007 = vadd.xlane.f32.xlu0 %v1006
  %v1008 = vpop.xlane.xlu0 %1007
  %v1009 = vsel %vm849, %v957, 0.0
  %1010 = vadd.xlane.f32.xlu0 %v1009
  %v1011 = vpop.xlane.xlu0 %1010
  %v1012 = vsel %vm849, %v959, 0.0
  %1013 = vadd.xlane.f32.xlu0 %v1012
  %v1014 = vpop.xlane.xlu0 %1013
  %v1015 = vsel %vm849, %v961, 0.0
  %1016 = vadd.xlane.f32.xlu0 %v1015
  %v1017 = vpop.xlane.xlu0 %1016
  %v1018 = vsel %vm849, %v963, 0.0
  %1019 = vadd.xlane.f32.xlu0 %v1018
  %v1020 = vpop.xlane.xlu0 %1019
  %v1021 = vsel %vm849, %v965, 0.0
  %1022 = vadd.xlane.f32.xlu0 %v1021
  %v1023 = vpop.xlane.xlu0 %1022
  %v1024 = vsel %vm849, %v967, 0.0
  %1025 = vadd.xlane.f32.xlu0 %v1024
  %v1026 = vpop.xlane.xlu0 %1025
  %v1027 = vsel %vm849, %v969, 0.0
  %1028 = vadd.xlane.f32.xlu0 %v1027
  %v1029 = vpop.xlane.xlu0 %1028
  %v1030 = vsel %vm849, %v971, 0.0
  %1031 = vadd.xlane.f32.xlu0 %v1030
  %v1032 = vpop.xlane.xlu0 %1031
  %v1033 = vsel %vm849, %v973, 0.0
  %1034 = vadd.xlane.f32.xlu0 %v1033
  %v1035 = vpop.xlane.xlu0 %1034
  %v1036 = vsel %vm849, %v975, 0.0
  %1037 = vadd.xlane.f32.xlu0 %v1036
  %v1038 = vpop.xlane.xlu0 %1037
  %v1039 = vsel %vm849, %v977, 0.0
  %1040 = vadd.xlane.f32.xlu0 %v1039
  %v1041 = vpop.xlane.xlu0 %1040
  %v1042 = vsel %vm849, %v979, 0.0
  %1043 = vadd.xlane.f32.xlu0 %v1042
  %v1044 = vpop.xlane.xlu0 %1043
  %v1045 = vsel %vm849, %v981, 0.0
  %1046 = vadd.xlane.f32.xlu0 %v1045
  %v1047 = vpop.xlane.xlu0 %1046
  %v1048 = vsel %vm849, %v983, 0.0
  %1049 = vadd.xlane.f32.xlu0 %v1048
  %v1050 = vpop.xlane.xlu0 %1049
  %v1051 = vsel %vm849, %v985, 0.0
  %1052 = vadd.xlane.f32.xlu0 %v1051
  %v1053 = vpop.xlane.xlu0 %1052
  %v1054 = vsel %vm849, %v987, 0.0
  %1055 = vadd.xlane.f32.xlu0 %v1054
  %v1056 = vpop.xlane.xlu0 %1055
  %v1057 = vsel %vm849, %v989, 0.0
  %1058 = vadd.xlane.f32.xlu0 %v1057
  %v1059 = vpop.xlane.xlu0 %1058
  %v1060 = vsel %vm849, %v991, 0.0
  %1061 = vadd.xlane.f32.xlu0 %v1060
  %v1062 = vpop.xlane.xlu0 %1061
  %v1063 = vsel %vm849, %v993, 0.0
  %1064 = vadd.xlane.f32.xlu0 %v1063
  %v1065 = vpop.xlane.xlu0 %1064
  %v1066 = vrcp.pop %v996
  %v1067 = vmul.f32 %v947, %v1066
  %v1068 = vrcp.pop %v999
  %v1069 = vmul.f32 %v949, %v1068
  %v1070 = vrcp.pop %v1002
  %v1071 = vmul.f32 %v951, %v1070
  %v1072 = vrcp.pop %v1005
  %v1073 = vmul.f32 %v953, %v1072
  %v1074 = vrcp.pop %v1008
  %v1075 = vmul.f32 %v955, %v1074
  %v1076 = vrcp.pop %v1011
  %v1077 = vmul.f32 %v957, %v1076
  %v1078 = vrcp.pop %v1014
  %v1079 = vmul.f32 %v959, %v1078
  %v1080 = vrcp.pop %v1017
  %v1081 = vmul.f32 %v961, %v1080
  %v1082 = vrcp.pop %v1020
  %v1083 = vmul.f32 %v963, %v1082
  %v1084 = vrcp.pop %v1023
  %v1085 = vmul.f32 %v965, %v1084
  %v1086 = vrcp.pop %v1026
  %v1087 = vmul.f32 %v967, %v1086
  %v1088 = vrcp.pop %v1029
  %v1089 = vmul.f32 %v969, %v1088
  %v1090 = vrcp.pop %v1032
  %v1091 = vmul.f32 %v971, %v1090
  %v1092 = vrcp.pop %v1035
  %v1093 = vmul.f32 %v973, %v1092
  %v1094 = vrcp.pop %v1038
  %v1095 = vmul.f32 %v975, %v1094
  %v1096 = vrcp.pop %v1041
  %v1097 = vmul.f32 %v977, %v1096
  %v1098 = vrcp.pop %v1044
  %v1099 = vmul.f32 %v979, %v1098
  %v1100 = vrcp.pop %v1047
  %v1101 = vmul.f32 %v981, %v1100
  %v1102 = vrcp.pop %v1050
  %v1103 = vmul.f32 %v983, %v1102
  %v1104 = vrcp.pop %v1053
  %v1105 = vmul.f32 %v985, %v1104
  %v1106 = vrcp.pop %v1056
  %v1107 = vmul.f32 %v987, %v1106
  %v1108 = vrcp.pop %v1059
  %v1109 = vmul.f32 %v989, %v1108
  %v1110 = vrcp.pop %v1062
  %v1111 = vmul.f32 %v991, %v1110
  %v1112 = vrcp.pop %v1065
  %v1113 = vmul.f32 %v993, %v1112
  %v1114 = vpack.c.bf16 %v1069, %v1067
  %v1115 = vpack.c.bf16 %v1073, %v1071
  %v1116 = vpack.c.bf16 %v1077, %v1075
  %v1117 = vpack.c.bf16 %v1081, %v1079
  %v1118 = vpack.c.bf16 %v1085, %v1083
  %v1119 = vpack.c.bf16 %v1089, %v1087
  %v1120 = vpack.c.bf16 %v1093, %v1091
  %v1121 = vpack.c.bf16 %v1097, %v1095
  %v1122 = vpack.c.bf16 %v1101, %v1099
  %v1123 = vpack.c.bf16 %v1105, %v1103
  %v1124 = vpack.c.bf16 %v1109, %v1107
  %v1125 = vpack.c.bf16 %v1113, %v1111
  %1126 = vrot.lane.b32.xlu0 %v500, 112
  %v1127 = vpop.permute.xlu0 %1126
  %1128 = vrot.lane.b32.xlu0 %v501, 112
  %v1129 = vpop.permute.xlu0 %1128
  %1130 = vrot.lane.b32.xlu0 %v502, 112
  %v1131 = vpop.permute.xlu0 %1130
  %v1136 = vsel %vm849, %v1114, 0
  %v1139 = vsel %vm849, %v1115, 0
  %v1142 = vsel %vm849, %v1116, 0
  %1144 = vmatprep.subr.bf16.mxu0 0
  %1145 = vmatpush1.bf16.msra.mxu0 %v1127
  %1146 = vmatprep.subr.bf16.mxu0 0
  %1147 = vmatpush1.bf16.msra.mxu0 %v1129
  %1148 = vmatprep.subr.bf16.mxu0 0
  %1149 = vmatpush1.bf16.msra.mxu0 %v1131
  %1150 = vmatprep.subr.bf16.mxu0 0
  %1151 = vmatpush1.bf16.msra.mxu0 0
  %1152 = vmatprep.subr.bf16.mxu0 0
  %1153 = vmatpush1.bf16.msra.mxu0 0
  %1154 = vmatprep.subr.bf16.mxu0 0
  %1155 = vmatpush1.bf16.msra.mxu0 0
  %1156 = vmatprep.subr.bf16.mxu0 0
  %1157 = vmatpush1.bf16.msra.mxu0 0
  %1158 = vmatprep.subr.bf16.mxu0 0
  %1159 = vmatpush1.bf16.msra.mxu0 0
  %1160 = vmatprep.subr.bf16.mxu0 0
  %1161 = vmatpush1.bf16.msra.mxu0 0
  %1162 = vmatprep.subr.bf16.mxu0 0
  %1163 = vmatpush1.bf16.msra.mxu0 0
  %1164 = vmatprep.subr.bf16.mxu0 0
  %1165 = vmatpush1.bf16.msra.mxu0 0
  %1166 = vmatprep.subr.bf16.mxu0 0
  %1167 = vmatpush1.bf16.msra.mxu0 0
  %1168 = vmatprep.subr.bf16.mxu0 0
  %1169 = vmatpush1.bf16.msra.mxu0 0
  %1170 = vmatprep.subr.bf16.mxu0 0
  %1171 = vmatpush1.bf16.msra.mxu0 0
  %1172 = vmatprep.subr.bf16.mxu0 0
  %1173 = vmatpush1.bf16.msra.mxu0 0
  %1174 = vmatprep.subr.bf16.mxu0 0
  %1175 = vmatpush1.bf16.msra.mxu0 0
  %1176 = vmatprep.mubr.bf16.mxu0 0
  %1177 = vmatmul.mubr.bf16.gmra.mrb[0].mxu0 %v1136
  %v1178 = vpop.f32.mrb[0].mxu0
  %v1179 = vadd.f32 0.0, %v1178
  %v1180 = vpop.f32.mrb[0].mxu0
  %v1181 = vpop.f32.mrb[0].mxu0
  %v1182 = vadd.f32 0.0, %v1181
  %v1183 = vpop.f32.mrb[0].mxu0
  %1184 = vmatprep.mubr.bf16.mxu0 0
  %1185 = vmatmul.mubr.bf16.gmra.mrb[0].mxu0 %v1139
  %v1186 = vpop.f32.mrb[0].mxu0
  %v1187 = vadd.f32 0.0, %v1186
  %v1188 = vpop.f32.mrb[0].mxu0
  %v1189 = vpop.f32.mrb[0].mxu0
  %v1190 = vadd.f32 0.0, %v1189
  %v1191 = vpop.f32.mrb[0].mxu0
  %1192 = vmatprep.mubr.bf16.mxu0 0
  %1193 = vmatmul.mubr.bf16.gmra.mrb[0].mxu0 %v1142
  %v1194 = vpop.f32.mrb[0].mxu0
  %v1195 = vadd.f32 0.0, %v1194
  %v1196 = vpop.f32.mrb[0].mxu0
  %v1197 = vpop.f32.mrb[0].mxu0
  %v1198 = vadd.f32 0.0, %v1197
  %v1199 = vpop.f32.mrb[0].mxu0
  %1200 = vdwg.mxu0
  %1201 = vrot.lane.b32.xlu0 %v503, 112
  %v1202 = vpop.permute.xlu0 %1201
  %1203 = vrot.lane.b32.xlu0 %v504, 112
  %v1204 = vpop.permute.xlu0 %1203
  %1205 = vrot.lane.b32.xlu0 %v505, 112
  %v1206 = vpop.permute.xlu0 %1205
  %v1211 = vsel %vm849, %v1117, 0
  %v1214 = vsel %vm849, %v1118, 0
  %v1217 = vsel %vm849, %v1119, 0
  %1219 = vmatprep.subr.bf16.mxu0 0
  %1220 = vmatpush1.bf16.msra.mxu0 %v1202
  %1221 = vmatprep.subr.bf16.mxu0 0
  %1222 = vmatpush1.bf16.msra.mxu0 %v1204
  %1223 = vmatprep.subr.bf16.mxu0 0
  %1224 = vmatpush1.bf16.msra.mxu0 %v1206
  %1225 = vmatprep.subr.bf16.mxu0 0
  %1226 = vmatpush1.bf16.msra.mxu0 0
  %1227 = vmatprep.subr.bf16.mxu0 0
  %1228 = vmatpush1.bf16.msra.mxu0 0
  %1229 = vmatprep.subr.bf16.mxu0 0
  %1230 = vmatpush1.bf16.msra.mxu0 0
  %1231 = vmatprep.subr.bf16.mxu0 0
  %1232 = vmatpush1.bf16.msra.mxu0 0
  %1233 = vmatprep.subr.bf16.mxu0 0
  %1234 = vmatpush1.bf16.msra.mxu0 0
  %1235 = vmatprep.subr.bf16.mxu0 0
  %1236 = vmatpush1.bf16.msra.mxu0 0
  %1237 = vmatprep.subr.bf16.mxu0 0
  %1238 = vmatpush1.bf16.msra.mxu0 0
  %1239 = vmatprep.subr.bf16.mxu0 0
  %1240 = vmatpush1.bf16.msra.mxu0 0
  %1241 = vmatprep.subr.bf16.mxu0 0
  %1242 = vmatpush1.bf16.msra.mxu0 0
  %1243 = vmatprep.subr.bf16.mxu0 0
  %1244 = vmatpush1.bf16.msra.mxu0 0
  %1245 = vmatprep.subr.bf16.mxu0 0
  %1246 = vmatpush1.bf16.msra.mxu0 0
  %1247 = vmatprep.subr.bf16.mxu0 0
  %1248 = vmatpush1.bf16.msra.mxu0 0
  %1249 = vmatprep.subr.bf16.mxu0 0
  %1250 = vmatpush1.bf16.msra.mxu0 0
  %1251 = vmatprep.mubr.bf16.mxu0 0
  %1252 = vmatmul.mubr.bf16.gmra.mrb[0].mxu0 %v1211
  %v1253 = vpop.f32.mrb[0].mxu0
  %v1254 = vadd.f32 0.0, %v1253
  %v1255 = vpop.f32.mrb[0].mxu0
  %v1256 = vpop.f32.mrb[0].mxu0
  %v1257 = vadd.f32 0.0, %v1256
  %v1258 = vpop.f32.mrb[0].mxu0
  %1259 = vmatprep.mubr.bf16.mxu0 0
  %1260 = vmatmul.mubr.bf16.gmra.mrb[0].mxu0 %v1214
  %v1261 = vpop.f32.mrb[0].mxu0
  %v1262 = vadd.f32 0.0, %v1261
  %v1263 = vpop.f32.mrb[0].mxu0
  %v1264 = vpop.f32.mrb[0].mxu0
  %v1265 = vadd.f32 0.0, %v1264
  %v1266 = vpop.f32.mrb[0].mxu0
  %1267 = vmatprep.mubr.bf16.mxu0 0
  %1268 = vmatmul.mubr.bf16.gmra.mrb[0].mxu0 %v1217
  %v1269 = vpop.f32.mrb[0].mxu0
  %v1270 = vadd.f32 0.0, %v1269
  %v1271 = vpop.f32.mrb[0].mxu0
  %v1272 = vpop.f32.mrb[0].mxu0
  %v1273 = vadd.f32 0.0, %v1272
  %v1274 = vpop.f32.mrb[0].mxu0
  %1275 = vdwg.mxu0
  %1276 = vrot.lane.b32.xlu0 %v506, 112
  %v1277 = vpop.permute.xlu0 %1276
  %1278 = vrot.lane.b32.xlu0 %v507, 112
  %v1279 = vpop.permute.xlu0 %1278
  %1280 = vrot.lane.b32.xlu0 %v508, 112
  %v1281 = vpop.permute.xlu0 %1280
  %v1286 = vsel %vm849, %v1120, 0
  %v1289 = vsel %vm849, %v1121, 0
  %v1292 = vsel %vm849, %v1122, 0
  %1294 = vmatprep.subr.bf16.mxu0 0
  %1295 = vmatpush1.bf16.msra.mxu0 %v1277
  %1296 = vmatprep.subr.bf16.mxu0 0
  %1297 = vmatpush1.bf16.msra.mxu0 %v1279
  %1298 = vmatprep.subr.bf16.mxu0 0
  %1299 = vmatpush1.bf16.msra.mxu0 %v1281
  %1300 = vmatprep.subr.bf16.mxu0 0
  %1301 = vmatpush1.bf16.msra.mxu0 0
  %1302 = vmatprep.subr.bf16.mxu0 0
  %1303 = vmatpush1.bf16.msra.mxu0 0
  %1304 = vmatprep.subr.bf16.mxu0 0
  %1305 = vmatpush1.bf16.msra.mxu0 0
  %1306 = vmatprep.subr.bf16.mxu0 0
  %1307 = vmatpush1.bf16.msra.mxu0 0
  %1308 = vmatprep.subr.bf16.mxu0 0
  %1309 = vmatpush1.bf16.msra.mxu0 0
  %1310 = vmatprep.subr.bf16.mxu0 0
  %1311 = vmatpush1.bf16.msra.mxu0 0
  %1312 = vmatprep.subr.bf16.mxu0 0
  %1313 = vmatpush1.bf16.msra.mxu0 0
  %1314 = vmatprep.subr.bf16.mxu0 0
  %1315 = vmatpush1.bf16.msra.mxu0 0
  %1316 = vmatprep.subr.bf16.mxu0 0
  %1317 = vmatpush1.bf16.msra.mxu0 0
  %1318 = vmatprep.subr.bf16.mxu0 0
  %1319 = vmatpush1.bf16.msra.mxu0 0
  %1320 = vmatprep.subr.bf16.mxu0 0
  %1321 = vmatpush1.bf16.msra.mxu0 0
  %1322 = vmatprep.subr.bf16.mxu0 0
  %1323 = vmatpush1.bf16.msra.mxu0 0
  %1324 = vmatprep.subr.bf16.mxu0 0
  %1325 = vmatpush1.bf16.msra.mxu0 0
  %1326 = vmatprep.mubr.bf16.mxu0 0
  %1327 = vmatmul.mubr.bf16.gmra.mrb[0].mxu0 %v1286
  %v1328 = vpop.f32.mrb[0].mxu0
  %v1329 = vadd.f32 0.0, %v1328
  %v1330 = vpop.f32.mrb[0].mxu0
  %v1331 = vpop.f32.mrb[0].mxu0
  %v1332 = vadd.f32 0.0, %v1331
  %v1333 = vpop.f32.mrb[0].mxu0
  %1334 = vmatprep.mubr.bf16.mxu0 0
  %1335 = vmatmul.mubr.bf16.gmra.mrb[0].mxu0 %v1289
  %v1336 = vpop.f32.mrb[0].mxu0
  %v1337 = vadd.f32 0.0, %v1336
  %v1338 = vpop.f32.mrb[0].mxu0
  %v1339 = vpop.f32.mrb[0].mxu0
  %v1340 = vadd.f32 0.0, %v1339
  %v1341 = vpop.f32.mrb[0].mxu0
  %1342 = vmatprep.mubr.bf16.mxu0 0
  %1343 = vmatmul.mubr.bf16.gmra.mrb[0].mxu0 %v1292
  %v1344 = vpop.f32.mrb[0].mxu0
  %v1345 = vadd.f32 0.0, %v1344
  %v1346 = vpop.f32.mrb[0].mxu0
  %v1347 = vpop.f32.mrb[0].mxu0
  %v1348 = vadd.f32 0.0, %v1347
  %v1349 = vpop.f32.mrb[0].mxu0
  %1350 = vdwg.mxu0
  %1351 = vrot.lane.b32.xlu0 %v509, 112
  %v1352 = vpop.permute.xlu0 %1351
  %1353 = vrot.lane.b32.xlu0 %v510, 112
  %v1354 = vpop.permute.xlu0 %1353
  %1355 = vrot.lane.b32.xlu0 %v511, 112
  %v1356 = vpop.permute.xlu0 %1355
  %v1361 = vsel %vm849, %v1123, 0
  %v1364 = vsel %vm849, %v1124, 0
  %v1367 = vsel %vm849, %v1125, 0
  %1369 = vmatprep.subr.bf16.mxu0 0
  %1370 = vmatpush1.bf16.msra.mxu0 %v1352
  %1371 = vmatprep.subr.bf16.mxu0 0
  %1372 = vmatpush1.bf16.msra.mxu0 %v1354
  %1373 = vmatprep.subr.bf16.mxu0 0
  %1374 = vmatpush1.bf16.msra.mxu0 %v1356
  %1375 = vmatprep.subr.bf16.mxu0 0
  %1376 = vmatpush1.bf16.msra.mxu0 0
  %1377 = vmatprep.subr.bf16.mxu0 0
  %1378 = vmatpush1.bf16.msra.mxu0 0
  %1379 = vmatprep.subr.bf16.mxu0 0
  %1380 = vmatpush1.bf16.msra.mxu0 0
  %1381 = vmatprep.subr.bf16.mxu0 0
  %1382 = vmatpush1.bf16.msra.mxu0 0
  %1383 = vmatprep.subr.bf16.mxu0 0
  %1384 = vmatpush1.bf16.msra.mxu0 0
  %1385 = vmatprep.subr.bf16.mxu0 0
  %1386 = vmatpush1.bf16.msra.mxu0 0
  %1387 = vmatprep.subr.bf16.mxu0 0
  %1388 = vmatpush1.bf16.msra.mxu0 0
  %1389 = vmatprep.subr.bf16.mxu0 0
  %1390 = vmatpush1.bf16.msra.mxu0 0
  %1391 = vmatprep.subr.bf16.mxu0 0
  %1392 = vmatpush1.bf16.msra.mxu0 0
  %1393 = vmatprep.subr.bf16.mxu0 0
  %1394 = vmatpush1.bf16.msra.mxu0 0
  %1395 = vmatprep.subr.bf16.mxu0 0
  %1396 = vmatpush1.bf16.msra.mxu0 0
  %1397 = vmatprep.subr.bf16.mxu0 0
  %1398 = vmatpush1.bf16.msra.mxu0 0
  %1399 = vmatprep.subr.bf16.mxu0 0
  %1400 = vmatpush1.bf16.msra.mxu0 0
  %1401 = vmatprep.mubr.bf16.mxu0 0
  %1402 = vmatmul.mubr.bf16.gmra.mrb[0].mxu0 %v1361
  %v1403 = vpop.f32.mrb[0].mxu0
  %v1404 = vadd.f32 0.0, %v1403
  %v1405 = vpop.f32.mrb[0].mxu0
  %v1406 = vpop.f32.mrb[0].mxu0
  %v1407 = vadd.f32 0.0, %v1406
  %v1408 = vpop.f32.mrb[0].mxu0
  %1409 = vmatprep.mubr.bf16.mxu0 0
  %1410 = vmatmul.mubr.bf16.gmra.mrb[0].mxu0 %v1364
  %v1411 = vpop.f32.mrb[0].mxu0
  %v1412 = vadd.f32 0.0, %v1411
  %v1413 = vpop.f32.mrb[0].mxu0
  %v1414 = vpop.f32.mrb[0].mxu0
  %v1415 = vadd.f32 0.0, %v1414
  %v1416 = vpop.f32.mrb[0].mxu0
  %1417 = vmatprep.mubr.bf16.mxu0 0
  %1418 = vmatmul.mubr.bf16.gmra.mrb[0].mxu0 %v1367
  %v1419 = vpop.f32.mrb[0].mxu0
  %v1420 = vadd.f32 0.0, %v1419
  %v1421 = vpop.f32.mrb[0].mxu0
  %v1422 = vpop.f32.mrb[0].mxu0
  %v1423 = vadd.f32 0.0, %v1422
  %v1424 = vpop.f32.mrb[0].mxu0
  %1425 = vdwg.mxu0
  %v1426 = vpack.c.bf16 %v1182, %v1179
  %v1427 = vpack.c.bf16 %v1190, %v1187
  %v1428 = vpack.c.bf16 %v1198, %v1195
  %v1429 = vpack.c.bf16 %v1257, %v1254
  %v1430 = vpack.c.bf16 %v1265, %v1262
  %v1431 = vpack.c.bf16 %v1273, %v1270
  %v1432 = vpack.c.bf16 %v1332, %v1329
  %v1433 = vpack.c.bf16 %v1340, %v1337
  %v1434 = vpack.c.bf16 %v1348, %v1345
  %v1435 = vpack.c.bf16 %v1407, %v1404
  %v1436 = vpack.c.bf16 %v1415, %v1412
  %v1437 = vpack.c.bf16 %v1423, %v1420
  %v1438 = vld [vmem:[%s6] sm:$0xf]
  %v1439 = vld [vmem:[%s6 + $0x4] sm:$0xf]
  %v1440 = vld [vmem:[%s6 + $0x8] sm:$0xf]
  %v1441 = vld [vmem:[%s6 + $0xc] sm:$0xf]
  %v1443 = vsel %vm521, %v1426, 0
  %v1446 = vsel %vm521, %v1427, 0
  %v1449 = vsel %vm521, %v1428, 0
  %vm1451 = vcmask 1043456
  %v1453 = vsel %vm1451, %v1438, 0
  %1455 = vmatprep.subr.bf16.mxu0 0
  %1456 = vmatpush1.bf16.msra.mxu0 %v1453
  %1457 = vmatprep.subr.bf16.mxu0 0
  %1458 = vmatpush1.bf16.msra.mxu0 0
  %1459 = vmatprep.subr.bf16.mxu0 0
  %1460 = vmatpush1.bf16.msra.mxu0 0
  %1461 = vmatprep.subr.bf16.mxu0 0
  %1462 = vmatpush1.bf16.msra.mxu0 0
  %1463 = vmatprep.subr.bf16.mxu0 0
  %1464 = vmatpush1.bf16.msra.mxu0 0
  %1465 = vmatprep.subr.bf16.mxu0 0
  %1466 = vmatpush1.bf16.msra.mxu0 0
  %1467 = vmatprep.subr.bf16.mxu0 0
  %1468 = vmatpush1.bf16.msra.mxu0 0
  %1469 = vmatprep.subr.bf16.mxu0 0
  %1470 = vmatpush1.bf16.msra.mxu0 0
  %1471 = vmatprep.subr.bf16.mxu0 0
  %1472 = vmatpush1.bf16.msra.mxu0 0
  %1473 = vmatprep.subr.bf16.mxu0 0
  %1474 = vmatpush1.bf16.msra.mxu0 0
  %1475 = vmatprep.subr.bf16.mxu0 0
  %1476 = vmatpush1.bf16.msra.mxu0 0
  %1477 = vmatprep.subr.bf16.mxu0 0
  %1478 = vmatpush1.bf16.msra.mxu0 0
  %1479 = vmatprep.subr.bf16.mxu0 0
  %1480 = vmatpush1.bf16.msra.mxu0 0
  %1481 = vmatprep.subr.bf16.mxu0 0
  %1482 = vmatpush1.bf16.msra.mxu0 0
  %1483 = vmatprep.subr.bf16.mxu0 0
  %1484 = vmatpush1.bf16.msra.mxu0 0
  %1485 = vmatprep.subr.bf16.mxu0 0
  %1486 = vmatpush1.bf16.msra.mxu0 0
  %1487 = vmatprep.mubr.bf16.mxu0 0
  %1488 = vmatmul.mubr.bf16.gmra.mrb[0].mxu0 %v1443
  %v1489 = vpop.f32.mrb[0].mxu0
  %v1490 = vadd.f32 0.0, %v1489
  %v1491 = vpop.f32.mrb[0].mxu0
  %v1492 = vpop.f32.mrb[0].mxu0
  %v1493 = vadd.f32 0.0, %v1492
  %v1494 = vpop.f32.mrb[0].mxu0
  %1495 = vmatprep.mubr.bf16.mxu0 0
  %1496 = vmatmul.mubr.bf16.gmra.mrb[0].mxu0 %v1446
  %v1497 = vpop.f32.mrb[0].mxu0
  %v1498 = vadd.f32 0.0, %v1497
  %v1499 = vpop.f32.mrb[0].mxu0
  %v1500 = vpop.f32.mrb[0].mxu0
  %v1501 = vadd.f32 0.0, %v1500
  %v1502 = vpop.f32.mrb[0].mxu0
  %1503 = vmatprep.mubr.bf16.mxu0 0
  %1504 = vmatmul.mubr.bf16.gmra.mrb[0].mxu0 %v1449
  %v1505 = vpop.f32.mrb[0].mxu0
  %v1506 = vadd.f32 0.0, %v1505
  %v1507 = vpop.f32.mrb[0].mxu0
  %v1508 = vpop.f32.mrb[0].mxu0
  %v1509 = vadd.f32 0.0, %v1508
  %v1510 = vpop.f32.mrb[0].mxu0
  %1511 = vdwg.mxu0
  %v1513 = vsel %vm521, %v1429, 0
  %v1516 = vsel %vm521, %v1430, 0
  %v1519 = vsel %vm521, %v1431, 0
  %v1522 = vsel %vm1451, %v1439, 0
  %1524 = vmatprep.subr.bf16.mxu0 0
  %1525 = vmatpush1.bf16.msra.mxu0 %v1522
  %1526 = vmatprep.subr.bf16.mxu0 0
  %1527 = vmatpush1.bf16.msra.mxu0 0
  %1528 = vmatprep.subr.bf16.mxu0 0
  %1529 = vmatpush1.bf16.msra.mxu0 0
  %1530 = vmatprep.subr.bf16.mxu0 0
  %1531 = vmatpush1.bf16.msra.mxu0 0
  %1532 = vmatprep.subr.bf16.mxu0 0
  %1533 = vmatpush1.bf16.msra.mxu0 0
  %1534 = vmatprep.subr.bf16.mxu0 0
  %1535 = vmatpush1.bf16.msra.mxu0 0
  %1536 = vmatprep.subr.bf16.mxu0 0
  %1537 = vmatpush1.bf16.msra.mxu0 0
  %1538 = vmatprep.subr.bf16.mxu0 0
  %1539 = vmatpush1.bf16.msra.mxu0 0
  %1540 = vmatprep.subr.bf16.mxu0 0
  %1541 = vmatpush1.bf16.msra.mxu0 0
  %1542 = vmatprep.subr.bf16.mxu0 0
  %1543 = vmatpush1.bf16.msra.mxu0 0
  %1544 = vmatprep.subr.bf16.mxu0 0
  %1545 = vmatpush1.bf16.msra.mxu0 0
  %1546 = vmatprep.subr.bf16.mxu0 0
  %1547 = vmatpush1.bf16.msra.mxu0 0
  %1548 = vmatprep.subr.bf16.mxu0 0
  %1549 = vmatpush1.bf16.msra.mxu0 0
  %1550 = vmatprep.subr.bf16.mxu0 0
  %1551 = vmatpush1.bf16.msra.mxu0 0
  %1552 = vmatprep.subr.bf16.mxu0 0
  %1553 = vmatpush1.bf16.msra.mxu0 0
  %1554 = vmatprep.subr.bf16.mxu0 0
  %1555 = vmatpush1.bf16.msra.mxu0 0
  %1556 = vmatprep.mubr.bf16.mxu0 0
  %1557 = vmatmul.mubr.bf16.gmra.mrb[0].mxu0 %v1513
  %v1558 = vpop.f32.mrb[0].mxu0
  %v1559 = vadd.f32 0.0, %v1558
  %v1560 = vpop.f32.mrb[0].mxu0
  %v1561 = vpop.f32.mrb[0].mxu0
  %v1562 = vadd.f32 0.0, %v1561
  %v1563 = vpop.f32.mrb[0].mxu0
  %1564 = vmatprep.mubr.bf16.mxu0 0
  %1565 = vmatmul.mubr.bf16.gmra.mrb[0].mxu0 %v1516
  %v1566 = vpop.f32.mrb[0].mxu0
  %v1567 = vadd.f32 0.0, %v1566
  %v1568 = vpop.f32.mrb[0].mxu0
  %v1569 = vpop.f32.mrb[0].mxu0
  %v1570 = vadd.f32 0.0, %v1569
  %v1571 = vpop.f32.mrb[0].mxu0
  %1572 = vmatprep.mubr.bf16.mxu0 0
  %1573 = vmatmul.mubr.bf16.gmra.mrb[0].mxu0 %v1519
  %v1574 = vpop.f32.mrb[0].mxu0
  %v1575 = vadd.f32 0.0, %v1574
  %v1576 = vpop.f32.mrb[0].mxu0
  %v1577 = vpop.f32.mrb[0].mxu0
  %v1578 = vadd.f32 0.0, %v1577
  %v1579 = vpop.f32.mrb[0].mxu0
  %1580 = vdwg.mxu0
  %v1582 = vsel %vm521, %v1432, 0
  %v1585 = vsel %vm521, %v1433, 0
  %v1588 = vsel %vm521, %v1434, 0
  %v1591 = vsel %vm1451, %v1440, 0
  %1593 = vmatprep.subr.bf16.mxu0 0
  %1594 = vmatpush1.bf16.msra.mxu0 %v1591
  %1595 = vmatprep.subr.bf16.mxu0 0
  %1596 = vmatpush1.bf16.msra.mxu0 0
  %1597 = vmatprep.subr.bf16.mxu0 0
  %1598 = vmatpush1.bf16.msra.mxu0 0
  %1599 = vmatprep.subr.bf16.mxu0 0
  %1600 = vmatpush1.bf16.msra.mxu0 0
  %1601 = vmatprep.subr.bf16.mxu0 0
  %1602 = vmatpush1.bf16.msra.mxu0 0
  %1603 = vmatprep.subr.bf16.mxu0 0
  %1604 = vmatpush1.bf16.msra.mxu0 0
  %1605 = vmatprep.subr.bf16.mxu0 0
  %1606 = vmatpush1.bf16.msra.mxu0 0
  %1607 = vmatprep.subr.bf16.mxu0 0
  %1608 = vmatpush1.bf16.msra.mxu0 0
  %1609 = vmatprep.subr.bf16.mxu0 0
  %1610 = vmatpush1.bf16.msra.mxu0 0
  %1611 = vmatprep.subr.bf16.mxu0 0
  %1612 = vmatpush1.bf16.msra.mxu0 0
  %1613 = vmatprep.subr.bf16.mxu0 0
  %1614 = vmatpush1.bf16.msra.mxu0 0
  %1615 = vmatprep.subr.bf16.mxu0 0
  %1616 = vmatpush1.bf16.msra.mxu0 0
  %1617 = vmatprep.subr.bf16.mxu0 0
  %1618 = vmatpush1.bf16.msra.mxu0 0
  %1619 = vmatprep.subr.bf16.mxu0 0
  %1620 = vmatpush1.bf16.msra.mxu0 0
  %1621 = vmatprep.subr.bf16.mxu0 0
  %1622 = vmatpush1.bf16.msra.mxu0 0
  %1623 = vmatprep.subr.bf16.mxu0 0
  %1624 = vmatpush1.bf16.msra.mxu0 0
  %1625 = vmatprep.mubr.bf16.mxu0 0
  %1626 = vmatmul.mubr.bf16.gmra.mrb[0].mxu0 %v1582
  %v1627 = vpop.f32.mrb[0].mxu0
  %v1628 = vadd.f32 0.0, %v1627
  %v1629 = vpop.f32.mrb[0].mxu0
  %v1630 = vpop.f32.mrb[0].mxu0
  %v1631 = vadd.f32 0.0, %v1630
  %v1632 = vpop.f32.mrb[0].mxu0
  %1633 = vmatprep.mubr.bf16.mxu0 0
  %1634 = vmatmul.mubr.bf16.gmra.mrb[0].mxu0 %v1585
  %v1635 = vpop.f32.mrb[0].mxu0
  %v1636 = vadd.f32 0.0, %v1635
  %v1637 = vpop.f32.mrb[0].mxu0
  %v1638 = vpop.f32.mrb[0].mxu0
  %v1639 = vadd.f32 0.0, %v1638
  %v1640 = vpop.f32.mrb[0].mxu0
  %1641 = vmatprep.mubr.bf16.mxu0 0
  %1642 = vmatmul.mubr.bf16.gmra.mrb[0].mxu0 %v1588
  %v1643 = vpop.f32.mrb[0].mxu0
  %v1644 = vadd.f32 0.0, %v1643
  %v1645 = vpop.f32.mrb[0].mxu0
  %v1646 = vpop.f32.mrb[0].mxu0
  %v1647 = vadd.f32 0.0, %v1646
  %v1648 = vpop.f32.mrb[0].mxu0
  %1649 = vdwg.mxu0
  %v1651 = vsel %vm521, %v1435, 0
  %v1654 = vsel %vm521, %v1436, 0
  %v1657 = vsel %vm521, %v1437, 0
  %v1660 = vsel %vm1451, %v1441, 0
  %1662 = vmatprep.subr.bf16.mxu0 0
  %1663 = vmatpush1.bf16.msra.mxu0 %v1660
  %1664 = vmatprep.subr.bf16.mxu0 0
  %1665 = vmatpush1.bf16.msra.mxu0 0
  %1666 = vmatprep.subr.bf16.mxu0 0
  %1667 = vmatpush1.bf16.msra.mxu0 0
  %1668 = vmatprep.subr.bf16.mxu0 0
  %1669 = vmatpush1.bf16.msra.mxu0 0
  %1670 = vmatprep.subr.bf16.mxu0 0
  %1671 = vmatpush1.bf16.msra.mxu0 0
  %1672 = vmatprep.subr.bf16.mxu0 0
  %1673 = vmatpush1.bf16.msra.mxu0 0
  %1674 = vmatprep.subr.bf16.mxu0 0
  %1675 = vmatpush1.bf16.msra.mxu0 0
  %1676 = vmatprep.subr.bf16.mxu0 0
  %1677 = vmatpush1.bf16.msra.mxu0 0
  %1678 = vmatprep.subr.bf16.mxu0 0
  %1679 = vmatpush1.bf16.msra.mxu0 0
  %1680 = vmatprep.subr.bf16.mxu0 0
  %1681 = vmatpush1.bf16.msra.mxu0 0
  %1682 = vmatprep.subr.bf16.mxu0 0
  %1683 = vmatpush1.bf16.msra.mxu0 0
  %1684 = vmatprep.subr.bf16.mxu0 0
  %1685 = vmatpush1.bf16.msra.mxu0 0
  %1686 = vmatprep.subr.bf16.mxu0 0
  %1687 = vmatpush1.bf16.msra.mxu0 0
  %1688 = vmatprep.subr.bf16.mxu0 0
  %1689 = vmatpush1.bf16.msra.mxu0 0
  %1690 = vmatprep.subr.bf16.mxu0 0
  %1691 = vmatpush1.bf16.msra.mxu0 0
  %1692 = vmatprep.subr.bf16.mxu0 0
  %1693 = vmatpush1.bf16.msra.mxu0 0
  %1694 = vmatprep.mubr.bf16.mxu0 0
  %1695 = vmatmul.mubr.bf16.gmra.mrb[0].mxu0 %v1651
  %v1696 = vpop.f32.mrb[0].mxu0
  %v1697 = vadd.f32 0.0, %v1696
  %v1698 = vpop.f32.mrb[0].mxu0
  %v1699 = vpop.f32.mrb[0].mxu0
  %v1700 = vadd.f32 0.0, %v1699
  %v1701 = vpop.f32.mrb[0].mxu0
  %1702 = vmatprep.mubr.bf16.mxu0 0
  %1703 = vmatmul.mubr.bf16.gmra.mrb[0].mxu0 %v1654
  %v1704 = vpop.f32.mrb[0].mxu0
  %v1705 = vadd.f32 0.0, %v1704
  %v1706 = vpop.f32.mrb[0].mxu0
  %v1707 = vpop.f32.mrb[0].mxu0
  %v1708 = vadd.f32 0.0, %v1707
  %v1709 = vpop.f32.mrb[0].mxu0
  %1710 = vmatprep.mubr.bf16.mxu0 0
  %1711 = vmatmul.mubr.bf16.gmra.mrb[0].mxu0 %v1657
  %v1712 = vpop.f32.mrb[0].mxu0
  %v1713 = vadd.f32 0.0, %v1712
  %v1714 = vpop.f32.mrb[0].mxu0
  %v1715 = vpop.f32.mrb[0].mxu0
  %v1716 = vadd.f32 0.0, %v1715
  %v1717 = vpop.f32.mrb[0].mxu0
  %1718 = vdwg.mxu0
  %v1719 = vsel %vm62, %v1490, 0.0
  %v1720 = vsel %vm62, %v1559, 0.0
  %v1721 = vadd.f32 %v1719, %v1720
  %v1722 = vsel %vm62, %v1628, 0.0
  %v1723 = vadd.f32 %v1721, %v1722
  %v1724 = vsel %vm62, %v1697, 0.0
  %v1725 = vadd.f32 %v1723, %v1724
  %v1726 = vsel %vm62, %v1493, 0.0
  %v1727 = vsel %vm62, %v1562, 0.0
  %v1728 = vadd.f32 %v1726, %v1727
  %v1729 = vsel %vm62, %v1631, 0.0
  %v1730 = vadd.f32 %v1728, %v1729
  %v1731 = vsel %vm62, %v1700, 0.0
  %v1732 = vadd.f32 %v1730, %v1731
  %v1733 = vsel %vm62, %v1498, 0.0
  %v1734 = vsel %vm62, %v1567, 0.0
  %v1735 = vadd.f32 %v1733, %v1734
  %v1736 = vsel %vm62, %v1636, 0.0
  %v1737 = vadd.f32 %v1735, %v1736
  %v1738 = vsel %vm62, %v1705, 0.0
  %v1739 = vadd.f32 %v1737, %v1738
  %v1740 = vsel %vm62, %v1501, 0.0
  %v1741 = vsel %vm62, %v1570, 0.0
  %v1742 = vadd.f32 %v1740, %v1741
  %v1743 = vsel %vm62, %v1639, 0.0
  %v1744 = vadd.f32 %v1742, %v1743
  %v1745 = vsel %vm62, %v1708, 0.0
  %v1746 = vadd.f32 %v1744, %v1745
  %v1747 = vsel %vm62, %v1506, 0.0
  %v1748 = vsel %vm62, %v1575, 0.0
  %v1749 = vadd.f32 %v1747, %v1748
  %v1750 = vsel %vm62, %v1644, 0.0
  %v1751 = vadd.f32 %v1749, %v1750
  %v1752 = vsel %vm62, %v1713, 0.0
  %v1753 = vadd.f32 %v1751, %v1752
  %v1754 = vsel %vm62, %v1509, 0.0
  %v1755 = vsel %vm62, %v1578, 0.0
  %v1756 = vadd.f32 %v1754, %v1755
  %v1757 = vsel %vm62, %v1647, 0.0
  %v1758 = vadd.f32 %v1756, %v1757
  %v1759 = vsel %vm62, %v1716, 0.0
  %v1760 = vadd.f32 %v1758, %v1759
  %v1762 = vlaneseq
  %v1763 = vshrl.u32 %v1762, 7
  %v1764 = vsub.s32 0, %v1763
  %v1765 = vrot.slane %v58, %v1764
  %v1767 = vadd.f32 %v1725, %v1765
  %v1768 = vadd.f32 %v1732, %v1765
  %v1769 = vadd.f32 %v1739, %v1765
  %v1770 = vadd.f32 %v1746, %v1765
  %v1771 = vadd.f32 %v1753, %v1765
  %v1772 = vadd.f32 %v1760, %v1765
  %v1773 = vadd.f32 %v30, %v1767
  %v1774 = vadd.f32 %v31, %v1768
  %v1775 = vadd.f32 %v32, %v1769
  %v1776 = vadd.f32 %v33, %v1770
  %v1777 = vadd.f32 %v34, %v1771
  %v1778 = vadd.f32 %v35, %v1772
  %v1779 = vsel %vm62, %v1773, 0.0
  %1780 = vadd.xlane.f32.xlu0 %v1779
  %v1781 = vpop.xlane.xlu0 %1780
  %v1782 = vsel %vm62, %v1774, 0.0
  %1783 = vadd.xlane.f32.xlu0 %v1782
  %v1784 = vpop.xlane.xlu0 %1783
  %v1785 = vsel %vm62, %v1775, 0.0
  %1786 = vadd.xlane.f32.xlu0 %v1785
  %v1787 = vpop.xlane.xlu0 %1786
  %v1788 = vsel %vm62, %v1776, 0.0
  %1789 = vadd.xlane.f32.xlu0 %v1788
  %v1790 = vpop.xlane.xlu0 %1789
  %v1791 = vsel %vm62, %v1777, 0.0
  %1792 = vadd.xlane.f32.xlu0 %v1791
  %v1793 = vpop.xlane.xlu0 %1792
  %v1794 = vsel %vm62, %v1778, 0.0
  %1795 = vadd.xlane.f32.xlu0 %v1794
  %v1796 = vpop.xlane.xlu0 %1795
  %v1797 = vmul.f32 %v1781, %v81
  %v1798 = vmul.f32 %v1784, %v81
  %v1799 = vmul.f32 %v1787, %v81
  %v1800 = vmul.f32 %v1790, %v81
  %v1801 = vmul.f32 %v1793, %v81
  %v1802 = vmul.f32 %v1796, %v81
  %v1803 = vsub.f32 %v1773, %v1797
  %v1804 = vsub.f32 %v1774, %v1798
  %v1805 = vsub.f32 %v1775, %v1799
  %v1806 = vsub.f32 %v1776, %v1800
  %v1807 = vsub.f32 %v1777, %v1801
  %v1808 = vsub.f32 %v1778, %v1802
  %v1809 = vmul.f32 %v1803, %v1803
  %v1810 = vmul.f32 %v1804, %v1804
  %v1811 = vmul.f32 %v1805, %v1805
  %v1812 = vmul.f32 %v1806, %v1806
  %v1813 = vmul.f32 %v1807, %v1807
  %v1814 = vmul.f32 %v1808, %v1808
  %v1815 = vsel %vm62, %v1809, 0.0
  %1816 = vadd.xlane.f32.xlu0 %v1815
  %v1817 = vpop.xlane.xlu0 %1816
  %v1818 = vsel %vm62, %v1810, 0.0
  %1819 = vadd.xlane.f32.xlu0 %v1818
  %v1820 = vpop.xlane.xlu0 %1819
  %v1821 = vsel %vm62, %v1811, 0.0
  %1822 = vadd.xlane.f32.xlu0 %v1821
  %v1823 = vpop.xlane.xlu0 %1822
  %v1824 = vsel %vm62, %v1812, 0.0
  %1825 = vadd.xlane.f32.xlu0 %v1824
  %v1826 = vpop.xlane.xlu0 %1825
  %v1827 = vsel %vm62, %v1813, 0.0
  %1828 = vadd.xlane.f32.xlu0 %v1827
  %v1829 = vpop.xlane.xlu0 %1828
  %v1830 = vsel %vm62, %v1814, 0.0
  %1831 = vadd.xlane.f32.xlu0 %v1830
  %v1832 = vpop.xlane.xlu0 %1831
  %v1833 = vmul.f32 %v1817, %v81
  %v1834 = vmul.f32 %v1820, %v81
  %v1835 = vmul.f32 %v1823, %v81
  %v1836 = vmul.f32 %v1826, %v81
  %v1837 = vmul.f32 %v1829, %v81
  %v1838 = vmul.f32 %v1832, %v81
  %v1839 = vadd.f32 %v1833, 1e-05
  %v1840 = vadd.f32 %v1834, 1e-05
  %v1841 = vadd.f32 %v1835, 1e-05
  %v1842 = vadd.f32 %v1836, 1e-05
  %v1843 = vadd.f32 %v1837, 1e-05
  %v1844 = vadd.f32 %v1838, 1e-05
  %v1845 = vrsqrt.pop %v1839
  %v1846 = vrsqrt.pop %v1840
  %v1847 = vrsqrt.pop %v1841
  %v1848 = vrsqrt.pop %v1842
  %v1849 = vrsqrt.pop %v1843
  %v1850 = vrsqrt.pop %v1844
  %v1851 = vmul.f32 %v1803, %v1845
  %v1852 = vmul.f32 %v1804, %v1846
  %v1853 = vmul.f32 %v1805, %v1847
  %v1854 = vmul.f32 %v1806, %v1848
  %v1855 = vmul.f32 %v1807, %v1849
  %v1856 = vmul.f32 %v1808, %v1850
  %v1858 = vlaneseq
  %v1859 = vshrl.u32 %v1858, 7
  %v1860 = vsub.s32 0, %v1859
  %v1861 = vrot.slane %v51, %v1860
  %v1863 = vmul.f32 %v1851, %v1861
  %v1864 = vmul.f32 %v1852, %v1861
  %v1865 = vmul.f32 %v1853, %v1861
  %v1866 = vmul.f32 %v1854, %v1861
  %v1867 = vmul.f32 %v1855, %v1861
  %v1868 = vmul.f32 %v1856, %v1861
  %v1870 = vlaneseq
  %v1871 = vshrl.u32 %v1870, 7
  %v1872 = vsub.s32 0, %v1871
  %v1873 = vrot.slane %v55, %v1872
  %v1875 = vadd.f32 %v1863, %v1873
  %v1876 = vadd.f32 %v1864, %v1873
  %v1877 = vadd.f32 %v1865, %v1873
  %v1878 = vadd.f32 %v1866, %v1873
  %v1879 = vadd.f32 %v1867, %v1873
  %v1880 = vadd.f32 %v1868, %v1873
  %v1881 = vpack.c.bf16 %v1876, %v1875
  %v1882 = vpack.c.bf16 %v1878, %v1877
  %v1883 = vpack.c.bf16 %v1880, %v1879
  %s1884 = scalar_lea.vmem %s5, 64
  %v1885 = vld [vmem:[%s1884] sm:$0xf]
  %v1886 = vld [vmem:[%s1884 + $0x4] sm:$0xf]
  %v1887 = vld [vmem:[%s1884 + $0x8] sm:$0xf]
  %v1888 = vld [vmem:[%s1884 + $0xc] sm:$0xf]
  %v1889 = vld [vmem:[%s1884 + $0x10] sm:$0xf]
  %v1890 = vld [vmem:[%s1884 + $0x14] sm:$0xf]
  %v1891 = vld [vmem:[%s1884 + $0x18] sm:$0xf]
  %v1892 = vld [vmem:[%s1884 + $0x1c] sm:$0xf]
  %v1893 = vld [vmem:[%s1884 + $0x20] sm:$0xf]
  %v1894 = vld [vmem:[%s1884 + $0x24] sm:$0xf]
  %v1895 = vld [vmem:[%s1884 + $0x28] sm:$0xf]
  %v1896 = vld [vmem:[%s1884 + $0x2c] sm:$0xf]
  %v1897 = vld [vmem:[%s1884 + $0x30] sm:$0xf]
  %v1898 = vld [vmem:[%s1884 + $0x34] sm:$0xf]
  %v1899 = vld [vmem:[%s1884 + $0x38] sm:$0xf]
  %v1900 = vld [vmem:[%s1884 + $0x3c] sm:$0xf]
  %s1901 = scalar_lea.vmem %s2, 192
  %v1902 = vld [vmem:[%s1901] sm:$0xff]
  %v1903 = vld [vmem:[%s1901 + $0x8] sm:$0xff]
  %v1904 = vld [vmem:[%s1901 + $0x10] sm:$0xff]
  %v1905 = vld [vmem:[%s1901 + $0x18] sm:$0xff]
  %v1906 = vld [vmem:[%s1901 + $0x20] sm:$0xff]
  %v1907 = vld [vmem:[%s1901 + $0x28] sm:$0xff]
  %v1908 = vld [vmem:[%s1901 + $0x30] sm:$0xff]
  %v1909 = vld [vmem:[%s1901 + $0x38] sm:$0xff]
  %v1910 = vld [vmem:[%s1901 + $0x40] sm:$0xff]
  %v1911 = vld [vmem:[%s1901 + $0x48] sm:$0xff]
  %v1912 = vld [vmem:[%s1901 + $0x50] sm:$0xff]
  %v1913 = vld [vmem:[%s1901 + $0x58] sm:$0xff]
  %v1914 = vld [vmem:[%s1901 + $0x60] sm:$0xff]
  %v1915 = vld [vmem:[%s1901 + $0x68] sm:$0xff]
  %v1916 = vld [vmem:[%s1901 + $0x70] sm:$0xff]
  %v1917 = vld [vmem:[%s1901 + $0x78] sm:$0xff]
  %v1918 = vld [vmem:[%s1901 + $0x80] sm:$0xff]
  %v1919 = vld [vmem:[%s1901 + $0x88] sm:$0xff]
  %v1920 = vld [vmem:[%s1901 + $0x90] sm:$0xff]
  %v1921 = vld [vmem:[%s1901 + $0x98] sm:$0xff]
  %v1922 = vld [vmem:[%s1901 + $0xa0] sm:$0xff]
  %v1923 = vld [vmem:[%s1901 + $0xa8] sm:$0xff]
  %v1924 = vld [vmem:[%s1901 + $0xb0] sm:$0xff]
  %v1925 = vld [vmem:[%s1901 + $0xb8] sm:$0xff]
  %v1930 = vunpack.c.l.b16 %v1885
  %v1931 = vunpack.c.l.b16 %v1886
  %v1932 = vunpack.c.l.b16 %v1887
  %v1933 = vunpack.c.l.b16 %v1888
  %v1934 = vpack.c.b16 %v1931, %v1930
  %v1935 = vpack.c.b16 %v1933, %v1932
  %v1939 = vsel %vm62, %v1881, 0
  %v1942 = vsel %vm62, %v1882, 0
  %v1945 = vsel %vm62, %v1883, 0
  %1947 = vmatprep.subr.bf16.mxu0 0
  %1948 = vmatpush1.bf16.msra.mxu0 %v1934
  %1949 = vmatprep.subr.bf16.mxu0 0
  %1950 = vmatpush1.bf16.msra.mxu0 %v1935
  %1951 = vmatprep.subr.bf16.mxu0 0
  %1952 = vmatpush1.bf16.msra.mxu0 0
  %1953 = vmatprep.subr.bf16.mxu0 0
  %1954 = vmatpush1.bf16.msra.mxu0 0
  %1955 = vmatprep.subr.bf16.mxu0 0
  %1956 = vmatpush1.bf16.msra.mxu0 0
  %1957 = vmatprep.subr.bf16.mxu0 0
  %1958 = vmatpush1.bf16.msra.mxu0 0
  %1959 = vmatprep.subr.bf16.mxu0 0
  %1960 = vmatpush1.bf16.msra.mxu0 0
  %1961 = vmatprep.subr.bf16.mxu0 0
  %1962 = vmatpush1.bf16.msra.mxu0 0
  %1963 = vmatprep.subr.bf16.mxu0 0
  %1964 = vmatpush1.bf16.msra.mxu0 0
  %1965 = vmatprep.subr.bf16.mxu0 0
  %1966 = vmatpush1.bf16.msra.mxu0 0
  %1967 = vmatprep.subr.bf16.mxu0 0
  %1968 = vmatpush1.bf16.msra.mxu0 0
  %1969 = vmatprep.subr.bf16.mxu0 0
  %1970 = vmatpush1.bf16.msra.mxu0 0
  %1971 = vmatprep.subr.bf16.mxu0 0
  %1972 = vmatpush1.bf16.msra.mxu0 0
  %1973 = vmatprep.subr.bf16.mxu0 0
  %1974 = vmatpush1.bf16.msra.mxu0 0
  %1975 = vmatprep.subr.bf16.mxu0 0
  %1976 = vmatpush1.bf16.msra.mxu0 0
  %1977 = vmatprep.subr.bf16.mxu0 0
  %1978 = vmatpush1.bf16.msra.mxu0 0
  %1979 = vmatprep.mubr.bf16.mxu0 0
  %1980 = vmatmul.mubr.bf16.gmra.mrb[0].mxu0 %v1939
  %v1981 = vpop.f32.mrb[0].mxu0
  %v1982 = vadd.f32 %v1902, %v1981
  %v1983 = vpop.f32.mrb[0].mxu0
  %v1984 = vpop.f32.mrb[0].mxu0
  %v1985 = vadd.f32 %v1903, %v1984
  %v1986 = vpop.f32.mrb[0].mxu0
  %1987 = vmatprep.mubr.bf16.mxu0 0
  %1988 = vmatmul.mubr.bf16.gmra.mrb[0].mxu0 %v1942
  %v1989 = vpop.f32.mrb[0].mxu0
  %v1990 = vadd.f32 %v1904, %v1989
  %v1991 = vpop.f32.mrb[0].mxu0
  %v1992 = vpop.f32.mrb[0].mxu0
  %v1993 = vadd.f32 %v1905, %v1992
  %v1994 = vpop.f32.mrb[0].mxu0
  %1995 = vmatprep.mubr.bf16.mxu0 0
  %1996 = vmatmul.mubr.bf16.gmra.mrb[0].mxu0 %v1945
  %v1997 = vpop.f32.mrb[0].mxu0
  %v1998 = vadd.f32 %v1906, %v1997
  %v1999 = vpop.f32.mrb[0].mxu0
  %v2000 = vpop.f32.mrb[0].mxu0
  %v2001 = vadd.f32 %v1907, %v2000
  %v2002 = vpop.f32.mrb[0].mxu0
  %2003 = vdwg.mxu0
  %v2008 = vunpack.c.l.b16 %v1889
  %v2009 = vunpack.c.l.b16 %v1890
  %v2010 = vunpack.c.l.b16 %v1891
  %v2011 = vunpack.c.l.b16 %v1892
  %v2012 = vpack.c.b16 %v2009, %v2008
  %v2013 = vpack.c.b16 %v2011, %v2010
  %2016 = vmatprep.subr.bf16.mxu0 0
  %2017 = vmatpush1.bf16.msra.mxu0 %v2012
  %2018 = vmatprep.subr.bf16.mxu0 0
  %2019 = vmatpush1.bf16.msra.mxu0 %v2013
  %2020 = vmatprep.subr.bf16.mxu0 0
  %2021 = vmatpush1.bf16.msra.mxu0 0
  %2022 = vmatprep.subr.bf16.mxu0 0
  %2023 = vmatpush1.bf16.msra.mxu0 0
  %2024 = vmatprep.subr.bf16.mxu0 0
  %2025 = vmatpush1.bf16.msra.mxu0 0
  %2026 = vmatprep.subr.bf16.mxu0 0
  %2027 = vmatpush1.bf16.msra.mxu0 0
  %2028 = vmatprep.subr.bf16.mxu0 0
  %2029 = vmatpush1.bf16.msra.mxu0 0
  %2030 = vmatprep.subr.bf16.mxu0 0
  %2031 = vmatpush1.bf16.msra.mxu0 0
  %2032 = vmatprep.subr.bf16.mxu0 0
  %2033 = vmatpush1.bf16.msra.mxu0 0
  %2034 = vmatprep.subr.bf16.mxu0 0
  %2035 = vmatpush1.bf16.msra.mxu0 0
  %2036 = vmatprep.subr.bf16.mxu0 0
  %2037 = vmatpush1.bf16.msra.mxu0 0
  %2038 = vmatprep.subr.bf16.mxu0 0
  %2039 = vmatpush1.bf16.msra.mxu0 0
  %2040 = vmatprep.subr.bf16.mxu0 0
  %2041 = vmatpush1.bf16.msra.mxu0 0
  %2042 = vmatprep.subr.bf16.mxu0 0
  %2043 = vmatpush1.bf16.msra.mxu0 0
  %2044 = vmatprep.subr.bf16.mxu0 0
  %2045 = vmatpush1.bf16.msra.mxu0 0
  %2046 = vmatprep.subr.bf16.mxu0 0
  %2047 = vmatpush1.bf16.msra.mxu0 0
  %2048 = vmatprep.mubr.bf16.mxu0 0
  %2049 = vmatmul.mubr.bf16.gmra.mrb[0].mxu0 %v1939
  %v2050 = vpop.f32.mrb[0].mxu0
  %v2051 = vadd.f32 %v1908, %v2050
  %v2052 = vpop.f32.mrb[0].mxu0
  %v2053 = vpop.f32.mrb[0].mxu0
  %v2054 = vadd.f32 %v1909, %v2053
  %v2055 = vpop.f32.mrb[0].mxu0
  %2056 = vmatprep.mubr.bf16.mxu0 0
  %2057 = vmatmul.mubr.bf16.gmra.mrb[0].mxu0 %v1942
  %v2058 = vpop.f32.mrb[0].mxu0
  %v2059 = vadd.f32 %v1910, %v2058
  %v2060 = vpop.f32.mrb[0].mxu0
  %v2061 = vpop.f32.mrb[0].mxu0
  %v2062 = vadd.f32 %v1911, %v2061
  %v2063 = vpop.f32.mrb[0].mxu0
  %2064 = vmatprep.mubr.bf16.mxu0 0
  %2065 = vmatmul.mubr.bf16.gmra.mrb[0].mxu0 %v1945
  %v2066 = vpop.f32.mrb[0].mxu0
  %v2067 = vadd.f32 %v1912, %v2066
  %v2068 = vpop.f32.mrb[0].mxu0
  %v2069 = vpop.f32.mrb[0].mxu0
  %v2070 = vadd.f32 %v1913, %v2069
  %v2071 = vpop.f32.mrb[0].mxu0
  %2072 = vdwg.mxu0
  %v2077 = vunpack.c.l.b16 %v1893
  %v2078 = vunpack.c.l.b16 %v1894
  %v2079 = vunpack.c.l.b16 %v1895
  %v2080 = vunpack.c.l.b16 %v1896
  %v2081 = vpack.c.b16 %v2078, %v2077
  %v2082 = vpack.c.b16 %v2080, %v2079
  %2085 = vmatprep.subr.bf16.mxu0 0
  %2086 = vmatpush1.bf16.msra.mxu0 %v2081
  %2087 = vmatprep.subr.bf16.mxu0 0
  %2088 = vmatpush1.bf16.msra.mxu0 %v2082
  %2089 = vmatprep.subr.bf16.mxu0 0
  %2090 = vmatpush1.bf16.msra.mxu0 0
  %2091 = vmatprep.subr.bf16.mxu0 0
  %2092 = vmatpush1.bf16.msra.mxu0 0
  %2093 = vmatprep.subr.bf16.mxu0 0
  %2094 = vmatpush1.bf16.msra.mxu0 0
  %2095 = vmatprep.subr.bf16.mxu0 0
  %2096 = vmatpush1.bf16.msra.mxu0 0
  %2097 = vmatprep.subr.bf16.mxu0 0
  %2098 = vmatpush1.bf16.msra.mxu0 0
  %2099 = vmatprep.subr.bf16.mxu0 0
  %2100 = vmatpush1.bf16.msra.mxu0 0
  %2101 = vmatprep.subr.bf16.mxu0 0
  %2102 = vmatpush1.bf16.msra.mxu0 0
  %2103 = vmatprep.subr.bf16.mxu0 0
  %2104 = vmatpush1.bf16.msra.mxu0 0
  %2105 = vmatprep.subr.bf16.mxu0 0
  %2106 = vmatpush1.bf16.msra.mxu0 0
  %2107 = vmatprep.subr.bf16.mxu0 0
  %2108 = vmatpush1.bf16.msra.mxu0 0
  %2109 = vmatprep.subr.bf16.mxu0 0
  %2110 = vmatpush1.bf16.msra.mxu0 0
  %2111 = vmatprep.subr.bf16.mxu0 0
  %2112 = vmatpush1.bf16.msra.mxu0 0
  %2113 = vmatprep.subr.bf16.mxu0 0
  %2114 = vmatpush1.bf16.msra.mxu0 0
  %2115 = vmatprep.subr.bf16.mxu0 0
  %2116 = vmatpush1.bf16.msra.mxu0 0
  %2117 = vmatprep.mubr.bf16.mxu0 0
  %2118 = vmatmul.mubr.bf16.gmra.mrb[0].mxu0 %v1939
  %v2119 = vpop.f32.mrb[0].mxu0
  %v2120 = vadd.f32 %v1914, %v2119
  %v2121 = vpop.f32.mrb[0].mxu0
  %v2122 = vpop.f32.mrb[0].mxu0
  %v2123 = vadd.f32 %v1915, %v2122
  %v2124 = vpop.f32.mrb[0].mxu0
  %2125 = vmatprep.mubr.bf16.mxu0 0
  %2126 = vmatmul.mubr.bf16.gmra.mrb[0].mxu0 %v1942
  %v2127 = vpop.f32.mrb[0].mxu0
  %v2128 = vadd.f32 %v1916, %v2127
  %v2129 = vpop.f32.mrb[0].mxu0
  %v2130 = vpop.f32.mrb[0].mxu0
  %v2131 = vadd.f32 %v1917, %v2130
  %v2132 = vpop.f32.mrb[0].mxu0
  %2133 = vmatprep.mubr.bf16.mxu0 0
  %2134 = vmatmul.mubr.bf16.gmra.mrb[0].mxu0 %v1945
  %v2135 = vpop.f32.mrb[0].mxu0
  %v2136 = vadd.f32 %v1918, %v2135
  %v2137 = vpop.f32.mrb[0].mxu0
  %v2138 = vpop.f32.mrb[0].mxu0
  %v2139 = vadd.f32 %v1919, %v2138
  %v2140 = vpop.f32.mrb[0].mxu0
  %2141 = vdwg.mxu0
  %v2146 = vunpack.c.l.b16 %v1897
  %v2147 = vunpack.c.l.b16 %v1898
  %v2148 = vunpack.c.l.b16 %v1899
  %v2149 = vunpack.c.l.b16 %v1900
  %v2150 = vpack.c.b16 %v2147, %v2146
  %v2151 = vpack.c.b16 %v2149, %v2148
  %2154 = vmatprep.subr.bf16.mxu0 0
  %2155 = vmatpush1.bf16.msra.mxu0 %v2150
  %2156 = vmatprep.subr.bf16.mxu0 0
  %2157 = vmatpush1.bf16.msra.mxu0 %v2151
  %2158 = vmatprep.subr.bf16.mxu0 0
  %2159 = vmatpush1.bf16.msra.mxu0 0
  %2160 = vmatprep.subr.bf16.mxu0 0
  %2161 = vmatpush1.bf16.msra.mxu0 0
  %2162 = vmatprep.subr.bf16.mxu0 0
  %2163 = vmatpush1.bf16.msra.mxu0 0
  %2164 = vmatprep.subr.bf16.mxu0 0
  %2165 = vmatpush1.bf16.msra.mxu0 0
  %2166 = vmatprep.subr.bf16.mxu0 0
  %2167 = vmatpush1.bf16.msra.mxu0 0
  %2168 = vmatprep.subr.bf16.mxu0 0
  %2169 = vmatpush1.bf16.msra.mxu0 0
  %2170 = vmatprep.subr.bf16.mxu0 0
  %2171 = vmatpush1.bf16.msra.mxu0 0
  %2172 = vmatprep.subr.bf16.mxu0 0
  %2173 = vmatpush1.bf16.msra.mxu0 0
  %2174 = vmatprep.subr.bf16.mxu0 0
  %2175 = vmatpush1.bf16.msra.mxu0 0
  %2176 = vmatprep.subr.bf16.mxu0 0
  %2177 = vmatpush1.bf16.msra.mxu0 0
  %2178 = vmatprep.subr.bf16.mxu0 0
  %2179 = vmatpush1.bf16.msra.mxu0 0
  %2180 = vmatprep.subr.bf16.mxu0 0
  %2181 = vmatpush1.bf16.msra.mxu0 0
  %2182 = vmatprep.subr.bf16.mxu0 0
  %2183 = vmatpush1.bf16.msra.mxu0 0
  %2184 = vmatprep.subr.bf16.mxu0 0
  %2185 = vmatpush1.bf16.msra.mxu0 0
  %2186 = vmatprep.mubr.bf16.mxu0 0
  %2187 = vmatmul.mubr.bf16.gmra.mrb[0].mxu0 %v1939
  %v2188 = vpop.f32.mrb[0].mxu0
  %v2189 = vadd.f32 %v1920, %v2188
  %v2190 = vpop.f32.mrb[0].mxu0
  %v2191 = vpop.f32.mrb[0].mxu0
  %v2192 = vadd.f32 %v1921, %v2191
  %v2193 = vpop.f32.mrb[0].mxu0
  %2194 = vmatprep.mubr.bf16.mxu0 0
  %2195 = vmatmul.mubr.bf16.gmra.mrb[0].mxu0 %v1942
  %v2196 = vpop.f32.mrb[0].mxu0
  %v2197 = vadd.f32 %v1922, %v2196
  %v2198 = vpop.f32.mrb[0].mxu0
  %v2199 = vpop.f32.mrb[0].mxu0
  %v2200 = vadd.f32 %v1923, %v2199
  %v2201 = vpop.f32.mrb[0].mxu0
  %2202 = vmatprep.mubr.bf16.mxu0 0
  %2203 = vmatmul.mubr.bf16.gmra.mrb[0].mxu0 %v1945
  %v2204 = vpop.f32.mrb[0].mxu0
  %v2205 = vadd.f32 %v1924, %v2204
  %v2206 = vpop.f32.mrb[0].mxu0
  %v2207 = vpop.f32.mrb[0].mxu0
  %v2208 = vadd.f32 %v1925, %v2207
  %v2209 = vpop.f32.mrb[0].mxu0
  %2210 = vdwg.mxu0
  %s2211 = scalar_lea.vmem %s1, 48
  %v2212 = vld [vmem:[%s2211] sm:$0xff]
  %v2213 = vld [vmem:[%s2211 + $0x8] sm:$0xff]
  %v2214 = vld [vmem:[%s2211 + $0x10] sm:$0xff]
  %v2215 = vld [vmem:[%s2211 + $0x18] sm:$0xff]
  %v2216 = vld [vmem:[%s2211 + $0x20] sm:$0xff]
  %v2217 = vld [vmem:[%s2211 + $0x28] sm:$0xff]
  %v2218 = vpack.c.bf16 %v1985, %v1982
  %v2219 = vpack.c.bf16 %v1993, %v1990
  %v2220 = vpack.c.bf16 %v2001, %v1998
  %v2221 = vpack.c.bf16 %v2054, %v2051
  %v2222 = vpack.c.bf16 %v2062, %v2059
  %v2223 = vpack.c.bf16 %v2070, %v2067
  %v2224 = vpack.c.bf16 %v2123, %v2120
  %v2225 = vpack.c.bf16 %v2131, %v2128
  %v2226 = vpack.c.bf16 %v2139, %v2136
  %v2227 = vpack.c.bf16 %v2192, %v2189
  %v2228 = vpack.c.bf16 %v2200, %v2197
  %v2229 = vpack.c.bf16 %v2208, %v2205
  %2233 = vrot.lane.b32.xlu0 %v2218, 120
  %v2234 = vpop.permute.xlu0 %2233
  %2235 = vrot.lane.b32.xlu0 %v2219, 120
  %v2236 = vpop.permute.xlu0 %2235
  %2237 = vrot.lane.b32.xlu0 %v2220, 120
  %v2238 = vpop.permute.xlu0 %2237
  %v2240 = vsel %vm521, %v2218, 0
  %v2243 = vsel %vm521, %v2219, 0
  %v2246 = vsel %vm521, %v2220, 0
  %v2249 = vsel %vm521, %v2234, 0
  %v2252 = vsel %vm521, %v2236, 0
  %v2255 = vsel %vm521, %v2238, 0
  %2257 = vmatprep.subr.bf16.mxu0 0
  %2258 = vmatpush1.bf16.xpose.msra.mxu0 %v2249
  %2259 = vmatprep.subr.bf16.mxu0 0
  %2260 = vmatpush1.bf16.xpose.msra.mxu0 %v2252
  %2261 = vmatprep.subr.bf16.mxu0 0
  %2262 = vmatpush1.bf16.xpose.msra.mxu0 %v2255
  %2263 = vmatprep.subr.bf16.mxu0 0
  %2264 = vmatpush1.bf16.xpose.msra.mxu0 0
  %2265 = vmatprep.subr.bf16.mxu0 0
  %2266 = vmatpush1.bf16.xpose.msra.mxu0 0
  %2267 = vmatprep.subr.bf16.mxu0 0
  %2268 = vmatpush1.bf16.xpose.msra.mxu0 0
  %2269 = vmatprep.subr.bf16.mxu0 0
  %2270 = vmatpush1.bf16.xpose.msra.mxu0 0
  %2271 = vmatprep.subr.bf16.mxu0 0
  %2272 = vmatpush1.bf16.xpose.msra.mxu0 0
  %2273 = vmatprep.subr.bf16.mxu0 0
  %2274 = vmatpush1.bf16.xpose.msra.mxu0 0
  %2275 = vmatprep.subr.bf16.mxu0 0
  %2276 = vmatpush1.bf16.xpose.msra.mxu0 0
  %2277 = vmatprep.subr.bf16.mxu0 0
  %2278 = vmatpush1.bf16.xpose.msra.mxu0 0
  %2279 = vmatprep.subr.bf16.mxu0 0
  %2280 = vmatpush1.bf16.xpose.msra.mxu0 0
  %2281 = vmatprep.subr.bf16.mxu0 0
  %2282 = vmatpush1.bf16.xpose.msra.mxu0 0
  %2283 = vmatprep.subr.bf16.mxu0 0
  %2284 = vmatpush1.bf16.xpose.msra.mxu0 0
  %2285 = vmatprep.subr.bf16.mxu0 0
  %2286 = vmatpush1.bf16.xpose.msra.mxu0 0
  %2287 = vmatprep.subr.bf16.mxu0 0
  %2288 = vmatpush1.bf16.xpose.msra.mxu0 0
  %2289 = vmatprep.mubr.bf16.mxu0 0
  %2290 = vmatmul.mubr.bf16.gmra.mrb[0].mxu0 %v2240
  %v2291 = vpop.f32.mrb[0].mxu0
  %v2292 = vadd.f32 %v2212, %v2291
  %v2293 = vpop.f32.mrb[0].mxu0
  %v2294 = vpop.f32.mrb[0].mxu0
  %v2295 = vadd.f32 %v2213, %v2294
  %v2296 = vpop.f32.mrb[0].mxu0
  %2297 = vmatprep.mubr.bf16.mxu0 0
  %2298 = vmatmul.mubr.bf16.gmra.mrb[0].mxu0 %v2243
  %v2299 = vpop.f32.mrb[0].mxu0
  %v2300 = vadd.f32 %v2214, %v2299
  %v2301 = vpop.f32.mrb[0].mxu0
  %v2302 = vpop.f32.mrb[0].mxu0
  %v2303 = vadd.f32 %v2215, %v2302
  %v2304 = vpop.f32.mrb[0].mxu0
  %2305 = vmatprep.mubr.bf16.mxu0 0
  %2306 = vmatmul.mubr.bf16.gmra.mrb[0].mxu0 %v2246
  %v2307 = vpop.f32.mrb[0].mxu0
  %v2308 = vadd.f32 %v2216, %v2307
  %v2309 = vpop.f32.mrb[0].mxu0
  %v2310 = vpop.f32.mrb[0].mxu0
  %v2311 = vadd.f32 %v2217, %v2310
  %v2312 = vpop.f32.mrb[0].mxu0
  %2313 = vdwg.mxu0
  %2317 = vrot.lane.b32.xlu0 %v2221, 120
  %v2318 = vpop.permute.xlu0 %2317
  %2319 = vrot.lane.b32.xlu0 %v2222, 120
  %v2320 = vpop.permute.xlu0 %2319
  %2321 = vrot.lane.b32.xlu0 %v2223, 120
  %v2322 = vpop.permute.xlu0 %2321
  %v2324 = vsel %vm521, %v2221, 0
  %v2327 = vsel %vm521, %v2222, 0
  %v2330 = vsel %vm521, %v2223, 0
  %v2333 = vsel %vm521, %v2318, 0
  %v2336 = vsel %vm521, %v2320, 0
  %v2339 = vsel %vm521, %v2322, 0
  %2341 = vmatprep.subr.bf16.mxu0 0
  %2342 = vmatpush1.bf16.xpose.msra.mxu0 %v2333
  %2343 = vmatprep.subr.bf16.mxu0 0
  %2344 = vmatpush1.bf16.xpose.msra.mxu0 %v2336
  %2345 = vmatprep.subr.bf16.mxu0 0
  %2346 = vmatpush1.bf16.xpose.msra.mxu0 %v2339
  %2347 = vmatprep.subr.bf16.mxu0 0
  %2348 = vmatpush1.bf16.xpose.msra.mxu0 0
  %2349 = vmatprep.subr.bf16.mxu0 0
  %2350 = vmatpush1.bf16.xpose.msra.mxu0 0
  %2351 = vmatprep.subr.bf16.mxu0 0
  %2352 = vmatpush1.bf16.xpose.msra.mxu0 0
  %2353 = vmatprep.subr.bf16.mxu0 0
  %2354 = vmatpush1.bf16.xpose.msra.mxu0 0
  %2355 = vmatprep.subr.bf16.mxu0 0
  %2356 = vmatpush1.bf16.xpose.msra.mxu0 0
  %2357 = vmatprep.subr.bf16.mxu0 0
  %2358 = vmatpush1.bf16.xpose.msra.mxu0 0
  %2359 = vmatprep.subr.bf16.mxu0 0
  %2360 = vmatpush1.bf16.xpose.msra.mxu0 0
  %2361 = vmatprep.subr.bf16.mxu0 0
  %2362 = vmatpush1.bf16.xpose.msra.mxu0 0
  %2363 = vmatprep.subr.bf16.mxu0 0
  %2364 = vmatpush1.bf16.xpose.msra.mxu0 0
  %2365 = vmatprep.subr.bf16.mxu0 0
  %2366 = vmatpush1.bf16.xpose.msra.mxu0 0
  %2367 = vmatprep.subr.bf16.mxu0 0
  %2368 = vmatpush1.bf16.xpose.msra.mxu0 0
  %2369 = vmatprep.subr.bf16.mxu0 0
  %2370 = vmatpush1.bf16.xpose.msra.mxu0 0
  %2371 = vmatprep.subr.bf16.mxu0 0
  %2372 = vmatpush1.bf16.xpose.msra.mxu0 0
  %2373 = vmatprep.mubr.bf16.mxu0 0
  %2374 = vmatmul.mubr.bf16.gmra.mrb[0].mxu0 %v2324
  %v2375 = vpop.f32.mrb[0].mxu0
  %v2376 = vadd.f32 %v2212, %v2375
  %v2377 = vpop.f32.mrb[0].mxu0
  %v2378 = vpop.f32.mrb[0].mxu0
  %v2379 = vadd.f32 %v2213, %v2378
  %v2380 = vpop.f32.mrb[0].mxu0
  %2381 = vmatprep.mubr.bf16.mxu0 0
  %2382 = vmatmul.mubr.bf16.gmra.mrb[0].mxu0 %v2327
  %v2383 = vpop.f32.mrb[0].mxu0
  %v2384 = vadd.f32 %v2214, %v2383
  %v2385 = vpop.f32.mrb[0].mxu0
  %v2386 = vpop.f32.mrb[0].mxu0
  %v2387 = vadd.f32 %v2215, %v2386
  %v2388 = vpop.f32.mrb[0].mxu0
  %2389 = vmatprep.mubr.bf16.mxu0 0
  %2390 = vmatmul.mubr.bf16.gmra.mrb[0].mxu0 %v2330
  %v2391 = vpop.f32.mrb[0].mxu0
  %v2392 = vadd.f32 %v2216, %v2391
  %v2393 = vpop.f32.mrb[0].mxu0
  %v2394 = vpop.f32.mrb[0].mxu0
  %v2395 = vadd.f32 %v2217, %v2394
  %v2396 = vpop.f32.mrb[0].mxu0
  %2397 = vdwg.mxu0
  %2401 = vrot.lane.b32.xlu0 %v2224, 120
  %v2402 = vpop.permute.xlu0 %2401
  %2403 = vrot.lane.b32.xlu0 %v2225, 120
  %v2404 = vpop.permute.xlu0 %2403
  %2405 = vrot.lane.b32.xlu0 %v2226, 120
  %v2406 = vpop.permute.xlu0 %2405
  %v2408 = vsel %vm521, %v2224, 0
  %v2411 = vsel %vm521, %v2225, 0
  %v2414 = vsel %vm521, %v2226, 0
  %v2417 = vsel %vm521, %v2402, 0
  %v2420 = vsel %vm521, %v2404, 0
  %v2423 = vsel %vm521, %v2406, 0
  %2425 = vmatprep.subr.bf16.mxu0 0
  %2426 = vmatpush1.bf16.xpose.msra.mxu0 %v2417
  %2427 = vmatprep.subr.bf16.mxu0 0
  %2428 = vmatpush1.bf16.xpose.msra.mxu0 %v2420
  %2429 = vmatprep.subr.bf16.mxu0 0
  %2430 = vmatpush1.bf16.xpose.msra.mxu0 %v2423
  %2431 = vmatprep.subr.bf16.mxu0 0
  %2432 = vmatpush1.bf16.xpose.msra.mxu0 0
  %2433 = vmatprep.subr.bf16.mxu0 0
  %2434 = vmatpush1.bf16.xpose.msra.mxu0 0
  %2435 = vmatprep.subr.bf16.mxu0 0
  %2436 = vmatpush1.bf16.xpose.msra.mxu0 0
  %2437 = vmatprep.subr.bf16.mxu0 0
  %2438 = vmatpush1.bf16.xpose.msra.mxu0 0
  %2439 = vmatprep.subr.bf16.mxu0 0
  %2440 = vmatpush1.bf16.xpose.msra.mxu0 0
  %2441 = vmatprep.subr.bf16.mxu0 0
  %2442 = vmatpush1.bf16.xpose.msra.mxu0 0
  %2443 = vmatprep.subr.bf16.mxu0 0
  %2444 = vmatpush1.bf16.xpose.msra.mxu0 0
  %2445 = vmatprep.subr.bf16.mxu0 0
  %2446 = vmatpush1.bf16.xpose.msra.mxu0 0
  %2447 = vmatprep.subr.bf16.mxu0 0
  %2448 = vmatpush1.bf16.xpose.msra.mxu0 0
  %2449 = vmatprep.subr.bf16.mxu0 0
  %2450 = vmatpush1.bf16.xpose.msra.mxu0 0
  %2451 = vmatprep.subr.bf16.mxu0 0
  %2452 = vmatpush1.bf16.xpose.msra.mxu0 0
  %2453 = vmatprep.subr.bf16.mxu0 0
  %2454 = vmatpush1.bf16.xpose.msra.mxu0 0
  %2455 = vmatprep.subr.bf16.mxu0 0
  %2456 = vmatpush1.bf16.xpose.msra.mxu0 0
  %2457 = vmatprep.mubr.bf16.mxu0 0
  %2458 = vmatmul.mubr.bf16.gmra.mrb[0].mxu0 %v2408
  %v2459 = vpop.f32.mrb[0].mxu0
  %v2460 = vadd.f32 %v2212, %v2459
  %v2461 = vpop.f32.mrb[0].mxu0
  %v2462 = vpop.f32.mrb[0].mxu0
  %v2463 = vadd.f32 %v2213, %v2462
  %v2464 = vpop.f32.mrb[0].mxu0
  %2465 = vmatprep.mubr.bf16.mxu0 0
  %2466 = vmatmul.mubr.bf16.gmra.mrb[0].mxu0 %v2411
  %v2467 = vpop.f32.mrb[0].mxu0
  %v2468 = vadd.f32 %v2214, %v2467
  %v2469 = vpop.f32.mrb[0].mxu0
  %v2470 = vpop.f32.mrb[0].mxu0
  %v2471 = vadd.f32 %v2215, %v2470
  %v2472 = vpop.f32.mrb[0].mxu0
  %2473 = vmatprep.mubr.bf16.mxu0 0
  %2474 = vmatmul.mubr.bf16.gmra.mrb[0].mxu0 %v2414
  %v2475 = vpop.f32.mrb[0].mxu0
  %v2476 = vadd.f32 %v2216, %v2475
  %v2477 = vpop.f32.mrb[0].mxu0
  %v2478 = vpop.f32.mrb[0].mxu0
  %v2479 = vadd.f32 %v2217, %v2478
  %v2480 = vpop.f32.mrb[0].mxu0
  %2481 = vdwg.mxu0
  %2485 = vrot.lane.b32.xlu0 %v2227, 120
  %v2486 = vpop.permute.xlu0 %2485
  %2487 = vrot.lane.b32.xlu0 %v2228, 120
  %v2488 = vpop.permute.xlu0 %2487
  %2489 = vrot.lane.b32.xlu0 %v2229, 120
  %v2490 = vpop.permute.xlu0 %2489
  %v2492 = vsel %vm521, %v2227, 0
  %v2495 = vsel %vm521, %v2228, 0
  %v2498 = vsel %vm521, %v2229, 0
  %v2501 = vsel %vm521, %v2486, 0
  %v2504 = vsel %vm521, %v2488, 0
  %v2507 = vsel %vm521, %v2490, 0
  %2509 = vmatprep.subr.bf16.mxu0 0
  %2510 = vmatpush1.bf16.xpose.msra.mxu0 %v2501
  %2511 = vmatprep.subr.bf16.mxu0 0
  %2512 = vmatpush1.bf16.xpose.msra.mxu0 %v2504
  %2513 = vmatprep.subr.bf16.mxu0 0
  %2514 = vmatpush1.bf16.xpose.msra.mxu0 %v2507
  %2515 = vmatprep.subr.bf16.mxu0 0
  %2516 = vmatpush1.bf16.xpose.msra.mxu0 0
  %2517 = vmatprep.subr.bf16.mxu0 0
  %2518 = vmatpush1.bf16.xpose.msra.mxu0 0
  %2519 = vmatprep.subr.bf16.mxu0 0
  %2520 = vmatpush1.bf16.xpose.msra.mxu0 0
  %2521 = vmatprep.subr.bf16.mxu0 0
  %2522 = vmatpush1.bf16.xpose.msra.mxu0 0
  %2523 = vmatprep.subr.bf16.mxu0 0
  %2524 = vmatpush1.bf16.xpose.msra.mxu0 0
  %2525 = vmatprep.subr.bf16.mxu0 0
  %2526 = vmatpush1.bf16.xpose.msra.mxu0 0
  %2527 = vmatprep.subr.bf16.mxu0 0
  %2528 = vmatpush1.bf16.xpose.msra.mxu0 0
  %2529 = vmatprep.subr.bf16.mxu0 0
  %2530 = vmatpush1.bf16.xpose.msra.mxu0 0
  %2531 = vmatprep.subr.bf16.mxu0 0
  %2532 = vmatpush1.bf16.xpose.msra.mxu0 0
  %2533 = vmatprep.subr.bf16.mxu0 0
  %2534 = vmatpush1.bf16.xpose.msra.mxu0 0
  %2535 = vmatprep.subr.bf16.mxu0 0
  %2536 = vmatpush1.bf16.xpose.msra.mxu0 0
  %2537 = vmatprep.subr.bf16.mxu0 0
  %2538 = vmatpush1.bf16.xpose.msra.mxu0 0
  %2539 = vmatprep.subr.bf16.mxu0 0
  %2540 = vmatpush1.bf16.xpose.msra.mxu0 0
  %2541 = vmatprep.mubr.bf16.mxu0 0
  %2542 = vmatmul.mubr.bf16.gmra.mrb[0].mxu0 %v2492
  %v2543 = vpop.f32.mrb[0].mxu0
  %v2544 = vadd.f32 %v2212, %v2543
  %v2545 = vpop.f32.mrb[0].mxu0
  %v2546 = vpop.f32.mrb[0].mxu0
  %v2547 = vadd.f32 %v2213, %v2546
  %v2548 = vpop.f32.mrb[0].mxu0
  %2549 = vmatprep.mubr.bf16.mxu0 0
  %2550 = vmatmul.mubr.bf16.gmra.mrb[0].mxu0 %v2495
  %v2551 = vpop.f32.mrb[0].mxu0
  %v2552 = vadd.f32 %v2214, %v2551
  %v2553 = vpop.f32.mrb[0].mxu0
  %v2554 = vpop.f32.mrb[0].mxu0
  %v2555 = vadd.f32 %v2215, %v2554
  %v2556 = vpop.f32.mrb[0].mxu0
  %2557 = vmatprep.mubr.bf16.mxu0 0
  %2558 = vmatmul.mubr.bf16.gmra.mrb[0].mxu0 %v2498
  %v2559 = vpop.f32.mrb[0].mxu0
  %v2560 = vadd.f32 %v2216, %v2559
  %v2561 = vpop.f32.mrb[0].mxu0
  %v2562 = vpop.f32.mrb[0].mxu0
  %v2563 = vadd.f32 %v2217, %v2562
  %v2564 = vpop.f32.mrb[0].mxu0
  %2565 = vdwg.mxu0
  %v2566 = vsel %vm849, %v2292, -inf
  %2567 = vmax.xlane.f32.xlu0 %v2566
  %v2568 = vpop.xlane.xlu0 %2567
  %v2569 = vsel %vm849, %v2295, -inf
  %2570 = vmax.xlane.f32.xlu0 %v2569
  %v2571 = vpop.xlane.xlu0 %2570
  %v2572 = vsel %vm849, %v2300, -inf
  %2573 = vmax.xlane.f32.xlu0 %v2572
  %v2574 = vpop.xlane.xlu0 %2573
  %v2575 = vsel %vm849, %v2303, -inf
  %2576 = vmax.xlane.f32.xlu0 %v2575
  %v2577 = vpop.xlane.xlu0 %2576
  %v2578 = vsel %vm849, %v2308, -inf
  %2579 = vmax.xlane.f32.xlu0 %v2578
  %v2580 = vpop.xlane.xlu0 %2579
  %v2581 = vsel %vm849, %v2311, -inf
  %2582 = vmax.xlane.f32.xlu0 %v2581
  %v2583 = vpop.xlane.xlu0 %2582
  %v2584 = vsel %vm849, %v2376, -inf
  %2585 = vmax.xlane.f32.xlu0 %v2584
  %v2586 = vpop.xlane.xlu0 %2585
  %v2587 = vsel %vm849, %v2379, -inf
  %2588 = vmax.xlane.f32.xlu0 %v2587
  %v2589 = vpop.xlane.xlu0 %2588
  %v2590 = vsel %vm849, %v2384, -inf
  %2591 = vmax.xlane.f32.xlu0 %v2590
  %v2592 = vpop.xlane.xlu0 %2591
  %v2593 = vsel %vm849, %v2387, -inf
  %2594 = vmax.xlane.f32.xlu0 %v2593
  %v2595 = vpop.xlane.xlu0 %2594
  %v2596 = vsel %vm849, %v2392, -inf
  %2597 = vmax.xlane.f32.xlu0 %v2596
  %v2598 = vpop.xlane.xlu0 %2597
  %v2599 = vsel %vm849, %v2395, -inf
  %2600 = vmax.xlane.f32.xlu0 %v2599
  %v2601 = vpop.xlane.xlu0 %2600
  %v2602 = vsel %vm849, %v2460, -inf
  %2603 = vmax.xlane.f32.xlu0 %v2602
  %v2604 = vpop.xlane.xlu0 %2603
  %v2605 = vsel %vm849, %v2463, -inf
  %2606 = vmax.xlane.f32.xlu0 %v2605
  %v2607 = vpop.xlane.xlu0 %2606
  %v2608 = vsel %vm849, %v2468, -inf
  %2609 = vmax.xlane.f32.xlu0 %v2608
  %v2610 = vpop.xlane.xlu0 %2609
  %v2611 = vsel %vm849, %v2471, -inf
  %2612 = vmax.xlane.f32.xlu0 %v2611
  %v2613 = vpop.xlane.xlu0 %2612
  %v2614 = vsel %vm849, %v2476, -inf
  %2615 = vmax.xlane.f32.xlu0 %v2614
  %v2616 = vpop.xlane.xlu0 %2615
  %v2617 = vsel %vm849, %v2479, -inf
  %2618 = vmax.xlane.f32.xlu0 %v2617
  %v2619 = vpop.xlane.xlu0 %2618
  %v2620 = vsel %vm849, %v2544, -inf
  %2621 = vmax.xlane.f32.xlu0 %v2620
  %v2622 = vpop.xlane.xlu0 %2621
  %v2623 = vsel %vm849, %v2547, -inf
  %2624 = vmax.xlane.f32.xlu0 %v2623
  %v2625 = vpop.xlane.xlu0 %2624
  %v2626 = vsel %vm849, %v2552, -inf
  %2627 = vmax.xlane.f32.xlu0 %v2626
  %v2628 = vpop.xlane.xlu0 %2627
  %v2629 = vsel %vm849, %v2555, -inf
  %2630 = vmax.xlane.f32.xlu0 %v2629
  %v2631 = vpop.xlane.xlu0 %2630
  %v2632 = vsel %vm849, %v2560, -inf
  %2633 = vmax.xlane.f32.xlu0 %v2632
  %v2634 = vpop.xlane.xlu0 %2633
  %v2635 = vsel %vm849, %v2563, -inf
  %2636 = vmax.xlane.f32.xlu0 %v2635
  %v2637 = vpop.xlane.xlu0 %2636
  %v2638 = vsub.f32 %v2292, %v2568
  %v2639 = vsub.f32 %v2295, %v2571
  %v2640 = vsub.f32 %v2300, %v2574
  %v2641 = vsub.f32 %v2303, %v2577
  %v2642 = vsub.f32 %v2308, %v2580
  %v2643 = vsub.f32 %v2311, %v2583
  %v2644 = vsub.f32 %v2376, %v2586
  %v2645 = vsub.f32 %v2379, %v2589
  %v2646 = vsub.f32 %v2384, %v2592
  %v2647 = vsub.f32 %v2387, %v2595
  %v2648 = vsub.f32 %v2392, %v2598
  %v2649 = vsub.f32 %v2395, %v2601
  %v2650 = vsub.f32 %v2460, %v2604
  %v2651 = vsub.f32 %v2463, %v2607
  %v2652 = vsub.f32 %v2468, %v2610
  %v2653 = vsub.f32 %v2471, %v2613
  %v2654 = vsub.f32 %v2476, %v2616
  %v2655 = vsub.f32 %v2479, %v2619
  %v2656 = vsub.f32 %v2544, %v2622
  %v2657 = vsub.f32 %v2547, %v2625
  %v2658 = vsub.f32 %v2552, %v2628
  %v2659 = vsub.f32 %v2555, %v2631
  %v2660 = vsub.f32 %v2560, %v2634
  %v2661 = vsub.f32 %v2563, %v2637
  %v2662 = vmul.f32 %v2638, 1.442695
  %v2663 = vpow.pop %v2662
  %v2664 = vmul.f32 %v2639, 1.442695
  %v2665 = vpow.pop %v2664
  %v2666 = vmul.f32 %v2640, 1.442695
  %v2667 = vpow.pop %v2666
  %v2668 = vmul.f32 %v2641, 1.442695
  %v2669 = vpow.pop %v2668
  %v2670 = vmul.f32 %v2642, 1.442695
  %v2671 = vpow.pop %v2670
  %v2672 = vmul.f32 %v2643, 1.442695
  %v2673 = vpow.pop %v2672
  %v2674 = vmul.f32 %v2644, 1.442695
  %v2675 = vpow.pop %v2674
  %v2676 = vmul.f32 %v2645, 1.442695
  %v2677 = vpow.pop %v2676
  %v2678 = vmul.f32 %v2646, 1.442695
  %v2679 = vpow.pop %v2678
  %v2680 = vmul.f32 %v2647, 1.442695
  %v2681 = vpow.pop %v2680
  %v2682 = vmul.f32 %v2648, 1.442695
  %v2683 = vpow.pop %v2682
  %v2684 = vmul.f32 %v2649, 1.442695
  %v2685 = vpow.pop %v2684
  %v2686 = vmul.f32 %v2650, 1.442695
  %v2687 = vpow.pop %v2686
  %v2688 = vmul.f32 %v2651, 1.442695
  %v2689 = vpow.pop %v2688
  %v2690 = vmul.f32 %v2652, 1.442695
  %v2691 = vpow.pop %v2690
  %v2692 = vmul.f32 %v2653, 1.442695
  %v2693 = vpow.pop %v2692
  %v2694 = vmul.f32 %v2654, 1.442695
  %v2695 = vpow.pop %v2694
  %v2696 = vmul.f32 %v2655, 1.442695
  %v2697 = vpow.pop %v2696
  %v2698 = vmul.f32 %v2656, 1.442695
  %v2699 = vpow.pop %v2698
  %v2700 = vmul.f32 %v2657, 1.442695
  %v2701 = vpow.pop %v2700
  %v2702 = vmul.f32 %v2658, 1.442695
  %v2703 = vpow.pop %v2702
  %v2704 = vmul.f32 %v2659, 1.442695
  %v2705 = vpow.pop %v2704
  %v2706 = vmul.f32 %v2660, 1.442695
  %v2707 = vpow.pop %v2706
  %v2708 = vmul.f32 %v2661, 1.442695
  %v2709 = vpow.pop %v2708
  %v2710 = vsel %vm849, %v2663, 0.0
  %2711 = vadd.xlane.f32.xlu0 %v2710
  %v2712 = vpop.xlane.xlu0 %2711
  %v2713 = vsel %vm849, %v2665, 0.0
  %2714 = vadd.xlane.f32.xlu0 %v2713
  %v2715 = vpop.xlane.xlu0 %2714
  %v2716 = vsel %vm849, %v2667, 0.0
  %2717 = vadd.xlane.f32.xlu0 %v2716
  %v2718 = vpop.xlane.xlu0 %2717
  %v2719 = vsel %vm849, %v2669, 0.0
  %2720 = vadd.xlane.f32.xlu0 %v2719
  %v2721 = vpop.xlane.xlu0 %2720
  %v2722 = vsel %vm849, %v2671, 0.0
  %2723 = vadd.xlane.f32.xlu0 %v2722
  %v2724 = vpop.xlane.xlu0 %2723
  %v2725 = vsel %vm849, %v2673, 0.0
  %2726 = vadd.xlane.f32.xlu0 %v2725
  %v2727 = vpop.xlane.xlu0 %2726
  %v2728 = vsel %vm849, %v2675, 0.0
  %2729 = vadd.xlane.f32.xlu0 %v2728
  %v2730 = vpop.xlane.xlu0 %2729
  %v2731 = vsel %vm849, %v2677, 0.0
  %2732 = vadd.xlane.f32.xlu0 %v2731
  %v2733 = vpop.xlane.xlu0 %2732
  %v2734 = vsel %vm849, %v2679, 0.0
  %2735 = vadd.xlane.f32.xlu0 %v2734
  %v2736 = vpop.xlane.xlu0 %2735
  %v2737 = vsel %vm849, %v2681, 0.0
  %2738 = vadd.xlane.f32.xlu0 %v2737
  %v2739 = vpop.xlane.xlu0 %2738
  %v2740 = vsel %vm849, %v2683, 0.0
  %2741 = vadd.xlane.f32.xlu0 %v2740
  %v2742 = vpop.xlane.xlu0 %2741
  %v2743 = vsel %vm849, %v2685, 0.0
  %2744 = vadd.xlane.f32.xlu0 %v2743
  %v2745 = vpop.xlane.xlu0 %2744
  %v2746 = vsel %vm849, %v2687, 0.0
  %2747 = vadd.xlane.f32.xlu0 %v2746
  %v2748 = vpop.xlane.xlu0 %2747
  %v2749 = vsel %vm849, %v2689, 0.0
  %2750 = vadd.xlane.f32.xlu0 %v2749
  %v2751 = vpop.xlane.xlu0 %2750
  %v2752 = vsel %vm849, %v2691, 0.0
  %2753 = vadd.xlane.f32.xlu0 %v2752
  %v2754 = vpop.xlane.xlu0 %2753
  %v2755 = vsel %vm849, %v2693, 0.0
  %2756 = vadd.xlane.f32.xlu0 %v2755
  %v2757 = vpop.xlane.xlu0 %2756
  %v2758 = vsel %vm849, %v2695, 0.0
  %2759 = vadd.xlane.f32.xlu0 %v2758
  %v2760 = vpop.xlane.xlu0 %2759
  %v2761 = vsel %vm849, %v2697, 0.0
  %2762 = vadd.xlane.f32.xlu0 %v2761
  %v2763 = vpop.xlane.xlu0 %2762
  %v2764 = vsel %vm849, %v2699, 0.0
  %2765 = vadd.xlane.f32.xlu0 %v2764
  %v2766 = vpop.xlane.xlu0 %2765
  %v2767 = vsel %vm849, %v2701, 0.0
  %2768 = vadd.xlane.f32.xlu0 %v2767
  %v2769 = vpop.xlane.xlu0 %2768
  %v2770 = vsel %vm849, %v2703, 0.0
  %2771 = vadd.xlane.f32.xlu0 %v2770
  %v2772 = vpop.xlane.xlu0 %2771
  %v2773 = vsel %vm849, %v2705, 0.0
  %2774 = vadd.xlane.f32.xlu0 %v2773
  %v2775 = vpop.xlane.xlu0 %2774
  %v2776 = vsel %vm849, %v2707, 0.0
  %2777 = vadd.xlane.f32.xlu0 %v2776
  %v2778 = vpop.xlane.xlu0 %2777
  %v2779 = vsel %vm849, %v2709, 0.0
  %2780 = vadd.xlane.f32.xlu0 %v2779
  %v2781 = vpop.xlane.xlu0 %2780
  %v2782 = vrcp.pop %v2712
  %v2783 = vmul.f32 %v2663, %v2782
  %v2784 = vrcp.pop %v2715
  %v2785 = vmul.f32 %v2665, %v2784
  %v2786 = vrcp.pop %v2718
  %v2787 = vmul.f32 %v2667, %v2786
  %v2788 = vrcp.pop %v2721
  %v2789 = vmul.f32 %v2669, %v2788
  %v2790 = vrcp.pop %v2724
  %v2791 = vmul.f32 %v2671, %v2790
  %v2792 = vrcp.pop %v2727
  %v2793 = vmul.f32 %v2673, %v2792
  %v2794 = vrcp.pop %v2730
  %v2795 = vmul.f32 %v2675, %v2794
  %v2796 = vrcp.pop %v2733
  %v2797 = vmul.f32 %v2677, %v2796
  %v2798 = vrcp.pop %v2736
  %v2799 = vmul.f32 %v2679, %v2798
  %v2800 = vrcp.pop %v2739
  %v2801 = vmul.f32 %v2681, %v2800
  %v2802 = vrcp.pop %v2742
  %v2803 = vmul.f32 %v2683, %v2802
  %v2804 = vrcp.pop %v2745
  %v2805 = vmul.f32 %v2685, %v2804
  %v2806 = vrcp.pop %v2748
  %v2807 = vmul.f32 %v2687, %v2806
  %v2808 = vrcp.pop %v2751
  %v2809 = vmul.f32 %v2689, %v2808
  %v2810 = vrcp.pop %v2754
  %v2811 = vmul.f32 %v2691, %v2810
  %v2812 = vrcp.pop %v2757
  %v2813 = vmul.f32 %v2693, %v2812
  %v2814 = vrcp.pop %v2760
  %v2815 = vmul.f32 %v2695, %v2814
  %v2816 = vrcp.pop %v2763
  %v2817 = vmul.f32 %v2697, %v2816
  %v2818 = vrcp.pop %v2766
  %v2819 = vmul.f32 %v2699, %v2818
  %v2820 = vrcp.pop %v2769
  %v2821 = vmul.f32 %v2701, %v2820
  %v2822 = vrcp.pop %v2772
  %v2823 = vmul.f32 %v2703, %v2822
  %v2824 = vrcp.pop %v2775
  %v2825 = vmul.f32 %v2705, %v2824
  %v2826 = vrcp.pop %v2778
  %v2827 = vmul.f32 %v2707, %v2826
  %v2828 = vrcp.pop %v2781
  %v2829 = vmul.f32 %v2709, %v2828
  %v2830 = vpack.c.bf16 %v2785, %v2783
  %v2831 = vpack.c.bf16 %v2789, %v2787
  %v2832 = vpack.c.bf16 %v2793, %v2791
  %v2833 = vpack.c.bf16 %v2797, %v2795
  %v2834 = vpack.c.bf16 %v2801, %v2799
  %v2835 = vpack.c.bf16 %v2805, %v2803
  %v2836 = vpack.c.bf16 %v2809, %v2807
  %v2837 = vpack.c.bf16 %v2813, %v2811
  %v2838 = vpack.c.bf16 %v2817, %v2815
  %v2839 = vpack.c.bf16 %v2821, %v2819
  %v2840 = vpack.c.bf16 %v2825, %v2823
  %v2841 = vpack.c.bf16 %v2829, %v2827
  %2842 = vrot.lane.b32.xlu0 %v2218, 112
  %v2843 = vpop.permute.xlu0 %2842
  %2844 = vrot.lane.b32.xlu0 %v2219, 112
  %v2845 = vpop.permute.xlu0 %2844
  %2846 = vrot.lane.b32.xlu0 %v2220, 112
  %v2847 = vpop.permute.xlu0 %2846
  %v2852 = vsel %vm849, %v2830, 0
  %v2855 = vsel %vm849, %v2831, 0
  %v2858 = vsel %vm849, %v2832, 0
  %2860 = vmatprep.subr.bf16.mxu0 0
  %2861 = vmatpush1.bf16.msra.mxu0 %v2843
  %2862 = vmatprep.subr.bf16.mxu0 0
  %2863 = vmatpush1.bf16.msra.mxu0 %v2845
  %2864 = vmatprep.subr.bf16.mxu0 0
  %2865 = vmatpush1.bf16.msra.mxu0 %v2847
  %2866 = vmatprep.subr.bf16.mxu0 0
  %2867 = vmatpush1.bf16.msra.mxu0 0
  %2868 = vmatprep.subr.bf16.mxu0 0
  %2869 = vmatpush1.bf16.msra.mxu0 0
  %2870 = vmatprep.subr.bf16.mxu0 0
  %2871 = vmatpush1.bf16.msra.mxu0 0
  %2872 = vmatprep.subr.bf16.mxu0 0
  %2873 = vmatpush1.bf16.msra.mxu0 0
  %2874 = vmatprep.subr.bf16.mxu0 0
  %2875 = vmatpush1.bf16.msra.mxu0 0
  %2876 = vmatprep.subr.bf16.mxu0 0
  %2877 = vmatpush1.bf16.msra.mxu0 0
  %2878 = vmatprep.subr.bf16.mxu0 0
  %2879 = vmatpush1.bf16.msra.mxu0 0
  %2880 = vmatprep.subr.bf16.mxu0 0
  %2881 = vmatpush1.bf16.msra.mxu0 0
  %2882 = vmatprep.subr.bf16.mxu0 0
  %2883 = vmatpush1.bf16.msra.mxu0 0
  %2884 = vmatprep.subr.bf16.mxu0 0
  %2885 = vmatpush1.bf16.msra.mxu0 0
  %2886 = vmatprep.subr.bf16.mxu0 0
  %2887 = vmatpush1.bf16.msra.mxu0 0
  %2888 = vmatprep.subr.bf16.mxu0 0
  %2889 = vmatpush1.bf16.msra.mxu0 0
  %2890 = vmatprep.subr.bf16.mxu0 0
  %2891 = vmatpush1.bf16.msra.mxu0 0
  %2892 = vmatprep.mubr.bf16.mxu0 0
  %2893 = vmatmul.mubr.bf16.gmra.mrb[0].mxu0 %v2852
  %v2894 = vpop.f32.mrb[0].mxu0
  %v2895 = vadd.f32 0.0, %v2894
  %v2896 = vpop.f32.mrb[0].mxu0
  %v2897 = vpop.f32.mrb[0].mxu0
  %v2898 = vadd.f32 0.0, %v2897
  %v2899 = vpop.f32.mrb[0].mxu0
  %2900 = vmatprep.mubr.bf16.mxu0 0
  %2901 = vmatmul.mubr.bf16.gmra.mrb[0].mxu0 %v2855
  %v2902 = vpop.f32.mrb[0].mxu0
  %v2903 = vadd.f32 0.0, %v2902
  %v2904 = vpop.f32.mrb[0].mxu0
  %v2905 = vpop.f32.mrb[0].mxu0
  %v2906 = vadd.f32 0.0, %v2905
  %v2907 = vpop.f32.mrb[0].mxu0
  %2908 = vmatprep.mubr.bf16.mxu0 0
  %2909 = vmatmul.mubr.bf16.gmra.mrb[0].mxu0 %v2858
  %v2910 = vpop.f32.mrb[0].mxu0
  %v2911 = vadd.f32 0.0, %v2910
  %v2912 = vpop.f32.mrb[0].mxu0
  %v2913 = vpop.f32.mrb[0].mxu0
  %v2914 = vadd.f32 0.0, %v2913
  %v2915 = vpop.f32.mrb[0].mxu0
  %2916 = vdwg.mxu0
  %2917 = vrot.lane.b32.xlu0 %v2221, 112
  %v2918 = vpop.permute.xlu0 %2917
  %2919 = vrot.lane.b32.xlu0 %v2222, 112
  %v2920 = vpop.permute.xlu0 %2919
  %2921 = vrot.lane.b32.xlu0 %v2223, 112
  %v2922 = vpop.permute.xlu0 %2921
  %v2927 = vsel %vm849, %v2833, 0
  %v2930 = vsel %vm849, %v2834, 0
  %v2933 = vsel %vm849, %v2835, 0
  %2935 = vmatprep.subr.bf16.mxu0 0
  %2936 = vmatpush1.bf16.msra.mxu0 %v2918
  %2937 = vmatprep.subr.bf16.mxu0 0
  %2938 = vmatpush1.bf16.msra.mxu0 %v2920
  %2939 = vmatprep.subr.bf16.mxu0 0
  %2940 = vmatpush1.bf16.msra.mxu0 %v2922
  %2941 = vmatprep.subr.bf16.mxu0 0
  %2942 = vmatpush1.bf16.msra.mxu0 0
  %2943 = vmatprep.subr.bf16.mxu0 0
  %2944 = vmatpush1.bf16.msra.mxu0 0
  %2945 = vmatprep.subr.bf16.mxu0 0
  %2946 = vmatpush1.bf16.msra.mxu0 0
  %2947 = vmatprep.subr.bf16.mxu0 0
  %2948 = vmatpush1.bf16.msra.mxu0 0
  %2949 = vmatprep.subr.bf16.mxu0 0
  %2950 = vmatpush1.bf16.msra.mxu0 0
  %2951 = vmatprep.subr.bf16.mxu0 0
  %2952 = vmatpush1.bf16.msra.mxu0 0
  %2953 = vmatprep.subr.bf16.mxu0 0
  %2954 = vmatpush1.bf16.msra.mxu0 0
  %2955 = vmatprep.subr.bf16.mxu0 0
  %2956 = vmatpush1.bf16.msra.mxu0 0
  %2957 = vmatprep.subr.bf16.mxu0 0
  %2958 = vmatpush1.bf16.msra.mxu0 0
  %2959 = vmatprep.subr.bf16.mxu0 0
  %2960 = vmatpush1.bf16.msra.mxu0 0
  %2961 = vmatprep.subr.bf16.mxu0 0
  %2962 = vmatpush1.bf16.msra.mxu0 0
  %2963 = vmatprep.subr.bf16.mxu0 0
  %2964 = vmatpush1.bf16.msra.mxu0 0
  %2965 = vmatprep.subr.bf16.mxu0 0
  %2966 = vmatpush1.bf16.msra.mxu0 0
  %2967 = vmatprep.mubr.bf16.mxu0 0
  %2968 = vmatmul.mubr.bf16.gmra.mrb[0].mxu0 %v2927
  %v2969 = vpop.f32.mrb[0].mxu0
  %v2970 = vadd.f32 0.0, %v2969
  %v2971 = vpop.f32.mrb[0].mxu0
  %v2972 = vpop.f32.mrb[0].mxu0
  %v2973 = vadd.f32 0.0, %v2972
  %v2974 = vpop.f32.mrb[0].mxu0
  %2975 = vmatprep.mubr.bf16.mxu0 0
  %2976 = vmatmul.mubr.bf16.gmra.mrb[0].mxu0 %v2930
  %v2977 = vpop.f32.mrb[0].mxu0
  %v2978 = vadd.f32 0.0, %v2977
  %v2979 = vpop.f32.mrb[0].mxu0
  %v2980 = vpop.f32.mrb[0].mxu0
  %v2981 = vadd.f32 0.0, %v2980
  %v2982 = vpop.f32.mrb[0].mxu0
  %2983 = vmatprep.mubr.bf16.mxu0 0
  %2984 = vmatmul.mubr.bf16.gmra.mrb[0].mxu0 %v2933
  %v2985 = vpop.f32.mrb[0].mxu0
  %v2986 = vadd.f32 0.0, %v2985
  %v2987 = vpop.f32.mrb[0].mxu0
  %v2988 = vpop.f32.mrb[0].mxu0
  %v2989 = vadd.f32 0.0, %v2988
  %v2990 = vpop.f32.mrb[0].mxu0
  %2991 = vdwg.mxu0
  %2992 = vrot.lane.b32.xlu0 %v2224, 112
  %v2993 = vpop.permute.xlu0 %2992
  %2994 = vrot.lane.b32.xlu0 %v2225, 112
  %v2995 = vpop.permute.xlu0 %2994
  %2996 = vrot.lane.b32.xlu0 %v2226, 112
  %v2997 = vpop.permute.xlu0 %2996
  %v3002 = vsel %vm849, %v2836, 0
  %v3005 = vsel %vm849, %v2837, 0
  %v3008 = vsel %vm849, %v2838, 0
  %3010 = vmatprep.subr.bf16.mxu0 0
  %3011 = vmatpush1.bf16.msra.mxu0 %v2993
  %3012 = vmatprep.subr.bf16.mxu0 0
  %3013 = vmatpush1.bf16.msra.mxu0 %v2995
  %3014 = vmatprep.subr.bf16.mxu0 0
  %3015 = vmatpush1.bf16.msra.mxu0 %v2997
  %3016 = vmatprep.subr.bf16.mxu0 0
  %3017 = vmatpush1.bf16.msra.mxu0 0
  %3018 = vmatprep.subr.bf16.mxu0 0
  %3019 = vmatpush1.bf16.msra.mxu0 0
  %3020 = vmatprep.subr.bf16.mxu0 0
  %3021 = vmatpush1.bf16.msra.mxu0 0
  %3022 = vmatprep.subr.bf16.mxu0 0
  %3023 = vmatpush1.bf16.msra.mxu0 0
  %3024 = vmatprep.subr.bf16.mxu0 0
  %3025 = vmatpush1.bf16.msra.mxu0 0
  %3026 = vmatprep.subr.bf16.mxu0 0
  %3027 = vmatpush1.bf16.msra.mxu0 0
  %3028 = vmatprep.subr.bf16.mxu0 0
  %3029 = vmatpush1.bf16.msra.mxu0 0
  %3030 = vmatprep.subr.bf16.mxu0 0
  %3031 = vmatpush1.bf16.msra.mxu0 0
  %3032 = vmatprep.subr.bf16.mxu0 0
  %3033 = vmatpush1.bf16.msra.mxu0 0
  %3034 = vmatprep.subr.bf16.mxu0 0
  %3035 = vmatpush1.bf16.msra.mxu0 0
  %3036 = vmatprep.subr.bf16.mxu0 0
  %3037 = vmatpush1.bf16.msra.mxu0 0
  %3038 = vmatprep.subr.bf16.mxu0 0
  %3039 = vmatpush1.bf16.msra.mxu0 0
  %3040 = vmatprep.subr.bf16.mxu0 0
  %3041 = vmatpush1.bf16.msra.mxu0 0
  %3042 = vmatprep.mubr.bf16.mxu0 0
  %3043 = vmatmul.mubr.bf16.gmra.mrb[0].mxu0 %v3002
  %v3044 = vpop.f32.mrb[0].mxu0
  %v3045 = vadd.f32 0.0, %v3044
  %v3046 = vpop.f32.mrb[0].mxu0
  %v3047 = vpop.f32.mrb[0].mxu0
  %v3048 = vadd.f32 0.0, %v3047
  %v3049 = vpop.f32.mrb[0].mxu0
  %3050 = vmatprep.mubr.bf16.mxu0 0
  %3051 = vmatmul.mubr.bf16.gmra.mrb[0].mxu0 %v3005
  %v3052 = vpop.f32.mrb[0].mxu0
  %v3053 = vadd.f32 0.0, %v3052
  %v3054 = vpop.f32.mrb[0].mxu0
  %v3055 = vpop.f32.mrb[0].mxu0
  %v3056 = vadd.f32 0.0, %v3055
  %v3057 = vpop.f32.mrb[0].mxu0
  %3058 = vmatprep.mubr.bf16.mxu0 0
  %3059 = vmatmul.mubr.bf16.gmra.mrb[0].mxu0 %v3008
  %v3060 = vpop.f32.mrb[0].mxu0
  %v3061 = vadd.f32 0.0, %v3060
  %v3062 = vpop.f32.mrb[0].mxu0
  %v3063 = vpop.f32.mrb[0].mxu0
  %v3064 = vadd.f32 0.0, %v3063
  %v3065 = vpop.f32.mrb[0].mxu0
  %3066 = vdwg.mxu0
  %3067 = vrot.lane.b32.xlu0 %v2227, 112
  %v3068 = vpop.permute.xlu0 %3067
  %3069 = vrot.lane.b32.xlu0 %v2228, 112
  %v3070 = vpop.permute.xlu0 %3069
  %3071 = vrot.lane.b32.xlu0 %v2229, 112
  %v3072 = vpop.permute.xlu0 %3071
  %v3077 = vsel %vm849, %v2839, 0
  %v3080 = vsel %vm849, %v2840, 0
  %v3083 = vsel %vm849, %v2841, 0
  %3085 = vmatprep.subr.bf16.mxu0 0
  %3086 = vmatpush1.bf16.msra.mxu0 %v3068
  %3087 = vmatprep.subr.bf16.mxu0 0
  %3088 = vmatpush1.bf16.msra.mxu0 %v3070
  %3089 = vmatprep.subr.bf16.mxu0 0
  %3090 = vmatpush1.bf16.msra.mxu0 %v3072
  %3091 = vmatprep.subr.bf16.mxu0 0
  %3092 = vmatpush1.bf16.msra.mxu0 0
  %3093 = vmatprep.subr.bf16.mxu0 0
  %3094 = vmatpush1.bf16.msra.mxu0 0
  %3095 = vmatprep.subr.bf16.mxu0 0
  %3096 = vmatpush1.bf16.msra.mxu0 0
  %3097 = vmatprep.subr.bf16.mxu0 0
  %3098 = vmatpush1.bf16.msra.mxu0 0
  %3099 = vmatprep.subr.bf16.mxu0 0
  %3100 = vmatpush1.bf16.msra.mxu0 0
  %3101 = vmatprep.subr.bf16.mxu0 0
  %3102 = vmatpush1.bf16.msra.mxu0 0
  %3103 = vmatprep.subr.bf16.mxu0 0
  %3104 = vmatpush1.bf16.msra.mxu0 0
  %3105 = vmatprep.subr.bf16.mxu0 0
  %3106 = vmatpush1.bf16.msra.mxu0 0
  %3107 = vmatprep.subr.bf16.mxu0 0
  %3108 = vmatpush1.bf16.msra.mxu0 0
  %3109 = vmatprep.subr.bf16.mxu0 0
  %3110 = vmatpush1.bf16.msra.mxu0 0
  %3111 = vmatprep.subr.bf16.mxu0 0
  %3112 = vmatpush1.bf16.msra.mxu0 0
  %3113 = vmatprep.subr.bf16.mxu0 0
  %3114 = vmatpush1.bf16.msra.mxu0 0
  %3115 = vmatprep.subr.bf16.mxu0 0
  %3116 = vmatpush1.bf16.msra.mxu0 0
  %3117 = vmatprep.mubr.bf16.mxu0 0
  %3118 = vmatmul.mubr.bf16.gmra.mrb[0].mxu0 %v3077
  %v3119 = vpop.f32.mrb[0].mxu0
  %v3120 = vadd.f32 0.0, %v3119
  %v3121 = vpop.f32.mrb[0].mxu0
  %v3122 = vpop.f32.mrb[0].mxu0
  %v3123 = vadd.f32 0.0, %v3122
  %v3124 = vpop.f32.mrb[0].mxu0
  %3125 = vmatprep.mubr.bf16.mxu0 0
  %3126 = vmatmul.mubr.bf16.gmra.mrb[0].mxu0 %v3080
  %v3127 = vpop.f32.mrb[0].mxu0
  %v3128 = vadd.f32 0.0, %v3127
  %v3129 = vpop.f32.mrb[0].mxu0
  %v3130 = vpop.f32.mrb[0].mxu0
  %v3131 = vadd.f32 0.0, %v3130
  %v3132 = vpop.f32.mrb[0].mxu0
  %3133 = vmatprep.mubr.bf16.mxu0 0
  %3134 = vmatmul.mubr.bf16.gmra.mrb[0].mxu0 %v3083
  %v3135 = vpop.f32.mrb[0].mxu0
  %v3136 = vadd.f32 0.0, %v3135
  %v3137 = vpop.f32.mrb[0].mxu0
  %v3138 = vpop.f32.mrb[0].mxu0
  %v3139 = vadd.f32 0.0, %v3138
  %v3140 = vpop.f32.mrb[0].mxu0
  %3141 = vdwg.mxu0
  %v3142 = vpack.c.bf16 %v2898, %v2895
  %v3143 = vpack.c.bf16 %v2906, %v2903
  %v3144 = vpack.c.bf16 %v2914, %v2911
  %v3145 = vpack.c.bf16 %v2973, %v2970
  %v3146 = vpack.c.bf16 %v2981, %v2978
  %v3147 = vpack.c.bf16 %v2989, %v2986
  %v3148 = vpack.c.bf16 %v3048, %v3045
  %v3149 = vpack.c.bf16 %v3056, %v3053
  %v3150 = vpack.c.bf16 %v3064, %v3061
  %v3151 = vpack.c.bf16 %v3123, %v3120
  %v3152 = vpack.c.bf16 %v3131, %v3128
  %v3153 = vpack.c.bf16 %v3139, %v3136
  %s3154 = scalar_lea.vmem %s6, 16
  %v3155 = vld [vmem:[%s3154] sm:$0xf]
  %v3156 = vld [vmem:[%s3154 + $0x4] sm:$0xf]
  %v3157 = vld [vmem:[%s3154 + $0x8] sm:$0xf]
  %v3158 = vld [vmem:[%s3154 + $0xc] sm:$0xf]
  %v3160 = vsel %vm521, %v3142, 0
  %v3163 = vsel %vm521, %v3143, 0
  %v3166 = vsel %vm521, %v3144, 0
  %v3169 = vsel %vm1451, %v3155, 0
  %3171 = vmatprep.subr.bf16.mxu0 0
  %3172 = vmatpush1.bf16.msra.mxu0 %v3169
  %3173 = vmatprep.subr.bf16.mxu0 0
  %3174 = vmatpush1.bf16.msra.mxu0 0
  %3175 = vmatprep.subr.bf16.mxu0 0
  %3176 = vmatpush1.bf16.msra.mxu0 0
  %3177 = vmatprep.subr.bf16.mxu0 0
  %3178 = vmatpush1.bf16.msra.mxu0 0
  %3179 = vmatprep.subr.bf16.mxu0 0
  %3180 = vmatpush1.bf16.msra.mxu0 0
  %3181 = vmatprep.subr.bf16.mxu0 0
  %3182 = vmatpush1.bf16.msra.mxu0 0
  %3183 = vmatprep.subr.bf16.mxu0 0
  %3184 = vmatpush1.bf16.msra.mxu0 0
  %3185 = vmatprep.subr.bf16.mxu0 0
  %3186 = vmatpush1.bf16.msra.mxu0 0
  %3187 = vmatprep.subr.bf16.mxu0 0
  %3188 = vmatpush1.bf16.msra.mxu0 0
  %3189 = vmatprep.subr.bf16.mxu0 0
  %3190 = vmatpush1.bf16.msra.mxu0 0
  %3191 = vmatprep.subr.bf16.mxu0 0
  %3192 = vmatpush1.bf16.msra.mxu0 0
  %3193 = vmatprep.subr.bf16.mxu0 0
  %3194 = vmatpush1.bf16.msra.mxu0 0
  %3195 = vmatprep.subr.bf16.mxu0 0
  %3196 = vmatpush1.bf16.msra.mxu0 0
  %3197 = vmatprep.subr.bf16.mxu0 0
  %3198 = vmatpush1.bf16.msra.mxu0 0
  %3199 = vmatprep.subr.bf16.mxu0 0
  %3200 = vmatpush1.bf16.msra.mxu0 0
  %3201 = vmatprep.subr.bf16.mxu0 0
  %3202 = vmatpush1.bf16.msra.mxu0 0
  %3203 = vmatprep.mubr.bf16.mxu0 0
  %3204 = vmatmul.mubr.bf16.gmra.mrb[0].mxu0 %v3160
  %v3205 = vpop.f32.mrb[0].mxu0
  %v3206 = vadd.f32 0.0, %v3205
  %v3207 = vpop.f32.mrb[0].mxu0
  %v3208 = vpop.f32.mrb[0].mxu0
  %v3209 = vadd.f32 0.0, %v3208
  %v3210 = vpop.f32.mrb[0].mxu0
  %3211 = vmatprep.mubr.bf16.mxu0 0
  %3212 = vmatmul.mubr.bf16.gmra.mrb[0].mxu0 %v3163
  %v3213 = vpop.f32.mrb[0].mxu0
  %v3214 = vadd.f32 0.0, %v3213
  %v3215 = vpop.f32.mrb[0].mxu0
  %v3216 = vpop.f32.mrb[0].mxu0
  %v3217 = vadd.f32 0.0, %v3216
  %v3218 = vpop.f32.mrb[0].mxu0
  %3219 = vmatprep.mubr.bf16.mxu0 0
  %3220 = vmatmul.mubr.bf16.gmra.mrb[0].mxu0 %v3166
  %v3221 = vpop.f32.mrb[0].mxu0
  %v3222 = vadd.f32 0.0, %v3221
  %v3223 = vpop.f32.mrb[0].mxu0
  %v3224 = vpop.f32.mrb[0].mxu0
  %v3225 = vadd.f32 0.0, %v3224
  %v3226 = vpop.f32.mrb[0].mxu0
  %3227 = vdwg.mxu0
  %v3229 = vsel %vm521, %v3145, 0
  %v3232 = vsel %vm521, %v3146, 0
  %v3235 = vsel %vm521, %v3147, 0
  %v3238 = vsel %vm1451, %v3156, 0
  %3240 = vmatprep.subr.bf16.mxu0 0
  %3241 = vmatpush1.bf16.msra.mxu0 %v3238
  %3242 = vmatprep.subr.bf16.mxu0 0
  %3243 = vmatpush1.bf16.msra.mxu0 0
  %3244 = vmatprep.subr.bf16.mxu0 0
  %3245 = vmatpush1.bf16.msra.mxu0 0
  %3246 = vmatprep.subr.bf16.mxu0 0
  %3247 = vmatpush1.bf16.msra.mxu0 0
  %3248 = vmatprep.subr.bf16.mxu0 0
  %3249 = vmatpush1.bf16.msra.mxu0 0
  %3250 = vmatprep.subr.bf16.mxu0 0
  %3251 = vmatpush1.bf16.msra.mxu0 0
  %3252 = vmatprep.subr.bf16.mxu0 0
  %3253 = vmatpush1.bf16.msra.mxu0 0
  %3254 = vmatprep.subr.bf16.mxu0 0
  %3255 = vmatpush1.bf16.msra.mxu0 0
  %3256 = vmatprep.subr.bf16.mxu0 0
  %3257 = vmatpush1.bf16.msra.mxu0 0
  %3258 = vmatprep.subr.bf16.mxu0 0
  %3259 = vmatpush1.bf16.msra.mxu0 0
  %3260 = vmatprep.subr.bf16.mxu0 0
  %3261 = vmatpush1.bf16.msra.mxu0 0
  %3262 = vmatprep.subr.bf16.mxu0 0
  %3263 = vmatpush1.bf16.msra.mxu0 0
  %3264 = vmatprep.subr.bf16.mxu0 0
  %3265 = vmatpush1.bf16.msra.mxu0 0
  %3266 = vmatprep.subr.bf16.mxu0 0
  %3267 = vmatpush1.bf16.msra.mxu0 0
  %3268 = vmatprep.subr.bf16.mxu0 0
  %3269 = vmatpush1.bf16.msra.mxu0 0
  %3270 = vmatprep.subr.bf16.mxu0 0
  %3271 = vmatpush1.bf16.msra.mxu0 0
  %3272 = vmatprep.mubr.bf16.mxu0 0
  %3273 = vmatmul.mubr.bf16.gmra.mrb[0].mxu0 %v3229
  %v3274 = vpop.f32.mrb[0].mxu0
  %v3275 = vadd.f32 0.0, %v3274
  %v3276 = vpop.f32.mrb[0].mxu0
  %v3277 = vpop.f32.mrb[0].mxu0
  %v3278 = vadd.f32 0.0, %v3277
  %v3279 = vpop.f32.mrb[0].mxu0
  %3280 = vmatprep.mubr.bf16.mxu0 0
  %3281 = vmatmul.mubr.bf16.gmra.mrb[0].mxu0 %v3232
  %v3282 = vpop.f32.mrb[0].mxu0
  %v3283 = vadd.f32 0.0, %v3282
  %v3284 = vpop.f32.mrb[0].mxu0
  %v3285 = vpop.f32.mrb[0].mxu0
  %v3286 = vadd.f32 0.0, %v3285
  %v3287 = vpop.f32.mrb[0].mxu0
  %3288 = vmatprep.mubr.bf16.mxu0 0
  %3289 = vmatmul.mubr.bf16.gmra.mrb[0].mxu0 %v3235
  %v3290 = vpop.f32.mrb[0].mxu0
  %v3291 = vadd.f32 0.0, %v3290
  %v3292 = vpop.f32.mrb[0].mxu0
  %v3293 = vpop.f32.mrb[0].mxu0
  %v3294 = vadd.f32 0.0, %v3293
  %v3295 = vpop.f32.mrb[0].mxu0
  %3296 = vdwg.mxu0
  %v3298 = vsel %vm521, %v3148, 0
  %v3301 = vsel %vm521, %v3149, 0
  %v3304 = vsel %vm521, %v3150, 0
  %v3307 = vsel %vm1451, %v3157, 0
  %3309 = vmatprep.subr.bf16.mxu0 0
  %3310 = vmatpush1.bf16.msra.mxu0 %v3307
  %3311 = vmatprep.subr.bf16.mxu0 0
  %3312 = vmatpush1.bf16.msra.mxu0 0
  %3313 = vmatprep.subr.bf16.mxu0 0
  %3314 = vmatpush1.bf16.msra.mxu0 0
  %3315 = vmatprep.subr.bf16.mxu0 0
  %3316 = vmatpush1.bf16.msra.mxu0 0
  %3317 = vmatprep.subr.bf16.mxu0 0
  %3318 = vmatpush1.bf16.msra.mxu0 0
  %3319 = vmatprep.subr.bf16.mxu0 0
  %3320 = vmatpush1.bf16.msra.mxu0 0
  %3321 = vmatprep.subr.bf16.mxu0 0
  %3322 = vmatpush1.bf16.msra.mxu0 0
  %3323 = vmatprep.subr.bf16.mxu0 0
  %3324 = vmatpush1.bf16.msra.mxu0 0
  %3325 = vmatprep.subr.bf16.mxu0 0
  %3326 = vmatpush1.bf16.msra.mxu0 0
  %3327 = vmatprep.subr.bf16.mxu0 0
  %3328 = vmatpush1.bf16.msra.mxu0 0
  %3329 = vmatprep.subr.bf16.mxu0 0
  %3330 = vmatpush1.bf16.msra.mxu0 0
  %3331 = vmatprep.subr.bf16.mxu0 0
  %3332 = vmatpush1.bf16.msra.mxu0 0
  %3333 = vmatprep.subr.bf16.mxu0 0
  %3334 = vmatpush1.bf16.msra.mxu0 0
  %3335 = vmatprep.subr.bf16.mxu0 0
  %3336 = vmatpush1.bf16.msra.mxu0 0
  %3337 = vmatprep.subr.bf16.mxu0 0
  %3338 = vmatpush1.bf16.msra.mxu0 0
  %3339 = vmatprep.subr.bf16.mxu0 0
  %3340 = vmatpush1.bf16.msra.mxu0 0
  %3341 = vmatprep.mubr.bf16.mxu0 0
  %3342 = vmatmul.mubr.bf16.gmra.mrb[0].mxu0 %v3298
  %v3343 = vpop.f32.mrb[0].mxu0
  %v3344 = vadd.f32 0.0, %v3343
  %v3345 = vpop.f32.mrb[0].mxu0
  %v3346 = vpop.f32.mrb[0].mxu0
  %v3347 = vadd.f32 0.0, %v3346
  %v3348 = vpop.f32.mrb[0].mxu0
  %3349 = vmatprep.mubr.bf16.mxu0 0
  %3350 = vmatmul.mubr.bf16.gmra.mrb[0].mxu0 %v3301
  %v3351 = vpop.f32.mrb[0].mxu0
  %v3352 = vadd.f32 0.0, %v3351
  %v3353 = vpop.f32.mrb[0].mxu0
  %v3354 = vpop.f32.mrb[0].mxu0
  %v3355 = vadd.f32 0.0, %v3354
  %v3356 = vpop.f32.mrb[0].mxu0
  %3357 = vmatprep.mubr.bf16.mxu0 0
  %3358 = vmatmul.mubr.bf16.gmra.mrb[0].mxu0 %v3304
  %v3359 = vpop.f32.mrb[0].mxu0
  %v3360 = vadd.f32 0.0, %v3359
  %v3361 = vpop.f32.mrb[0].mxu0
  %v3362 = vpop.f32.mrb[0].mxu0
  %v3363 = vadd.f32 0.0, %v3362
  %v3364 = vpop.f32.mrb[0].mxu0
  %3365 = vdwg.mxu0
  %v3367 = vsel %vm521, %v3151, 0
  %v3370 = vsel %vm521, %v3152, 0
  %v3373 = vsel %vm521, %v3153, 0
  %v3376 = vsel %vm1451, %v3158, 0
  %3378 = vmatprep.subr.bf16.mxu0 0
  %3379 = vmatpush1.bf16.msra.mxu0 %v3376
  %3380 = vmatprep.subr.bf16.mxu0 0
  %3381 = vmatpush1.bf16.msra.mxu0 0
  %3382 = vmatprep.subr.bf16.mxu0 0
  %3383 = vmatpush1.bf16.msra.mxu0 0
  %3384 = vmatprep.subr.bf16.mxu0 0
  %3385 = vmatpush1.bf16.msra.mxu0 0
  %3386 = vmatprep.subr.bf16.mxu0 0
  %3387 = vmatpush1.bf16.msra.mxu0 0
  %3388 = vmatprep.subr.bf16.mxu0 0
  %3389 = vmatpush1.bf16.msra.mxu0 0
  %3390 = vmatprep.subr.bf16.mxu0 0
  %3391 = vmatpush1.bf16.msra.mxu0 0
  %3392 = vmatprep.subr.bf16.mxu0 0
  %3393 = vmatpush1.bf16.msra.mxu0 0
  %3394 = vmatprep.subr.bf16.mxu0 0
  %3395 = vmatpush1.bf16.msra.mxu0 0
  %3396 = vmatprep.subr.bf16.mxu0 0
  %3397 = vmatpush1.bf16.msra.mxu0 0
  %3398 = vmatprep.subr.bf16.mxu0 0
  %3399 = vmatpush1.bf16.msra.mxu0 0
  %3400 = vmatprep.subr.bf16.mxu0 0
  %3401 = vmatpush1.bf16.msra.mxu0 0
  %3402 = vmatprep.subr.bf16.mxu0 0
  %3403 = vmatpush1.bf16.msra.mxu0 0
  %3404 = vmatprep.subr.bf16.mxu0 0
  %3405 = vmatpush1.bf16.msra.mxu0 0
  %3406 = vmatprep.subr.bf16.mxu0 0
  %3407 = vmatpush1.bf16.msra.mxu0 0
  %3408 = vmatprep.subr.bf16.mxu0 0
  %3409 = vmatpush1.bf16.msra.mxu0 0
  %3410 = vmatprep.mubr.bf16.mxu0 0
  %3411 = vmatmul.mubr.bf16.gmra.mrb[0].mxu0 %v3367
  %v3412 = vpop.f32.mrb[0].mxu0
  %v3413 = vadd.f32 0.0, %v3412
  %v3414 = vpop.f32.mrb[0].mxu0
  %v3415 = vpop.f32.mrb[0].mxu0
  %v3416 = vadd.f32 0.0, %v3415
  %v3417 = vpop.f32.mrb[0].mxu0
  %3418 = vmatprep.mubr.bf16.mxu0 0
  %3419 = vmatmul.mubr.bf16.gmra.mrb[0].mxu0 %v3370
  %v3420 = vpop.f32.mrb[0].mxu0
  %v3421 = vadd.f32 0.0, %v3420
  %v3422 = vpop.f32.mrb[0].mxu0
  %v3423 = vpop.f32.mrb[0].mxu0
  %v3424 = vadd.f32 0.0, %v3423
  %v3425 = vpop.f32.mrb[0].mxu0
  %3426 = vmatprep.mubr.bf16.mxu0 0
  %3427 = vmatmul.mubr.bf16.gmra.mrb[0].mxu0 %v3373
  %v3428 = vpop.f32.mrb[0].mxu0
  %v3429 = vadd.f32 0.0, %v3428
  %v3430 = vpop.f32.mrb[0].mxu0
  %v3431 = vpop.f32.mrb[0].mxu0
  %v3432 = vadd.f32 0.0, %v3431
  %v3433 = vpop.f32.mrb[0].mxu0
  %3434 = vdwg.mxu0
  %v3435 = vsel %vm62, %v3206, 0.0
  %v3436 = vsel %vm62, %v3275, 0.0
  %v3437 = vadd.f32 %v3435, %v3436
  %v3438 = vsel %vm62, %v3344, 0.0
  %v3439 = vadd.f32 %v3437, %v3438
  %v3440 = vsel %vm62, %v3413, 0.0
  %v3441 = vadd.f32 %v3439, %v3440
  %v3442 = vsel %vm62, %v3209, 0.0
  %v3443 = vsel %vm62, %v3278, 0.0
  %v3444 = vadd.f32 %v3442, %v3443
  %v3445 = vsel %vm62, %v3347, 0.0
  %v3446 = vadd.f32 %v3444, %v3445
  %v3447 = vsel %vm62, %v3416, 0.0
  %v3448 = vadd.f32 %v3446, %v3447
  %v3449 = vsel %vm62, %v3214, 0.0
  %v3450 = vsel %vm62, %v3283, 0.0
  %v3451 = vadd.f32 %v3449, %v3450
  %v3452 = vsel %vm62, %v3352, 0.0
  %v3453 = vadd.f32 %v3451, %v3452
  %v3454 = vsel %vm62, %v3421, 0.0
  %v3455 = vadd.f32 %v3453, %v3454
  %v3456 = vsel %vm62, %v3217, 0.0
  %v3457 = vsel %vm62, %v3286, 0.0
  %v3458 = vadd.f32 %v3456, %v3457
  %v3459 = vsel %vm62, %v3355, 0.0
  %v3460 = vadd.f32 %v3458, %v3459
  %v3461 = vsel %vm62, %v3424, 0.0
  %v3462 = vadd.f32 %v3460, %v3461
  %v3463 = vsel %vm62, %v3222, 0.0
  %v3464 = vsel %vm62, %v3291, 0.0
  %v3465 = vadd.f32 %v3463, %v3464
  %v3466 = vsel %vm62, %v3360, 0.0
  %v3467 = vadd.f32 %v3465, %v3466
  %v3468 = vsel %vm62, %v3429, 0.0
  %v3469 = vadd.f32 %v3467, %v3468
  %v3470 = vsel %vm62, %v3225, 0.0
  %v3471 = vsel %vm62, %v3294, 0.0
  %v3472 = vadd.f32 %v3470, %v3471
  %v3473 = vsel %vm62, %v3363, 0.0
  %v3474 = vadd.f32 %v3472, %v3473
  %v3475 = vsel %vm62, %v3432, 0.0
  %v3476 = vadd.f32 %v3474, %v3475
  %v3478 = vlaneseq
  %v3479 = vshrl.u32 %v3478, 7
  %v3480 = vsub.s32 0, %v3479
  %v3481 = vrot.slane %v59, %v3480
  %v3483 = vadd.f32 %v3441, %v3481
  %v3484 = vadd.f32 %v3448, %v3481
  %v3485 = vadd.f32 %v3455, %v3481
  %v3486 = vadd.f32 %v3462, %v3481
  %v3487 = vadd.f32 %v3469, %v3481
  %v3488 = vadd.f32 %v3476, %v3481
  %v3489 = vadd.f32 %v1773, %v3483
  %v3490 = vadd.f32 %v1774, %v3484
  %v3491 = vadd.f32 %v1775, %v3485
  %v3492 = vadd.f32 %v1776, %v3486
  %v3493 = vadd.f32 %v1777, %v3487
  %v3494 = vadd.f32 %v1778, %v3488
  %v3495 = vmul.f32 %v3489, %v44
  %v3496 = vmul.f32 %v3490, %v45
  %v3497 = vmul.f32 %v3491, %v46
  %v3498 = vmul.f32 %v3492, %v47
  %v3499 = vmul.f32 %v3493, %v48
  %v3500 = vmul.f32 %v3494, %v49
  %v3501 = vsel %vm62, %v3495, 0.0
  %3502 = vadd.xlane.f32.xlu0 %v3501
  %v3503 = vpop.xlane.xlu0 %3502
  %v3504 = vsel %vm62, %v3496, 0.0
  %3505 = vadd.xlane.f32.xlu0 %v3504
  %v3506 = vpop.xlane.xlu0 %3505
  %v3507 = vsel %vm62, %v3497, 0.0
  %3508 = vadd.xlane.f32.xlu0 %v3507
  %v3509 = vpop.xlane.xlu0 %3508
  %v3510 = vsel %vm62, %v3498, 0.0
  %3511 = vadd.xlane.f32.xlu0 %v3510
  %v3512 = vpop.xlane.xlu0 %3511
  %v3513 = vsel %vm62, %v3499, 0.0
  %3514 = vadd.xlane.f32.xlu0 %v3513
  %v3515 = vpop.xlane.xlu0 %3514
  %v3516 = vsel %vm62, %v3500, 0.0
  %3517 = vadd.xlane.f32.xlu0 %v3516
  %v3518 = vpop.xlane.xlu0 %3517
  %v3519 = vmul.f32 %v3503, %v81
  %v3520 = vmul.f32 %v3506, %v81
  %v3521 = vmul.f32 %v3509, %v81
  %v3522 = vmul.f32 %v3512, %v81
  %v3523 = vmul.f32 %v3515, %v81
  %v3524 = vmul.f32 %v3518, %v81
  %v3525 = vsub.f32 %v3495, %v3519
  %v3526 = vsub.f32 %v3496, %v3520
  %v3527 = vsub.f32 %v3497, %v3521
  %v3528 = vsub.f32 %v3498, %v3522
  %v3529 = vsub.f32 %v3499, %v3523
  %v3530 = vsub.f32 %v3500, %v3524
  %v3531 = vmul.f32 %v3525, %v3525
  %v3532 = vmul.f32 %v3526, %v3526
  %v3533 = vmul.f32 %v3527, %v3527
  %v3534 = vmul.f32 %v3528, %v3528
  %v3535 = vmul.f32 %v3529, %v3529
  %v3536 = vmul.f32 %v3530, %v3530
  %v3537 = vsel %vm62, %v3531, 0.0
  %3538 = vadd.xlane.f32.xlu0 %v3537
  %v3539 = vpop.xlane.xlu0 %3538
  %v3540 = vsel %vm62, %v3532, 0.0
  %3541 = vadd.xlane.f32.xlu0 %v3540
  %v3542 = vpop.xlane.xlu0 %3541
  %v3543 = vsel %vm62, %v3533, 0.0
  %3544 = vadd.xlane.f32.xlu0 %v3543
  %v3545 = vpop.xlane.xlu0 %3544
  %v3546 = vsel %vm62, %v3534, 0.0
  %3547 = vadd.xlane.f32.xlu0 %v3546
  %v3548 = vpop.xlane.xlu0 %3547
  %v3549 = vsel %vm62, %v3535, 0.0
  %3550 = vadd.xlane.f32.xlu0 %v3549
  %v3551 = vpop.xlane.xlu0 %3550
  %v3552 = vsel %vm62, %v3536, 0.0
  %3553 = vadd.xlane.f32.xlu0 %v3552
  %v3554 = vpop.xlane.xlu0 %3553
  %v3555 = vmul.f32 %v3539, %v81
  %v3556 = vmul.f32 %v3542, %v81
  %v3557 = vmul.f32 %v3545, %v81
  %v3558 = vmul.f32 %v3548, %v81
  %v3559 = vmul.f32 %v3551, %v81
  %v3560 = vmul.f32 %v3554, %v81
  %v3561 = vadd.f32 %v3555, 1e-05
  %v3562 = vadd.f32 %v3556, 1e-05
  %v3563 = vadd.f32 %v3557, 1e-05
  %v3564 = vadd.f32 %v3558, 1e-05
  %v3565 = vadd.f32 %v3559, 1e-05
  %v3566 = vadd.f32 %v3560, 1e-05
  %v3567 = vrsqrt.pop %v3561
  %v3568 = vrsqrt.pop %v3562
  %v3569 = vrsqrt.pop %v3563
  %v3570 = vrsqrt.pop %v3564
  %v3571 = vrsqrt.pop %v3565
  %v3572 = vrsqrt.pop %v3566
  %v3573 = vmul.f32 %v3525, %v3567
  %v3574 = vmul.f32 %v3526, %v3568
  %v3575 = vmul.f32 %v3527, %v3569
  %v3576 = vmul.f32 %v3528, %v3570
  %v3577 = vmul.f32 %v3529, %v3571
  %v3578 = vmul.f32 %v3530, %v3572
  %v3580 = vlaneseq
  %v3581 = vshrl.u32 %v3580, 7
  %v3582 = vsub.s32 0, %v3581
  %v3583 = vrot.slane %v52, %v3582
  %v3585 = vmul.f32 %v3573, %v3583
  %v3586 = vmul.f32 %v3574, %v3583
  %v3587 = vmul.f32 %v3575, %v3583
  %v3588 = vmul.f32 %v3576, %v3583
  %v3589 = vmul.f32 %v3577, %v3583
  %v3590 = vmul.f32 %v3578, %v3583
  %v3592 = vlaneseq
  %v3593 = vshrl.u32 %v3592, 7
  %v3594 = vsub.s32 0, %v3593
  %v3595 = vrot.slane %v56, %v3594
  %v3597 = vadd.f32 %v3585, %v3595
  %v3598 = vadd.f32 %v3586, %v3595
  %v3599 = vadd.f32 %v3587, %v3595
  %v3600 = vadd.f32 %v3588, %v3595
  %v3601 = vadd.f32 %v3589, %v3595
  %v3602 = vadd.f32 %v3590, %v3595
  %v3603 = vpack.c.bf16 %v3598, %v3597
  %v3604 = vpack.c.bf16 %v3600, %v3599
  %v3605 = vpack.c.bf16 %v3602, %v3601
  %s3606 = scalar_lea.vmem %s5, 128
  %v3607 = vld [vmem:[%s3606] sm:$0xf]
  %v3608 = vld [vmem:[%s3606 + $0x4] sm:$0xf]
  %v3609 = vld [vmem:[%s3606 + $0x8] sm:$0xf]
  %v3610 = vld [vmem:[%s3606 + $0xc] sm:$0xf]
  %v3611 = vld [vmem:[%s3606 + $0x10] sm:$0xf]
  %v3612 = vld [vmem:[%s3606 + $0x14] sm:$0xf]
  %v3613 = vld [vmem:[%s3606 + $0x18] sm:$0xf]
  %v3614 = vld [vmem:[%s3606 + $0x1c] sm:$0xf]
  %v3615 = vld [vmem:[%s3606 + $0x20] sm:$0xf]
  %v3616 = vld [vmem:[%s3606 + $0x24] sm:$0xf]
  %v3617 = vld [vmem:[%s3606 + $0x28] sm:$0xf]
  %v3618 = vld [vmem:[%s3606 + $0x2c] sm:$0xf]
  %v3619 = vld [vmem:[%s3606 + $0x30] sm:$0xf]
  %v3620 = vld [vmem:[%s3606 + $0x34] sm:$0xf]
  %v3621 = vld [vmem:[%s3606 + $0x38] sm:$0xf]
  %v3622 = vld [vmem:[%s3606 + $0x3c] sm:$0xf]
  %s3623 = scalar_lea.vmem %s2, 384
  %v3624 = vld [vmem:[%s3623] sm:$0xff]
  %v3625 = vld [vmem:[%s3623 + $0x8] sm:$0xff]
  %v3626 = vld [vmem:[%s3623 + $0x10] sm:$0xff]
  %v3627 = vld [vmem:[%s3623 + $0x18] sm:$0xff]
  %v3628 = vld [vmem:[%s3623 + $0x20] sm:$0xff]
  %v3629 = vld [vmem:[%s3623 + $0x28] sm:$0xff]
  %v3630 = vld [vmem:[%s3623 + $0x30] sm:$0xff]
  %v3631 = vld [vmem:[%s3623 + $0x38] sm:$0xff]
  %v3632 = vld [vmem:[%s3623 + $0x40] sm:$0xff]
  %v3633 = vld [vmem:[%s3623 + $0x48] sm:$0xff]
  %v3634 = vld [vmem:[%s3623 + $0x50] sm:$0xff]
  %v3635 = vld [vmem:[%s3623 + $0x58] sm:$0xff]
  %v3636 = vld [vmem:[%s3623 + $0x60] sm:$0xff]
  %v3637 = vld [vmem:[%s3623 + $0x68] sm:$0xff]
  %v3638 = vld [vmem:[%s3623 + $0x70] sm:$0xff]
  %v3639 = vld [vmem:[%s3623 + $0x78] sm:$0xff]
  %v3640 = vld [vmem:[%s3623 + $0x80] sm:$0xff]
  %v3641 = vld [vmem:[%s3623 + $0x88] sm:$0xff]
  %v3642 = vld [vmem:[%s3623 + $0x90] sm:$0xff]
  %v3643 = vld [vmem:[%s3623 + $0x98] sm:$0xff]
  %v3644 = vld [vmem:[%s3623 + $0xa0] sm:$0xff]
  %v3645 = vld [vmem:[%s3623 + $0xa8] sm:$0xff]
  %v3646 = vld [vmem:[%s3623 + $0xb0] sm:$0xff]
  %v3647 = vld [vmem:[%s3623 + $0xb8] sm:$0xff]
  %v3652 = vunpack.c.l.b16 %v3607
  %v3653 = vunpack.c.l.b16 %v3608
  %v3654 = vunpack.c.l.b16 %v3609
  %v3655 = vunpack.c.l.b16 %v3610
  %v3656 = vpack.c.b16 %v3653, %v3652
  %v3657 = vpack.c.b16 %v3655, %v3654
  %v3661 = vsel %vm62, %v3603, 0
  %v3664 = vsel %vm62, %v3604, 0
  %v3667 = vsel %vm62, %v3605, 0
  %3669 = vmatprep.subr.bf16.mxu0 0
  %3670 = vmatpush1.bf16.msra.mxu0 %v3656
  %3671 = vmatprep.subr.bf16.mxu0 0
  %3672 = vmatpush1.bf16.msra.mxu0 %v3657
  %3673 = vmatprep.subr.bf16.mxu0 0
  %3674 = vmatpush1.bf16.msra.mxu0 0
  %3675 = vmatprep.subr.bf16.mxu0 0
  %3676 = vmatpush1.bf16.msra.mxu0 0
  %3677 = vmatprep.subr.bf16.mxu0 0
  %3678 = vmatpush1.bf16.msra.mxu0 0
  %3679 = vmatprep.subr.bf16.mxu0 0
  %3680 = vmatpush1.bf16.msra.mxu0 0
  %3681 = vmatprep.subr.bf16.mxu0 0
  %3682 = vmatpush1.bf16.msra.mxu0 0
  %3683 = vmatprep.subr.bf16.mxu0 0
  %3684 = vmatpush1.bf16.msra.mxu0 0
  %3685 = vmatprep.subr.bf16.mxu0 0
  %3686 = vmatpush1.bf16.msra.mxu0 0
  %3687 = vmatprep.subr.bf16.mxu0 0
  %3688 = vmatpush1.bf16.msra.mxu0 0
  %3689 = vmatprep.subr.bf16.mxu0 0
  %3690 = vmatpush1.bf16.msra.mxu0 0
  %3691 = vmatprep.subr.bf16.mxu0 0
  %3692 = vmatpush1.bf16.msra.mxu0 0
  %3693 = vmatprep.subr.bf16.mxu0 0
  %3694 = vmatpush1.bf16.msra.mxu0 0
  %3695 = vmatprep.subr.bf16.mxu0 0
  %3696 = vmatpush1.bf16.msra.mxu0 0
  %3697 = vmatprep.subr.bf16.mxu0 0
  %3698 = vmatpush1.bf16.msra.mxu0 0
  %3699 = vmatprep.subr.bf16.mxu0 0
  %3700 = vmatpush1.bf16.msra.mxu0 0
  %3701 = vmatprep.mubr.bf16.mxu0 0
  %3702 = vmatmul.mubr.bf16.gmra.mrb[0].mxu0 %v3661
  %v3703 = vpop.f32.mrb[0].mxu0
  %v3704 = vadd.f32 %v3624, %v3703
  %v3705 = vpop.f32.mrb[0].mxu0
  %v3706 = vpop.f32.mrb[0].mxu0
  %v3707 = vadd.f32 %v3625, %v3706
  %v3708 = vpop.f32.mrb[0].mxu0
  %3709 = vmatprep.mubr.bf16.mxu0 0
  %3710 = vmatmul.mubr.bf16.gmra.mrb[0].mxu0 %v3664
  %v3711 = vpop.f32.mrb[0].mxu0
  %v3712 = vadd.f32 %v3626, %v3711
  %v3713 = vpop.f32.mrb[0].mxu0
  %v3714 = vpop.f32.mrb[0].mxu0
  %v3715 = vadd.f32 %v3627, %v3714
  %v3716 = vpop.f32.mrb[0].mxu0
  %3717 = vmatprep.mubr.bf16.mxu0 0
  %3718 = vmatmul.mubr.bf16.gmra.mrb[0].mxu0 %v3667
  %v3719 = vpop.f32.mrb[0].mxu0
  %v3720 = vadd.f32 %v3628, %v3719
  %v3721 = vpop.f32.mrb[0].mxu0
  %v3722 = vpop.f32.mrb[0].mxu0
  %v3723 = vadd.f32 %v3629, %v3722
  %v3724 = vpop.f32.mrb[0].mxu0
  %3725 = vdwg.mxu0
  %v3730 = vunpack.c.l.b16 %v3611
  %v3731 = vunpack.c.l.b16 %v3612
  %v3732 = vunpack.c.l.b16 %v3613
  %v3733 = vunpack.c.l.b16 %v3614
  %v3734 = vpack.c.b16 %v3731, %v3730
  %v3735 = vpack.c.b16 %v3733, %v3732
  %3738 = vmatprep.subr.bf16.mxu0 0
  %3739 = vmatpush1.bf16.msra.mxu0 %v3734
  %3740 = vmatprep.subr.bf16.mxu0 0
  %3741 = vmatpush1.bf16.msra.mxu0 %v3735
  %3742 = vmatprep.subr.bf16.mxu0 0
  %3743 = vmatpush1.bf16.msra.mxu0 0
  %3744 = vmatprep.subr.bf16.mxu0 0
  %3745 = vmatpush1.bf16.msra.mxu0 0
  %3746 = vmatprep.subr.bf16.mxu0 0
  %3747 = vmatpush1.bf16.msra.mxu0 0
  %3748 = vmatprep.subr.bf16.mxu0 0
  %3749 = vmatpush1.bf16.msra.mxu0 0
  %3750 = vmatprep.subr.bf16.mxu0 0
  %3751 = vmatpush1.bf16.msra.mxu0 0
  %3752 = vmatprep.subr.bf16.mxu0 0
  %3753 = vmatpush1.bf16.msra.mxu0 0
  %3754 = vmatprep.subr.bf16.mxu0 0
  %3755 = vmatpush1.bf16.msra.mxu0 0
  %3756 = vmatprep.subr.bf16.mxu0 0
  %3757 = vmatpush1.bf16.msra.mxu0 0
  %3758 = vmatprep.subr.bf16.mxu0 0
  %3759 = vmatpush1.bf16.msra.mxu0 0
  %3760 = vmatprep.subr.bf16.mxu0 0
  %3761 = vmatpush1.bf16.msra.mxu0 0
  %3762 = vmatprep.subr.bf16.mxu0 0
  %3763 = vmatpush1.bf16.msra.mxu0 0
  %3764 = vmatprep.subr.bf16.mxu0 0
  %3765 = vmatpush1.bf16.msra.mxu0 0
  %3766 = vmatprep.subr.bf16.mxu0 0
  %3767 = vmatpush1.bf16.msra.mxu0 0
  %3768 = vmatprep.subr.bf16.mxu0 0
  %3769 = vmatpush1.bf16.msra.mxu0 0
  %3770 = vmatprep.mubr.bf16.mxu0 0
  %3771 = vmatmul.mubr.bf16.gmra.mrb[0].mxu0 %v3661
  %v3772 = vpop.f32.mrb[0].mxu0
  %v3773 = vadd.f32 %v3630, %v3772
  %v3774 = vpop.f32.mrb[0].mxu0
  %v3775 = vpop.f32.mrb[0].mxu0
  %v3776 = vadd.f32 %v3631, %v3775
  %v3777 = vpop.f32.mrb[0].mxu0
  %3778 = vmatprep.mubr.bf16.mxu0 0
  %3779 = vmatmul.mubr.bf16.gmra.mrb[0].mxu0 %v3664
  %v3780 = vpop.f32.mrb[0].mxu0
  %v3781 = vadd.f32 %v3632, %v3780
  %v3782 = vpop.f32.mrb[0].mxu0
  %v3783 = vpop.f32.mrb[0].mxu0
  %v3784 = vadd.f32 %v3633, %v3783
  %v3785 = vpop.f32.mrb[0].mxu0
  %3786 = vmatprep.mubr.bf16.mxu0 0
  %3787 = vmatmul.mubr.bf16.gmra.mrb[0].mxu0 %v3667
  %v3788 = vpop.f32.mrb[0].mxu0
  %v3789 = vadd.f32 %v3634, %v3788
  %v3790 = vpop.f32.mrb[0].mxu0
  %v3791 = vpop.f32.mrb[0].mxu0
  %v3792 = vadd.f32 %v3635, %v3791
  %v3793 = vpop.f32.mrb[0].mxu0
  %3794 = vdwg.mxu0
  %v3799 = vunpack.c.l.b16 %v3615
  %v3800 = vunpack.c.l.b16 %v3616
  %v3801 = vunpack.c.l.b16 %v3617
  %v3802 = vunpack.c.l.b16 %v3618
  %v3803 = vpack.c.b16 %v3800, %v3799
  %v3804 = vpack.c.b16 %v3802, %v3801
  %3807 = vmatprep.subr.bf16.mxu0 0
  %3808 = vmatpush1.bf16.msra.mxu0 %v3803
  %3809 = vmatprep.subr.bf16.mxu0 0
  %3810 = vmatpush1.bf16.msra.mxu0 %v3804
  %3811 = vmatprep.subr.bf16.mxu0 0
  %3812 = vmatpush1.bf16.msra.mxu0 0
  %3813 = vmatprep.subr.bf16.mxu0 0
  %3814 = vmatpush1.bf16.msra.mxu0 0
  %3815 = vmatprep.subr.bf16.mxu0 0
  %3816 = vmatpush1.bf16.msra.mxu0 0
  %3817 = vmatprep.subr.bf16.mxu0 0
  %3818 = vmatpush1.bf16.msra.mxu0 0
  %3819 = vmatprep.subr.bf16.mxu0 0
  %3820 = vmatpush1.bf16.msra.mxu0 0
  %3821 = vmatprep.subr.bf16.mxu0 0
  %3822 = vmatpush1.bf16.msra.mxu0 0
  %3823 = vmatprep.subr.bf16.mxu0 0
  %3824 = vmatpush1.bf16.msra.mxu0 0
  %3825 = vmatprep.subr.bf16.mxu0 0
  %3826 = vmatpush1.bf16.msra.mxu0 0
  %3827 = vmatprep.subr.bf16.mxu0 0
  %3828 = vmatpush1.bf16.msra.mxu0 0
  %3829 = vmatprep.subr.bf16.mxu0 0
  %3830 = vmatpush1.bf16.msra.mxu0 0
  %3831 = vmatprep.subr.bf16.mxu0 0
  %3832 = vmatpush1.bf16.msra.mxu0 0
  %3833 = vmatprep.subr.bf16.mxu0 0
  %3834 = vmatpush1.bf16.msra.mxu0 0
  %3835 = vmatprep.subr.bf16.mxu0 0
  %3836 = vmatpush1.bf16.msra.mxu0 0
  %3837 = vmatprep.subr.bf16.mxu0 0
  %3838 = vmatpush1.bf16.msra.mxu0 0
  %3839 = vmatprep.mubr.bf16.mxu0 0
  %3840 = vmatmul.mubr.bf16.gmra.mrb[0].mxu0 %v3661
  %v3841 = vpop.f32.mrb[0].mxu0
  %v3842 = vadd.f32 %v3636, %v3841
  %v3843 = vpop.f32.mrb[0].mxu0
  %v3844 = vpop.f32.mrb[0].mxu0
  %v3845 = vadd.f32 %v3637, %v3844
  %v3846 = vpop.f32.mrb[0].mxu0
  %3847 = vmatprep.mubr.bf16.mxu0 0
  %3848 = vmatmul.mubr.bf16.gmra.mrb[0].mxu0 %v3664
  %v3849 = vpop.f32.mrb[0].mxu0
  %v3850 = vadd.f32 %v3638, %v3849
  %v3851 = vpop.f32.mrb[0].mxu0
  %v3852 = vpop.f32.mrb[0].mxu0
  %v3853 = vadd.f32 %v3639, %v3852
  %v3854 = vpop.f32.mrb[0].mxu0
  %3855 = vmatprep.mubr.bf16.mxu0 0
  %3856 = vmatmul.mubr.bf16.gmra.mrb[0].mxu0 %v3667
  %v3857 = vpop.f32.mrb[0].mxu0
  %v3858 = vadd.f32 %v3640, %v3857
  %v3859 = vpop.f32.mrb[0].mxu0
  %v3860 = vpop.f32.mrb[0].mxu0
  %v3861 = vadd.f32 %v3641, %v3860
  %v3862 = vpop.f32.mrb[0].mxu0
  %3863 = vdwg.mxu0
  %v3868 = vunpack.c.l.b16 %v3619
  %v3869 = vunpack.c.l.b16 %v3620
  %v3870 = vunpack.c.l.b16 %v3621
  %v3871 = vunpack.c.l.b16 %v3622
  %v3872 = vpack.c.b16 %v3869, %v3868
  %v3873 = vpack.c.b16 %v3871, %v3870
  %3876 = vmatprep.subr.bf16.mxu0 0
  %3877 = vmatpush1.bf16.msra.mxu0 %v3872
  %3878 = vmatprep.subr.bf16.mxu0 0
  %3879 = vmatpush1.bf16.msra.mxu0 %v3873
  %3880 = vmatprep.subr.bf16.mxu0 0
  %3881 = vmatpush1.bf16.msra.mxu0 0
  %3882 = vmatprep.subr.bf16.mxu0 0
  %3883 = vmatpush1.bf16.msra.mxu0 0
  %3884 = vmatprep.subr.bf16.mxu0 0
  %3885 = vmatpush1.bf16.msra.mxu0 0
  %3886 = vmatprep.subr.bf16.mxu0 0
  %3887 = vmatpush1.bf16.msra.mxu0 0
  %3888 = vmatprep.subr.bf16.mxu0 0
  %3889 = vmatpush1.bf16.msra.mxu0 0
  %3890 = vmatprep.subr.bf16.mxu0 0
  %3891 = vmatpush1.bf16.msra.mxu0 0
  %3892 = vmatprep.subr.bf16.mxu0 0
  %3893 = vmatpush1.bf16.msra.mxu0 0
  %3894 = vmatprep.subr.bf16.mxu0 0
  %3895 = vmatpush1.bf16.msra.mxu0 0
  %3896 = vmatprep.subr.bf16.mxu0 0
  %3897 = vmatpush1.bf16.msra.mxu0 0
  %3898 = vmatprep.subr.bf16.mxu0 0
  %3899 = vmatpush1.bf16.msra.mxu0 0
  %3900 = vmatprep.subr.bf16.mxu0 0
  %3901 = vmatpush1.bf16.msra.mxu0 0
  %3902 = vmatprep.subr.bf16.mxu0 0
  %3903 = vmatpush1.bf16.msra.mxu0 0
  %3904 = vmatprep.subr.bf16.mxu0 0
  %3905 = vmatpush1.bf16.msra.mxu0 0
  %3906 = vmatprep.subr.bf16.mxu0 0
  %3907 = vmatpush1.bf16.msra.mxu0 0
  %3908 = vmatprep.mubr.bf16.mxu0 0
  %3909 = vmatmul.mubr.bf16.gmra.mrb[0].mxu0 %v3661
  %v3910 = vpop.f32.mrb[0].mxu0
  %v3911 = vadd.f32 %v3642, %v3910
  %v3912 = vpop.f32.mrb[0].mxu0
  %v3913 = vpop.f32.mrb[0].mxu0
  %v3914 = vadd.f32 %v3643, %v3913
  %v3915 = vpop.f32.mrb[0].mxu0
  %3916 = vmatprep.mubr.bf16.mxu0 0
  %3917 = vmatmul.mubr.bf16.gmra.mrb[0].mxu0 %v3664
  %v3918 = vpop.f32.mrb[0].mxu0
  %v3919 = vadd.f32 %v3644, %v3918
  %v3920 = vpop.f32.mrb[0].mxu0
  %v3921 = vpop.f32.mrb[0].mxu0
  %v3922 = vadd.f32 %v3645, %v3921
  %v3923 = vpop.f32.mrb[0].mxu0
  %3924 = vmatprep.mubr.bf16.mxu0 0
  %3925 = vmatmul.mubr.bf16.gmra.mrb[0].mxu0 %v3667
  %v3926 = vpop.f32.mrb[0].mxu0
  %v3927 = vadd.f32 %v3646, %v3926
  %v3928 = vpop.f32.mrb[0].mxu0
  %v3929 = vpop.f32.mrb[0].mxu0
  %v3930 = vadd.f32 %v3647, %v3929
  %v3931 = vpop.f32.mrb[0].mxu0
  %3932 = vdwg.mxu0
  %v3933 = vpack.c.bf16 %v38, %v37
  %v3934 = vpack.c.bf16 %v40, %v39
  %v3935 = vpack.c.bf16 %v42, %v41
  %s3936 = scalar_lea.vmem %s5, 192
  %v3937 = vld [vmem:[%s3936] sm:$0xf]
  %v3938 = vld [vmem:[%s3936 + $0x4] sm:$0xf]
  %v3939 = vld [vmem:[%s3936 + $0x8] sm:$0xf]
  %v3940 = vld [vmem:[%s3936 + $0xc] sm:$0xf]
  %v3941 = vld [vmem:[%s3936 + $0x10] sm:$0xf]
  %v3942 = vld [vmem:[%s3936 + $0x14] sm:$0xf]
  %v3943 = vld [vmem:[%s3936 + $0x18] sm:$0xf]
  %v3944 = vld [vmem:[%s3936 + $0x1c] sm:$0xf]
  %v3945 = vld [vmem:[%s3936 + $0x20] sm:$0xf]
  %v3946 = vld [vmem:[%s3936 + $0x24] sm:$0xf]
  %v3947 = vld [vmem:[%s3936 + $0x28] sm:$0xf]
  %v3948 = vld [vmem:[%s3936 + $0x2c] sm:$0xf]
  %v3949 = vld [vmem:[%s3936 + $0x30] sm:$0xf]
  %v3950 = vld [vmem:[%s3936 + $0x34] sm:$0xf]
  %v3951 = vld [vmem:[%s3936 + $0x38] sm:$0xf]
  %v3952 = vld [vmem:[%s3936 + $0x3c] sm:$0xf]
  %s3953 = scalar_lea.vmem %s2, 576
  %v3954 = vld [vmem:[%s3953] sm:$0xff]
  %v3955 = vld [vmem:[%s3953 + $0x8] sm:$0xff]
  %v3956 = vld [vmem:[%s3953 + $0x10] sm:$0xff]
  %v3957 = vld [vmem:[%s3953 + $0x18] sm:$0xff]
  %v3958 = vld [vmem:[%s3953 + $0x20] sm:$0xff]
  %v3959 = vld [vmem:[%s3953 + $0x28] sm:$0xff]
  %v3960 = vld [vmem:[%s3953 + $0x30] sm:$0xff]
  %v3961 = vld [vmem:[%s3953 + $0x38] sm:$0xff]
  %v3962 = vld [vmem:[%s3953 + $0x40] sm:$0xff]
  %v3963 = vld [vmem:[%s3953 + $0x48] sm:$0xff]
  %v3964 = vld [vmem:[%s3953 + $0x50] sm:$0xff]
  %v3965 = vld [vmem:[%s3953 + $0x58] sm:$0xff]
  %v3966 = vld [vmem:[%s3953 + $0x60] sm:$0xff]
  %v3967 = vld [vmem:[%s3953 + $0x68] sm:$0xff]
  %v3968 = vld [vmem:[%s3953 + $0x70] sm:$0xff]
  %v3969 = vld [vmem:[%s3953 + $0x78] sm:$0xff]
  %v3970 = vld [vmem:[%s3953 + $0x80] sm:$0xff]
  %v3971 = vld [vmem:[%s3953 + $0x88] sm:$0xff]
  %v3972 = vld [vmem:[%s3953 + $0x90] sm:$0xff]
  %v3973 = vld [vmem:[%s3953 + $0x98] sm:$0xff]
  %v3974 = vld [vmem:[%s3953 + $0xa0] sm:$0xff]
  %v3975 = vld [vmem:[%s3953 + $0xa8] sm:$0xff]
  %v3976 = vld [vmem:[%s3953 + $0xb0] sm:$0xff]
  %v3977 = vld [vmem:[%s3953 + $0xb8] sm:$0xff]
  %v3982 = vunpack.c.l.b16 %v3937
  %v3983 = vunpack.c.l.b16 %v3938
  %v3984 = vunpack.c.l.b16 %v3939
  %v3985 = vunpack.c.l.b16 %v3940
  %v3986 = vpack.c.b16 %v3983, %v3982
  %v3987 = vpack.c.b16 %v3985, %v3984
  %v3991 = vsel %vm62, %v3933, 0
  %v3994 = vsel %vm62, %v3934, 0
  %v3997 = vsel %vm62, %v3935, 0
  %3999 = vmatprep.subr.bf16.mxu0 0
  %4000 = vmatpush1.bf16.msra.mxu0 %v3986
  %4001 = vmatprep.subr.bf16.mxu0 0
  %4002 = vmatpush1.bf16.msra.mxu0 %v3987
  %4003 = vmatprep.subr.bf16.mxu0 0
  %4004 = vmatpush1.bf16.msra.mxu0 0
  %4005 = vmatprep.subr.bf16.mxu0 0
  %4006 = vmatpush1.bf16.msra.mxu0 0
  %4007 = vmatprep.subr.bf16.mxu0 0
  %4008 = vmatpush1.bf16.msra.mxu0 0
  %4009 = vmatprep.subr.bf16.mxu0 0
  %4010 = vmatpush1.bf16.msra.mxu0 0
  %4011 = vmatprep.subr.bf16.mxu0 0
  %4012 = vmatpush1.bf16.msra.mxu0 0
  %4013 = vmatprep.subr.bf16.mxu0 0
  %4014 = vmatpush1.bf16.msra.mxu0 0
  %4015 = vmatprep.subr.bf16.mxu0 0
  %4016 = vmatpush1.bf16.msra.mxu0 0
  %4017 = vmatprep.subr.bf16.mxu0 0
  %4018 = vmatpush1.bf16.msra.mxu0 0
  %4019 = vmatprep.subr.bf16.mxu0 0
  %4020 = vmatpush1.bf16.msra.mxu0 0
  %4021 = vmatprep.subr.bf16.mxu0 0
  %4022 = vmatpush1.bf16.msra.mxu0 0
  %4023 = vmatprep.subr.bf16.mxu0 0
  %4024 = vmatpush1.bf16.msra.mxu0 0
  %4025 = vmatprep.subr.bf16.mxu0 0
  %4026 = vmatpush1.bf16.msra.mxu0 0
  %4027 = vmatprep.subr.bf16.mxu0 0
  %4028 = vmatpush1.bf16.msra.mxu0 0
  %4029 = vmatprep.subr.bf16.mxu0 0
  %4030 = vmatpush1.bf16.msra.mxu0 0
  %4031 = vmatprep.mubr.bf16.mxu0 0
  %4032 = vmatmul.mubr.bf16.gmra.mrb[0].mxu0 %v3991
  %v4033 = vpop.f32.mrb[0].mxu0
  %v4034 = vadd.f32 %v3954, %v4033
  %v4035 = vpop.f32.mrb[0].mxu0
  %v4036 = vpop.f32.mrb[0].mxu0
  %v4037 = vadd.f32 %v3955, %v4036
  %v4038 = vpop.f32.mrb[0].mxu0
  %4039 = vmatprep.mubr.bf16.mxu0 0
  %4040 = vmatmul.mubr.bf16.gmra.mrb[0].mxu0 %v3994
  %v4041 = vpop.f32.mrb[0].mxu0
  %v4042 = vadd.f32 %v3956, %v4041
  %v4043 = vpop.f32.mrb[0].mxu0
  %v4044 = vpop.f32.mrb[0].mxu0
  %v4045 = vadd.f32 %v3957, %v4044
  %v4046 = vpop.f32.mrb[0].mxu0
  %4047 = vmatprep.mubr.bf16.mxu0 0
  %4048 = vmatmul.mubr.bf16.gmra.mrb[0].mxu0 %v3997
  %v4049 = vpop.f32.mrb[0].mxu0
  %v4050 = vadd.f32 %v3958, %v4049
  %v4051 = vpop.f32.mrb[0].mxu0
  %v4052 = vpop.f32.mrb[0].mxu0
  %v4053 = vadd.f32 %v3959, %v4052
  %v4054 = vpop.f32.mrb[0].mxu0
  %4055 = vdwg.mxu0
  %v4060 = vunpack.c.l.b16 %v3941
  %v4061 = vunpack.c.l.b16 %v3942
  %v4062 = vunpack.c.l.b16 %v3943
  %v4063 = vunpack.c.l.b16 %v3944
  %v4064 = vpack.c.b16 %v4061, %v4060
  %v4065 = vpack.c.b16 %v4063, %v4062
  %4068 = vmatprep.subr.bf16.mxu0 0
  %4069 = vmatpush1.bf16.msra.mxu0 %v4064
  %4070 = vmatprep.subr.bf16.mxu0 0
  %4071 = vmatpush1.bf16.msra.mxu0 %v4065
  %4072 = vmatprep.subr.bf16.mxu0 0
  %4073 = vmatpush1.bf16.msra.mxu0 0
  %4074 = vmatprep.subr.bf16.mxu0 0
  %4075 = vmatpush1.bf16.msra.mxu0 0
  %4076 = vmatprep.subr.bf16.mxu0 0
  %4077 = vmatpush1.bf16.msra.mxu0 0
  %4078 = vmatprep.subr.bf16.mxu0 0
  %4079 = vmatpush1.bf16.msra.mxu0 0
  %4080 = vmatprep.subr.bf16.mxu0 0
  %4081 = vmatpush1.bf16.msra.mxu0 0
  %4082 = vmatprep.subr.bf16.mxu0 0
  %4083 = vmatpush1.bf16.msra.mxu0 0
  %4084 = vmatprep.subr.bf16.mxu0 0
  %4085 = vmatpush1.bf16.msra.mxu0 0
  %4086 = vmatprep.subr.bf16.mxu0 0
  %4087 = vmatpush1.bf16.msra.mxu0 0
  %4088 = vmatprep.subr.bf16.mxu0 0
  %4089 = vmatpush1.bf16.msra.mxu0 0
  %4090 = vmatprep.subr.bf16.mxu0 0
  %4091 = vmatpush1.bf16.msra.mxu0 0
  %4092 = vmatprep.subr.bf16.mxu0 0
  %4093 = vmatpush1.bf16.msra.mxu0 0
  %4094 = vmatprep.subr.bf16.mxu0 0
  %4095 = vmatpush1.bf16.msra.mxu0 0
  %4096 = vmatprep.subr.bf16.mxu0 0
  %4097 = vmatpush1.bf16.msra.mxu0 0
  %4098 = vmatprep.subr.bf16.mxu0 0
  %4099 = vmatpush1.bf16.msra.mxu0 0
  %4100 = vmatprep.mubr.bf16.mxu0 0
  %4101 = vmatmul.mubr.bf16.gmra.mrb[0].mxu0 %v3991
  %v4102 = vpop.f32.mrb[0].mxu0
  %v4103 = vadd.f32 %v3960, %v4102
  %v4104 = vpop.f32.mrb[0].mxu0
  %v4105 = vpop.f32.mrb[0].mxu0
  %v4106 = vadd.f32 %v3961, %v4105
  %v4107 = vpop.f32.mrb[0].mxu0
  %4108 = vmatprep.mubr.bf16.mxu0 0
  %4109 = vmatmul.mubr.bf16.gmra.mrb[0].mxu0 %v3994
  %v4110 = vpop.f32.mrb[0].mxu0
  %v4111 = vadd.f32 %v3962, %v4110
  %v4112 = vpop.f32.mrb[0].mxu0
  %v4113 = vpop.f32.mrb[0].mxu0
  %v4114 = vadd.f32 %v3963, %v4113
  %v4115 = vpop.f32.mrb[0].mxu0
  %4116 = vmatprep.mubr.bf16.mxu0 0
  %4117 = vmatmul.mubr.bf16.gmra.mrb[0].mxu0 %v3997
  %v4118 = vpop.f32.mrb[0].mxu0
  %v4119 = vadd.f32 %v3964, %v4118
  %v4120 = vpop.f32.mrb[0].mxu0
  %v4121 = vpop.f32.mrb[0].mxu0
  %v4122 = vadd.f32 %v3965, %v4121
  %v4123 = vpop.f32.mrb[0].mxu0
  %4124 = vdwg.mxu0
  %v4129 = vunpack.c.l.b16 %v3945
  %v4130 = vunpack.c.l.b16 %v3946
  %v4131 = vunpack.c.l.b16 %v3947
  %v4132 = vunpack.c.l.b16 %v3948
  %v4133 = vpack.c.b16 %v4130, %v4129
  %v4134 = vpack.c.b16 %v4132, %v4131
  %4137 = vmatprep.subr.bf16.mxu0 0
  %4138 = vmatpush1.bf16.msra.mxu0 %v4133
  %4139 = vmatprep.subr.bf16.mxu0 0
  %4140 = vmatpush1.bf16.msra.mxu0 %v4134
  %4141 = vmatprep.subr.bf16.mxu0 0
  %4142 = vmatpush1.bf16.msra.mxu0 0
  %4143 = vmatprep.subr.bf16.mxu0 0
  %4144 = vmatpush1.bf16.msra.mxu0 0
  %4145 = vmatprep.subr.bf16.mxu0 0
  %4146 = vmatpush1.bf16.msra.mxu0 0
  %4147 = vmatprep.subr.bf16.mxu0 0
  %4148 = vmatpush1.bf16.msra.mxu0 0
  %4149 = vmatprep.subr.bf16.mxu0 0
  %4150 = vmatpush1.bf16.msra.mxu0 0
  %4151 = vmatprep.subr.bf16.mxu0 0
  %4152 = vmatpush1.bf16.msra.mxu0 0
  %4153 = vmatprep.subr.bf16.mxu0 0
  %4154 = vmatpush1.bf16.msra.mxu0 0
  %4155 = vmatprep.subr.bf16.mxu0 0
  %4156 = vmatpush1.bf16.msra.mxu0 0
  %4157 = vmatprep.subr.bf16.mxu0 0
  %4158 = vmatpush1.bf16.msra.mxu0 0
  %4159 = vmatprep.subr.bf16.mxu0 0
  %4160 = vmatpush1.bf16.msra.mxu0 0
  %4161 = vmatprep.subr.bf16.mxu0 0
  %4162 = vmatpush1.bf16.msra.mxu0 0
  %4163 = vmatprep.subr.bf16.mxu0 0
  %4164 = vmatpush1.bf16.msra.mxu0 0
  %4165 = vmatprep.subr.bf16.mxu0 0
  %4166 = vmatpush1.bf16.msra.mxu0 0
  %4167 = vmatprep.subr.bf16.mxu0 0
  %4168 = vmatpush1.bf16.msra.mxu0 0
  %4169 = vmatprep.mubr.bf16.mxu0 0
  %4170 = vmatmul.mubr.bf16.gmra.mrb[0].mxu0 %v3991
  %v4171 = vpop.f32.mrb[0].mxu0
  %v4172 = vadd.f32 %v3966, %v4171
  %v4173 = vpop.f32.mrb[0].mxu0
  %v4174 = vpop.f32.mrb[0].mxu0
  %v4175 = vadd.f32 %v3967, %v4174
  %v4176 = vpop.f32.mrb[0].mxu0
  %4177 = vmatprep.mubr.bf16.mxu0 0
  %4178 = vmatmul.mubr.bf16.gmra.mrb[0].mxu0 %v3994
  %v4179 = vpop.f32.mrb[0].mxu0
  %v4180 = vadd.f32 %v3968, %v4179
  %v4181 = vpop.f32.mrb[0].mxu0
  %v4182 = vpop.f32.mrb[0].mxu0
  %v4183 = vadd.f32 %v3969, %v4182
  %v4184 = vpop.f32.mrb[0].mxu0
  %4185 = vmatprep.mubr.bf16.mxu0 0
  %4186 = vmatmul.mubr.bf16.gmra.mrb[0].mxu0 %v3997
  %v4187 = vpop.f32.mrb[0].mxu0
  %v4188 = vadd.f32 %v3970, %v4187
  %v4189 = vpop.f32.mrb[0].mxu0
  %v4190 = vpop.f32.mrb[0].mxu0
  %v4191 = vadd.f32 %v3971, %v4190
  %v4192 = vpop.f32.mrb[0].mxu0
  %4193 = vdwg.mxu0
  %v4198 = vunpack.c.l.b16 %v3949
  %v4199 = vunpack.c.l.b16 %v3950
  %v4200 = vunpack.c.l.b16 %v3951
  %v4201 = vunpack.c.l.b16 %v3952
  %v4202 = vpack.c.b16 %v4199, %v4198
  %v4203 = vpack.c.b16 %v4201, %v4200
  %4206 = vmatprep.subr.bf16.mxu0 0
  %4207 = vmatpush1.bf16.msra.mxu0 %v4202
  %4208 = vmatprep.subr.bf16.mxu0 0
  %4209 = vmatpush1.bf16.msra.mxu0 %v4203
  %4210 = vmatprep.subr.bf16.mxu0 0
  %4211 = vmatpush1.bf16.msra.mxu0 0
  %4212 = vmatprep.subr.bf16.mxu0 0
  %4213 = vmatpush1.bf16.msra.mxu0 0
  %4214 = vmatprep.subr.bf16.mxu0 0
  %4215 = vmatpush1.bf16.msra.mxu0 0
  %4216 = vmatprep.subr.bf16.mxu0 0
  %4217 = vmatpush1.bf16.msra.mxu0 0
  %4218 = vmatprep.subr.bf16.mxu0 0
  %4219 = vmatpush1.bf16.msra.mxu0 0
  %4220 = vmatprep.subr.bf16.mxu0 0
  %4221 = vmatpush1.bf16.msra.mxu0 0
  %4222 = vmatprep.subr.bf16.mxu0 0
  %4223 = vmatpush1.bf16.msra.mxu0 0
  %4224 = vmatprep.subr.bf16.mxu0 0
  %4225 = vmatpush1.bf16.msra.mxu0 0
  %4226 = vmatprep.subr.bf16.mxu0 0
  %4227 = vmatpush1.bf16.msra.mxu0 0
  %4228 = vmatprep.subr.bf16.mxu0 0
  %4229 = vmatpush1.bf16.msra.mxu0 0
  %4230 = vmatprep.subr.bf16.mxu0 0
  %4231 = vmatpush1.bf16.msra.mxu0 0
  %4232 = vmatprep.subr.bf16.mxu0 0
  %4233 = vmatpush1.bf16.msra.mxu0 0
  %4234 = vmatprep.subr.bf16.mxu0 0
  %4235 = vmatpush1.bf16.msra.mxu0 0
  %4236 = vmatprep.subr.bf16.mxu0 0
  %4237 = vmatpush1.bf16.msra.mxu0 0
  %4238 = vmatprep.mubr.bf16.mxu0 0
  %4239 = vmatmul.mubr.bf16.gmra.mrb[0].mxu0 %v3991
  %v4240 = vpop.f32.mrb[0].mxu0
  %v4241 = vadd.f32 %v3972, %v4240
  %v4242 = vpop.f32.mrb[0].mxu0
  %v4243 = vpop.f32.mrb[0].mxu0
  %v4244 = vadd.f32 %v3973, %v4243
  %v4245 = vpop.f32.mrb[0].mxu0
  %4246 = vmatprep.mubr.bf16.mxu0 0
  %4247 = vmatmul.mubr.bf16.gmra.mrb[0].mxu0 %v3994
  %v4248 = vpop.f32.mrb[0].mxu0
  %v4249 = vadd.f32 %v3974, %v4248
  %v4250 = vpop.f32.mrb[0].mxu0
  %v4251 = vpop.f32.mrb[0].mxu0
  %v4252 = vadd.f32 %v3975, %v4251
  %v4253 = vpop.f32.mrb[0].mxu0
  %4254 = vmatprep.mubr.bf16.mxu0 0
  %4255 = vmatmul.mubr.bf16.gmra.mrb[0].mxu0 %v3997
  %v4256 = vpop.f32.mrb[0].mxu0
  %v4257 = vadd.f32 %v3976, %v4256
  %v4258 = vpop.f32.mrb[0].mxu0
  %v4259 = vpop.f32.mrb[0].mxu0
  %v4260 = vadd.f32 %v3977, %v4259
  %v4261 = vpop.f32.mrb[0].mxu0
  %4262 = vdwg.mxu0
  %s4263 = scalar_lea.vmem %s1, 96
  %v4264 = vld [vmem:[%s4263] sm:$0xff]
  %v4265 = vld [vmem:[%s4263 + $0x8] sm:$0xff]
  %v4266 = vld [vmem:[%s4263 + $0x10] sm:$0xff]
  %v4267 = vld [vmem:[%s4263 + $0x18] sm:$0xff]
  %v4268 = vld [vmem:[%s4263 + $0x20] sm:$0xff]
  %v4269 = vld [vmem:[%s4263 + $0x28] sm:$0xff]
  %v4270 = vpack.c.bf16 %v3707, %v3704
  %v4271 = vpack.c.bf16 %v3715, %v3712
  %v4272 = vpack.c.bf16 %v3723, %v3720
  %v4273 = vpack.c.bf16 %v3776, %v3773
  %v4274 = vpack.c.bf16 %v3784, %v3781
  %v4275 = vpack.c.bf16 %v3792, %v3789
  %v4276 = vpack.c.bf16 %v3845, %v3842
  %v4277 = vpack.c.bf16 %v3853, %v3850
  %v4278 = vpack.c.bf16 %v3861, %v3858
  %v4279 = vpack.c.bf16 %v3914, %v3911
  %v4280 = vpack.c.bf16 %v3922, %v3919
  %v4281 = vpack.c.bf16 %v3930, %v3927
  %v4282 = vpack.c.bf16 %v4037, %v4034
  %v4283 = vpack.c.bf16 %v4045, %v4042
  %v4284 = vpack.c.bf16 %v4053, %v4050
  %v4285 = vpack.c.bf16 %v4106, %v4103
  %v4286 = vpack.c.bf16 %v4114, %v4111
  %v4287 = vpack.c.bf16 %v4122, %v4119
  %v4288 = vpack.c.bf16 %v4175, %v4172
  %v4289 = vpack.c.bf16 %v4183, %v4180
  %v4290 = vpack.c.bf16 %v4191, %v4188
  %v4291 = vpack.c.bf16 %v4244, %v4241
  %v4292 = vpack.c.bf16 %v4252, %v4249
  %v4293 = vpack.c.bf16 %v4260, %v4257
  %4297 = vrot.lane.b32.xlu0 %v4282, 120
  %v4298 = vpop.permute.xlu0 %4297
  %4299 = vrot.lane.b32.xlu0 %v4283, 120
  %v4300 = vpop.permute.xlu0 %4299
  %4301 = vrot.lane.b32.xlu0 %v4284, 120
  %v4302 = vpop.permute.xlu0 %4301
  %v4304 = vsel %vm521, %v4270, 0
  %v4307 = vsel %vm521, %v4271, 0
  %v4310 = vsel %vm521, %v4272, 0
  %v4313 = vsel %vm521, %v4298, 0
  %v4316 = vsel %vm521, %v4300, 0
  %v4319 = vsel %vm521, %v4302, 0
  %4321 = vmatprep.subr.bf16.mxu0 0
  %4322 = vmatpush1.bf16.xpose.msra.mxu0 %v4313
  %4323 = vmatprep.subr.bf16.mxu0 0
  %4324 = vmatpush1.bf16.xpose.msra.mxu0 %v4316
  %4325 = vmatprep.subr.bf16.mxu0 0
  %4326 = vmatpush1.bf16.xpose.msra.mxu0 %v4319
  %4327 = vmatprep.subr.bf16.mxu0 0
  %4328 = vmatpush1.bf16.xpose.msra.mxu0 0
  %4329 = vmatprep.subr.bf16.mxu0 0
  %4330 = vmatpush1.bf16.xpose.msra.mxu0 0
  %4331 = vmatprep.subr.bf16.mxu0 0
  %4332 = vmatpush1.bf16.xpose.msra.mxu0 0
  %4333 = vmatprep.subr.bf16.mxu0 0
  %4334 = vmatpush1.bf16.xpose.msra.mxu0 0
  %4335 = vmatprep.subr.bf16.mxu0 0
  %4336 = vmatpush1.bf16.xpose.msra.mxu0 0
  %4337 = vmatprep.subr.bf16.mxu0 0
  %4338 = vmatpush1.bf16.xpose.msra.mxu0 0
  %4339 = vmatprep.subr.bf16.mxu0 0
  %4340 = vmatpush1.bf16.xpose.msra.mxu0 0
  %4341 = vmatprep.subr.bf16.mxu0 0
  %4342 = vmatpush1.bf16.xpose.msra.mxu0 0
  %4343 = vmatprep.subr.bf16.mxu0 0
  %4344 = vmatpush1.bf16.xpose.msra.mxu0 0
  %4345 = vmatprep.subr.bf16.mxu0 0
  %4346 = vmatpush1.bf16.xpose.msra.mxu0 0
  %4347 = vmatprep.subr.bf16.mxu0 0
  %4348 = vmatpush1.bf16.xpose.msra.mxu0 0
  %4349 = vmatprep.subr.bf16.mxu0 0
  %4350 = vmatpush1.bf16.xpose.msra.mxu0 0
  %4351 = vmatprep.subr.bf16.mxu0 0
  %4352 = vmatpush1.bf16.xpose.msra.mxu0 0
  %4353 = vmatprep.mubr.bf16.mxu0 0
  %4354 = vmatmul.mubr.bf16.gmra.mrb[0].mxu0 %v4304
  %v4355 = vpop.f32.mrb[0].mxu0
  %v4356 = vadd.f32 %v4264, %v4355
  %v4357 = vpop.f32.mrb[0].mxu0
  %v4358 = vpop.f32.mrb[0].mxu0
  %v4359 = vadd.f32 %v4265, %v4358
  %v4360 = vpop.f32.mrb[0].mxu0
  %4361 = vmatprep.mubr.bf16.mxu0 0
  %4362 = vmatmul.mubr.bf16.gmra.mrb[0].mxu0 %v4307
  %v4363 = vpop.f32.mrb[0].mxu0
  %v4364 = vadd.f32 %v4266, %v4363
  %v4365 = vpop.f32.mrb[0].mxu0
  %v4366 = vpop.f32.mrb[0].mxu0
  %v4367 = vadd.f32 %v4267, %v4366
  %v4368 = vpop.f32.mrb[0].mxu0
  %4369 = vmatprep.mubr.bf16.mxu0 0
  %4370 = vmatmul.mubr.bf16.gmra.mrb[0].mxu0 %v4310
  %v4371 = vpop.f32.mrb[0].mxu0
  %v4372 = vadd.f32 %v4268, %v4371
  %v4373 = vpop.f32.mrb[0].mxu0
  %v4374 = vpop.f32.mrb[0].mxu0
  %v4375 = vadd.f32 %v4269, %v4374
  %v4376 = vpop.f32.mrb[0].mxu0
  %4377 = vdwg.mxu0
  %4381 = vrot.lane.b32.xlu0 %v4285, 120
  %v4382 = vpop.permute.xlu0 %4381
  %4383 = vrot.lane.b32.xlu0 %v4286, 120
  %v4384 = vpop.permute.xlu0 %4383
  %4385 = vrot.lane.b32.xlu0 %v4287, 120
  %v4386 = vpop.permute.xlu0 %4385
  %v4388 = vsel %vm521, %v4273, 0
  %v4391 = vsel %vm521, %v4274, 0
  %v4394 = vsel %vm521, %v4275, 0
  %v4397 = vsel %vm521, %v4382, 0
  %v4400 = vsel %vm521, %v4384, 0
  %v4403 = vsel %vm521, %v4386, 0
  %4405 = vmatprep.subr.bf16.mxu0 0
  %4406 = vmatpush1.bf16.xpose.msra.mxu0 %v4397
  %4407 = vmatprep.subr.bf16.mxu0 0
  %4408 = vmatpush1.bf16.xpose.msra.mxu0 %v4400
  %4409 = vmatprep.subr.bf16.mxu0 0
  %4410 = vmatpush1.bf16.xpose.msra.mxu0 %v4403
  %4411 = vmatprep.subr.bf16.mxu0 0
  %4412 = vmatpush1.bf16.xpose.msra.mxu0 0
  %4413 = vmatprep.subr.bf16.mxu0 0
  %4414 = vmatpush1.bf16.xpose.msra.mxu0 0
  %4415 = vmatprep.subr.bf16.mxu0 0
  %4416 = vmatpush1.bf16.xpose.msra.mxu0 0
  %4417 = vmatprep.subr.bf16.mxu0 0
  %4418 = vmatpush1.bf16.xpose.msra.mxu0 0
  %4419 = vmatprep.subr.bf16.mxu0 0
  %4420 = vmatpush1.bf16.xpose.msra.mxu0 0
  %4421 = vmatprep.subr.bf16.mxu0 0
  %4422 = vmatpush1.bf16.xpose.msra.mxu0 0
  %4423 = vmatprep.subr.bf16.mxu0 0
  %4424 = vmatpush1.bf16.xpose.msra.mxu0 0
  %4425 = vmatprep.subr.bf16.mxu0 0
  %4426 = vmatpush1.bf16.xpose.msra.mxu0 0
  %4427 = vmatprep.subr.bf16.mxu0 0
  %4428 = vmatpush1.bf16.xpose.msra.mxu0 0
  %4429 = vmatprep.subr.bf16.mxu0 0
  %4430 = vmatpush1.bf16.xpose.msra.mxu0 0
  %4431 = vmatprep.subr.bf16.mxu0 0
  %4432 = vmatpush1.bf16.xpose.msra.mxu0 0
  %4433 = vmatprep.subr.bf16.mxu0 0
  %4434 = vmatpush1.bf16.xpose.msra.mxu0 0
  %4435 = vmatprep.subr.bf16.mxu0 0
  %4436 = vmatpush1.bf16.xpose.msra.mxu0 0
  %4437 = vmatprep.mubr.bf16.mxu0 0
  %4438 = vmatmul.mubr.bf16.gmra.mrb[0].mxu0 %v4388
  %v4439 = vpop.f32.mrb[0].mxu0
  %v4440 = vadd.f32 %v4264, %v4439
  %v4441 = vpop.f32.mrb[0].mxu0
  %v4442 = vpop.f32.mrb[0].mxu0
  %v4443 = vadd.f32 %v4265, %v4442
  %v4444 = vpop.f32.mrb[0].mxu0
  %4445 = vmatprep.mubr.bf16.mxu0 0
  %4446 = vmatmul.mubr.bf16.gmra.mrb[0].mxu0 %v4391
  %v4447 = vpop.f32.mrb[0].mxu0
  %v4448 = vadd.f32 %v4266, %v4447
  %v4449 = vpop.f32.mrb[0].mxu0
  %v4450 = vpop.f32.mrb[0].mxu0
  %v4451 = vadd.f32 %v4267, %v4450
  %v4452 = vpop.f32.mrb[0].mxu0
  %4453 = vmatprep.mubr.bf16.mxu0 0
  %4454 = vmatmul.mubr.bf16.gmra.mrb[0].mxu0 %v4394
  %v4455 = vpop.f32.mrb[0].mxu0
  %v4456 = vadd.f32 %v4268, %v4455
  %v4457 = vpop.f32.mrb[0].mxu0
  %v4458 = vpop.f32.mrb[0].mxu0
  %v4459 = vadd.f32 %v4269, %v4458
  %v4460 = vpop.f32.mrb[0].mxu0
  %4461 = vdwg.mxu0
  %4465 = vrot.lane.b32.xlu0 %v4288, 120
  %v4466 = vpop.permute.xlu0 %4465
  %4467 = vrot.lane.b32.xlu0 %v4289, 120
  %v4468 = vpop.permute.xlu0 %4467
  %4469 = vrot.lane.b32.xlu0 %v4290, 120
  %v4470 = vpop.permute.xlu0 %4469
  %v4472 = vsel %vm521, %v4276, 0
  %v4475 = vsel %vm521, %v4277, 0
  %v4478 = vsel %vm521, %v4278, 0
  %v4481 = vsel %vm521, %v4466, 0
  %v4484 = vsel %vm521, %v4468, 0
  %v4487 = vsel %vm521, %v4470, 0
  %4489 = vmatprep.subr.bf16.mxu0 0
  %4490 = vmatpush1.bf16.xpose.msra.mxu0 %v4481
  %4491 = vmatprep.subr.bf16.mxu0 0
  %4492 = vmatpush1.bf16.xpose.msra.mxu0 %v4484
  %4493 = vmatprep.subr.bf16.mxu0 0
  %4494 = vmatpush1.bf16.xpose.msra.mxu0 %v4487
  %4495 = vmatprep.subr.bf16.mxu0 0
  %4496 = vmatpush1.bf16.xpose.msra.mxu0 0
  %4497 = vmatprep.subr.bf16.mxu0 0
  %4498 = vmatpush1.bf16.xpose.msra.mxu0 0
  %4499 = vmatprep.subr.bf16.mxu0 0
  %4500 = vmatpush1.bf16.xpose.msra.mxu0 0
  %4501 = vmatprep.subr.bf16.mxu0 0
  %4502 = vmatpush1.bf16.xpose.msra.mxu0 0
  %4503 = vmatprep.subr.bf16.mxu0 0
  %4504 = vmatpush1.bf16.xpose.msra.mxu0 0
  %4505 = vmatprep.subr.bf16.mxu0 0
  %4506 = vmatpush1.bf16.xpose.msra.mxu0 0
  %4507 = vmatprep.subr.bf16.mxu0 0
  %4508 = vmatpush1.bf16.xpose.msra.mxu0 0
  %4509 = vmatprep.subr.bf16.mxu0 0
  %4510 = vmatpush1.bf16.xpose.msra.mxu0 0
  %4511 = vmatprep.subr.bf16.mxu0 0
  %4512 = vmatpush1.bf16.xpose.msra.mxu0 0
  %4513 = vmatprep.subr.bf16.mxu0 0
  %4514 = vmatpush1.bf16.xpose.msra.mxu0 0
  %4515 = vmatprep.subr.bf16.mxu0 0
  %4516 = vmatpush1.bf16.xpose.msra.mxu0 0
  %4517 = vmatprep.subr.bf16.mxu0 0
  %4518 = vmatpush1.bf16.xpose.msra.mxu0 0
  %4519 = vmatprep.subr.bf16.mxu0 0
  %4520 = vmatpush1.bf16.xpose.msra.mxu0 0
  %4521 = vmatprep.mubr.bf16.mxu0 0
  %4522 = vmatmul.mubr.bf16.gmra.mrb[0].mxu0 %v4472
  %v4523 = vpop.f32.mrb[0].mxu0
  %v4524 = vadd.f32 %v4264, %v4523
  %v4525 = vpop.f32.mrb[0].mxu0
  %v4526 = vpop.f32.mrb[0].mxu0
  %v4527 = vadd.f32 %v4265, %v4526
  %v4528 = vpop.f32.mrb[0].mxu0
  %4529 = vmatprep.mubr.bf16.mxu0 0
  %4530 = vmatmul.mubr.bf16.gmra.mrb[0].mxu0 %v4475
  %v4531 = vpop.f32.mrb[0].mxu0
  %v4532 = vadd.f32 %v4266, %v4531
  %v4533 = vpop.f32.mrb[0].mxu0
  %v4534 = vpop.f32.mrb[0].mxu0
  %v4535 = vadd.f32 %v4267, %v4534
  %v4536 = vpop.f32.mrb[0].mxu0
  %4537 = vmatprep.mubr.bf16.mxu0 0
  %4538 = vmatmul.mubr.bf16.gmra.mrb[0].mxu0 %v4478
  %v4539 = vpop.f32.mrb[0].mxu0
  %v4540 = vadd.f32 %v4268, %v4539
  %v4541 = vpop.f32.mrb[0].mxu0
  %v4542 = vpop.f32.mrb[0].mxu0
  %v4543 = vadd.f32 %v4269, %v4542
  %v4544 = vpop.f32.mrb[0].mxu0
  %4545 = vdwg.mxu0
  %4549 = vrot.lane.b32.xlu0 %v4291, 120
  %v4550 = vpop.permute.xlu0 %4549
  %4551 = vrot.lane.b32.xlu0 %v4292, 120
  %v4552 = vpop.permute.xlu0 %4551
  %4553 = vrot.lane.b32.xlu0 %v4293, 120
  %v4554 = vpop.permute.xlu0 %4553
  %v4556 = vsel %vm521, %v4279, 0
  %v4559 = vsel %vm521, %v4280, 0
  %v4562 = vsel %vm521, %v4281, 0
  %v4565 = vsel %vm521, %v4550, 0
  %v4568 = vsel %vm521, %v4552, 0
  %v4571 = vsel %vm521, %v4554, 0
  %4573 = vmatprep.subr.bf16.mxu0 0
  %4574 = vmatpush1.bf16.xpose.msra.mxu0 %v4565
  %4575 = vmatprep.subr.bf16.mxu0 0
  %4576 = vmatpush1.bf16.xpose.msra.mxu0 %v4568
  %4577 = vmatprep.subr.bf16.mxu0 0
  %4578 = vmatpush1.bf16.xpose.msra.mxu0 %v4571
  %4579 = vmatprep.subr.bf16.mxu0 0
  %4580 = vmatpush1.bf16.xpose.msra.mxu0 0
  %4581 = vmatprep.subr.bf16.mxu0 0
  %4582 = vmatpush1.bf16.xpose.msra.mxu0 0
  %4583 = vmatprep.subr.bf16.mxu0 0
  %4584 = vmatpush1.bf16.xpose.msra.mxu0 0
  %4585 = vmatprep.subr.bf16.mxu0 0
  %4586 = vmatpush1.bf16.xpose.msra.mxu0 0
  %4587 = vmatprep.subr.bf16.mxu0 0
  %4588 = vmatpush1.bf16.xpose.msra.mxu0 0
  %4589 = vmatprep.subr.bf16.mxu0 0
  %4590 = vmatpush1.bf16.xpose.msra.mxu0 0
  %4591 = vmatprep.subr.bf16.mxu0 0
  %4592 = vmatpush1.bf16.xpose.msra.mxu0 0
  %4593 = vmatprep.subr.bf16.mxu0 0
  %4594 = vmatpush1.bf16.xpose.msra.mxu0 0
  %4595 = vmatprep.subr.bf16.mxu0 0
  %4596 = vmatpush1.bf16.xpose.msra.mxu0 0
  %4597 = vmatprep.subr.bf16.mxu0 0
  %4598 = vmatpush1.bf16.xpose.msra.mxu0 0
  %4599 = vmatprep.subr.bf16.mxu0 0
  %4600 = vmatpush1.bf16.xpose.msra.mxu0 0
  %4601 = vmatprep.subr.bf16.mxu0 0
  %4602 = vmatpush1.bf16.xpose.msra.mxu0 0
  %4603 = vmatprep.subr.bf16.mxu0 0
  %4604 = vmatpush1.bf16.xpose.msra.mxu0 0
  %4605 = vmatprep.mubr.bf16.mxu0 0
  %4606 = vmatmul.mubr.bf16.gmra.mrb[0].mxu0 %v4556
  %v4607 = vpop.f32.mrb[0].mxu0
  %v4608 = vadd.f32 %v4264, %v4607
  %v4609 = vpop.f32.mrb[0].mxu0
  %v4610 = vpop.f32.mrb[0].mxu0
  %v4611 = vadd.f32 %v4265, %v4610
  %v4612 = vpop.f32.mrb[0].mxu0
  %4613 = vmatprep.mubr.bf16.mxu0 0
  %4614 = vmatmul.mubr.bf16.gmra.mrb[0].mxu0 %v4559
  %v4615 = vpop.f32.mrb[0].mxu0
  %v4616 = vadd.f32 %v4266, %v4615
  %v4617 = vpop.f32.mrb[0].mxu0
  %v4618 = vpop.f32.mrb[0].mxu0
  %v4619 = vadd.f32 %v4267, %v4618
  %v4620 = vpop.f32.mrb[0].mxu0
  %4621 = vmatprep.mubr.bf16.mxu0 0
  %4622 = vmatmul.mubr.bf16.gmra.mrb[0].mxu0 %v4562
  %v4623 = vpop.f32.mrb[0].mxu0
  %v4624 = vadd.f32 %v4268, %v4623
  %v4625 = vpop.f32.mrb[0].mxu0
  %v4626 = vpop.f32.mrb[0].mxu0
  %v4627 = vadd.f32 %v4269, %v4626
  %v4628 = vpop.f32.mrb[0].mxu0
  %4629 = vdwg.mxu0
  %v4630 = vsel %vm849, %v4356, -inf
  %4631 = vmax.xlane.f32.xlu0 %v4630
  %v4632 = vpop.xlane.xlu0 %4631
  %v4633 = vsel %vm849, %v4359, -inf
  %4634 = vmax.xlane.f32.xlu0 %v4633
  %v4635 = vpop.xlane.xlu0 %4634
  %v4636 = vsel %vm849, %v4364, -inf
  %4637 = vmax.xlane.f32.xlu0 %v4636
  %v4638 = vpop.xlane.xlu0 %4637
  %v4639 = vsel %vm849, %v4367, -inf
  %4640 = vmax.xlane.f32.xlu0 %v4639
  %v4641 = vpop.xlane.xlu0 %4640
  %v4642 = vsel %vm849, %v4372, -inf
  %4643 = vmax.xlane.f32.xlu0 %v4642
  %v4644 = vpop.xlane.xlu0 %4643
  %v4645 = vsel %vm849, %v4375, -inf
  %4646 = vmax.xlane.f32.xlu0 %v4645
  %v4647 = vpop.xlane.xlu0 %4646
  %v4648 = vsel %vm849, %v4440, -inf
  %4649 = vmax.xlane.f32.xlu0 %v4648
  %v4650 = vpop.xlane.xlu0 %4649
  %v4651 = vsel %vm849, %v4443, -inf
  %4652 = vmax.xlane.f32.xlu0 %v4651
  %v4653 = vpop.xlane.xlu0 %4652
  %v4654 = vsel %vm849, %v4448, -inf
  %4655 = vmax.xlane.f32.xlu0 %v4654
  %v4656 = vpop.xlane.xlu0 %4655
  %v4657 = vsel %vm849, %v4451, -inf
  %4658 = vmax.xlane.f32.xlu0 %v4657
  %v4659 = vpop.xlane.xlu0 %4658
  %v4660 = vsel %vm849, %v4456, -inf
  %4661 = vmax.xlane.f32.xlu0 %v4660
  %v4662 = vpop.xlane.xlu0 %4661
  %v4663 = vsel %vm849, %v4459, -inf
  %4664 = vmax.xlane.f32.xlu0 %v4663
  %v4665 = vpop.xlane.xlu0 %4664
  %v4666 = vsel %vm849, %v4524, -inf
  %4667 = vmax.xlane.f32.xlu0 %v4666
  %v4668 = vpop.xlane.xlu0 %4667
  %v4669 = vsel %vm849, %v4527, -inf
  %4670 = vmax.xlane.f32.xlu0 %v4669
  %v4671 = vpop.xlane.xlu0 %4670
  %v4672 = vsel %vm849, %v4532, -inf
  %4673 = vmax.xlane.f32.xlu0 %v4672
  %v4674 = vpop.xlane.xlu0 %4673
  %v4675 = vsel %vm849, %v4535, -inf
  %4676 = vmax.xlane.f32.xlu0 %v4675
  %v4677 = vpop.xlane.xlu0 %4676
  %v4678 = vsel %vm849, %v4540, -inf
  %4679 = vmax.xlane.f32.xlu0 %v4678
  %v4680 = vpop.xlane.xlu0 %4679
  %v4681 = vsel %vm849, %v4543, -inf
  %4682 = vmax.xlane.f32.xlu0 %v4681
  %v4683 = vpop.xlane.xlu0 %4682
  %v4684 = vsel %vm849, %v4608, -inf
  %4685 = vmax.xlane.f32.xlu0 %v4684
  %v4686 = vpop.xlane.xlu0 %4685
  %v4687 = vsel %vm849, %v4611, -inf
  %4688 = vmax.xlane.f32.xlu0 %v4687
  %v4689 = vpop.xlane.xlu0 %4688
  %v4690 = vsel %vm849, %v4616, -inf
  %4691 = vmax.xlane.f32.xlu0 %v4690
  %v4692 = vpop.xlane.xlu0 %4691
  %v4693 = vsel %vm849, %v4619, -inf
  %4694 = vmax.xlane.f32.xlu0 %v4693
  %v4695 = vpop.xlane.xlu0 %4694
  %v4696 = vsel %vm849, %v4624, -inf
  %4697 = vmax.xlane.f32.xlu0 %v4696
  %v4698 = vpop.xlane.xlu0 %4697
  %v4699 = vsel %vm849, %v4627, -inf
  %4700 = vmax.xlane.f32.xlu0 %v4699
  %v4701 = vpop.xlane.xlu0 %4700
  %v4702 = vsub.f32 %v4356, %v4632
  %v4703 = vsub.f32 %v4359, %v4635
  %v4704 = vsub.f32 %v4364, %v4638
  %v4705 = vsub.f32 %v4367, %v4641
  %v4706 = vsub.f32 %v4372, %v4644
  %v4707 = vsub.f32 %v4375, %v4647
  %v4708 = vsub.f32 %v4440, %v4650
  %v4709 = vsub.f32 %v4443, %v4653
  %v4710 = vsub.f32 %v4448, %v4656
  %v4711 = vsub.f32 %v4451, %v4659
  %v4712 = vsub.f32 %v4456, %v4662
  %v4713 = vsub.f32 %v4459, %v4665
  %v4714 = vsub.f32 %v4524, %v4668
  %v4715 = vsub.f32 %v4527, %v4671
  %v4716 = vsub.f32 %v4532, %v4674
  %v4717 = vsub.f32 %v4535, %v4677
  %v4718 = vsub.f32 %v4540, %v4680
  %v4719 = vsub.f32 %v4543, %v4683
  %v4720 = vsub.f32 %v4608, %v4686
  %v4721 = vsub.f32 %v4611, %v4689
  %v4722 = vsub.f32 %v4616, %v4692
  %v4723 = vsub.f32 %v4619, %v4695
  %v4724 = vsub.f32 %v4624, %v4698
  %v4725 = vsub.f32 %v4627, %v4701
  %v4726 = vmul.f32 %v4702, 1.442695
  %v4727 = vpow.pop %v4726
  %v4728 = vmul.f32 %v4703, 1.442695
  %v4729 = vpow.pop %v4728
  %v4730 = vmul.f32 %v4704, 1.442695
  %v4731 = vpow.pop %v4730
  %v4732 = vmul.f32 %v4705, 1.442695
  %v4733 = vpow.pop %v4732
  %v4734 = vmul.f32 %v4706, 1.442695
  %v4735 = vpow.pop %v4734
  %v4736 = vmul.f32 %v4707, 1.442695
  %v4737 = vpow.pop %v4736
  %v4738 = vmul.f32 %v4708, 1.442695
  %v4739 = vpow.pop %v4738
  %v4740 = vmul.f32 %v4709, 1.442695
  %v4741 = vpow.pop %v4740
  %v4742 = vmul.f32 %v4710, 1.442695
  %v4743 = vpow.pop %v4742
  %v4744 = vmul.f32 %v4711, 1.442695
  %v4745 = vpow.pop %v4744
  %v4746 = vmul.f32 %v4712, 1.442695
  %v4747 = vpow.pop %v4746
  %v4748 = vmul.f32 %v4713, 1.442695
  %v4749 = vpow.pop %v4748
  %v4750 = vmul.f32 %v4714, 1.442695
  %v4751 = vpow.pop %v4750
  %v4752 = vmul.f32 %v4715, 1.442695
  %v4753 = vpow.pop %v4752
  %v4754 = vmul.f32 %v4716, 1.442695
  %v4755 = vpow.pop %v4754
  %v4756 = vmul.f32 %v4717, 1.442695
  %v4757 = vpow.pop %v4756
  %v4758 = vmul.f32 %v4718, 1.442695
  %v4759 = vpow.pop %v4758
  %v4760 = vmul.f32 %v4719, 1.442695
  %v4761 = vpow.pop %v4760
  %v4762 = vmul.f32 %v4720, 1.442695
  %v4763 = vpow.pop %v4762
  %v4764 = vmul.f32 %v4721, 1.442695
  %v4765 = vpow.pop %v4764
  %v4766 = vmul.f32 %v4722, 1.442695
  %v4767 = vpow.pop %v4766
  %v4768 = vmul.f32 %v4723, 1.442695
  %v4769 = vpow.pop %v4768
  %v4770 = vmul.f32 %v4724, 1.442695
  %v4771 = vpow.pop %v4770
  %v4772 = vmul.f32 %v4725, 1.442695
  %v4773 = vpow.pop %v4772
  %v4774 = vsel %vm849, %v4727, 0.0
  %4775 = vadd.xlane.f32.xlu0 %v4774
  %v4776 = vpop.xlane.xlu0 %4775
  %v4777 = vsel %vm849, %v4729, 0.0
  %4778 = vadd.xlane.f32.xlu0 %v4777
  %v4779 = vpop.xlane.xlu0 %4778
  %v4780 = vsel %vm849, %v4731, 0.0
  %4781 = vadd.xlane.f32.xlu0 %v4780
  %v4782 = vpop.xlane.xlu0 %4781
  %v4783 = vsel %vm849, %v4733, 0.0
  %4784 = vadd.xlane.f32.xlu0 %v4783
  %v4785 = vpop.xlane.xlu0 %4784
  %v4786 = vsel %vm849, %v4735, 0.0
  %4787 = vadd.xlane.f32.xlu0 %v4786
  %v4788 = vpop.xlane.xlu0 %4787
  %v4789 = vsel %vm849, %v4737, 0.0
  %4790 = vadd.xlane.f32.xlu0 %v4789
  %v4791 = vpop.xlane.xlu0 %4790
  %v4792 = vsel %vm849, %v4739, 0.0
  %4793 = vadd.xlane.f32.xlu0 %v4792
  %v4794 = vpop.xlane.xlu0 %4793
  %v4795 = vsel %vm849, %v4741, 0.0
  %4796 = vadd.xlane.f32.xlu0 %v4795
  %v4797 = vpop.xlane.xlu0 %4796
  %v4798 = vsel %vm849, %v4743, 0.0
  %4799 = vadd.xlane.f32.xlu0 %v4798
  %v4800 = vpop.xlane.xlu0 %4799
  %v4801 = vsel %vm849, %v4745, 0.0
  %4802 = vadd.xlane.f32.xlu0 %v4801
  %v4803 = vpop.xlane.xlu0 %4802
  %v4804 = vsel %vm849, %v4747, 0.0
  %4805 = vadd.xlane.f32.xlu0 %v4804
  %v4806 = vpop.xlane.xlu0 %4805
  %v4807 = vsel %vm849, %v4749, 0.0
  %4808 = vadd.xlane.f32.xlu0 %v4807
  %v4809 = vpop.xlane.xlu0 %4808
  %v4810 = vsel %vm849, %v4751, 0.0
  %4811 = vadd.xlane.f32.xlu0 %v4810
  %v4812 = vpop.xlane.xlu0 %4811
  %v4813 = vsel %vm849, %v4753, 0.0
  %4814 = vadd.xlane.f32.xlu0 %v4813
  %v4815 = vpop.xlane.xlu0 %4814
  %v4816 = vsel %vm849, %v4755, 0.0
  %4817 = vadd.xlane.f32.xlu0 %v4816
  %v4818 = vpop.xlane.xlu0 %4817
  %v4819 = vsel %vm849, %v4757, 0.0
  %4820 = vadd.xlane.f32.xlu0 %v4819
  %v4821 = vpop.xlane.xlu0 %4820
  %v4822 = vsel %vm849, %v4759, 0.0
  %4823 = vadd.xlane.f32.xlu0 %v4822
  %v4824 = vpop.xlane.xlu0 %4823
  %v4825 = vsel %vm849, %v4761, 0.0
  %4826 = vadd.xlane.f32.xlu0 %v4825
  %v4827 = vpop.xlane.xlu0 %4826
  %v4828 = vsel %vm849, %v4763, 0.0
  %4829 = vadd.xlane.f32.xlu0 %v4828
  %v4830 = vpop.xlane.xlu0 %4829
  %v4831 = vsel %vm849, %v4765, 0.0
  %4832 = vadd.xlane.f32.xlu0 %v4831
  %v4833 = vpop.xlane.xlu0 %4832
  %v4834 = vsel %vm849, %v4767, 0.0
  %4835 = vadd.xlane.f32.xlu0 %v4834
  %v4836 = vpop.xlane.xlu0 %4835
  %v4837 = vsel %vm849, %v4769, 0.0
  %4838 = vadd.xlane.f32.xlu0 %v4837
  %v4839 = vpop.xlane.xlu0 %4838
  %v4840 = vsel %vm849, %v4771, 0.0
  %4841 = vadd.xlane.f32.xlu0 %v4840
  %v4842 = vpop.xlane.xlu0 %4841
  %v4843 = vsel %vm849, %v4773, 0.0
  %4844 = vadd.xlane.f32.xlu0 %v4843
  %v4845 = vpop.xlane.xlu0 %4844
  %v4846 = vrcp.pop %v4776
  %v4847 = vmul.f32 %v4727, %v4846
  %v4848 = vrcp.pop %v4779
  %v4849 = vmul.f32 %v4729, %v4848
  %v4850 = vrcp.pop %v4782
  %v4851 = vmul.f32 %v4731, %v4850
  %v4852 = vrcp.pop %v4785
  %v4853 = vmul.f32 %v4733, %v4852
  %v4854 = vrcp.pop %v4788
  %v4855 = vmul.f32 %v4735, %v4854
  %v4856 = vrcp.pop %v4791
  %v4857 = vmul.f32 %v4737, %v4856
  %v4858 = vrcp.pop %v4794
  %v4859 = vmul.f32 %v4739, %v4858
  %v4860 = vrcp.pop %v4797
  %v4861 = vmul.f32 %v4741, %v4860
  %v4862 = vrcp.pop %v4800
  %v4863 = vmul.f32 %v4743, %v4862
  %v4864 = vrcp.pop %v4803
  %v4865 = vmul.f32 %v4745, %v4864
  %v4866 = vrcp.pop %v4806
  %v4867 = vmul.f32 %v4747, %v4866
  %v4868 = vrcp.pop %v4809
  %v4869 = vmul.f32 %v4749, %v4868
  %v4870 = vrcp.pop %v4812
  %v4871 = vmul.f32 %v4751, %v4870
  %v4872 = vrcp.pop %v4815
  %v4873 = vmul.f32 %v4753, %v4872
  %v4874 = vrcp.pop %v4818
  %v4875 = vmul.f32 %v4755, %v4874
  %v4876 = vrcp.pop %v4821
  %v4877 = vmul.f32 %v4757, %v4876
  %v4878 = vrcp.pop %v4824
  %v4879 = vmul.f32 %v4759, %v4878
  %v4880 = vrcp.pop %v4827
  %v4881 = vmul.f32 %v4761, %v4880
  %v4882 = vrcp.pop %v4830
  %v4883 = vmul.f32 %v4763, %v4882
  %v4884 = vrcp.pop %v4833
  %v4885 = vmul.f32 %v4765, %v4884
  %v4886 = vrcp.pop %v4836
  %v4887 = vmul.f32 %v4767, %v4886
  %v4888 = vrcp.pop %v4839
  %v4889 = vmul.f32 %v4769, %v4888
  %v4890 = vrcp.pop %v4842
  %v4891 = vmul.f32 %v4771, %v4890
  %v4892 = vrcp.pop %v4845
  %v4893 = vmul.f32 %v4773, %v4892
  %v4894 = vpack.c.bf16 %v4849, %v4847
  %v4895 = vpack.c.bf16 %v4853, %v4851
  %v4896 = vpack.c.bf16 %v4857, %v4855
  %v4897 = vpack.c.bf16 %v4861, %v4859
  %v4898 = vpack.c.bf16 %v4865, %v4863
  %v4899 = vpack.c.bf16 %v4869, %v4867
  %v4900 = vpack.c.bf16 %v4873, %v4871
  %v4901 = vpack.c.bf16 %v4877, %v4875
  %v4902 = vpack.c.bf16 %v4881, %v4879
  %v4903 = vpack.c.bf16 %v4885, %v4883
  %v4904 = vpack.c.bf16 %v4889, %v4887
  %v4905 = vpack.c.bf16 %v4893, %v4891
  %4906 = vrot.lane.b32.xlu0 %v4282, 112
  %v4907 = vpop.permute.xlu0 %4906
  %4908 = vrot.lane.b32.xlu0 %v4283, 112
  %v4909 = vpop.permute.xlu0 %4908
  %4910 = vrot.lane.b32.xlu0 %v4284, 112
  %v4911 = vpop.permute.xlu0 %4910
  %v4916 = vsel %vm849, %v4894, 0
  %v4919 = vsel %vm849, %v4895, 0
  %v4922 = vsel %vm849, %v4896, 0
  %4924 = vmatprep.subr.bf16.mxu0 0
  %4925 = vmatpush1.bf16.msra.mxu0 %v4907
  %4926 = vmatprep.subr.bf16.mxu0 0
  %4927 = vmatpush1.bf16.msra.mxu0 %v4909
  %4928 = vmatprep.subr.bf16.mxu0 0
  %4929 = vmatpush1.bf16.msra.mxu0 %v4911
  %4930 = vmatprep.subr.bf16.mxu0 0
  %4931 = vmatpush1.bf16.msra.mxu0 0
  %4932 = vmatprep.subr.bf16.mxu0 0
  %4933 = vmatpush1.bf16.msra.mxu0 0
  %4934 = vmatprep.subr.bf16.mxu0 0
  %4935 = vmatpush1.bf16.msra.mxu0 0
  %4936 = vmatprep.subr.bf16.mxu0 0
  %4937 = vmatpush1.bf16.msra.mxu0 0
  %4938 = vmatprep.subr.bf16.mxu0 0
  %4939 = vmatpush1.bf16.msra.mxu0 0
  %4940 = vmatprep.subr.bf16.mxu0 0
  %4941 = vmatpush1.bf16.msra.mxu0 0
  %4942 = vmatprep.subr.bf16.mxu0 0
  %4943 = vmatpush1.bf16.msra.mxu0 0
  %4944 = vmatprep.subr.bf16.mxu0 0
  %4945 = vmatpush1.bf16.msra.mxu0 0
  %4946 = vmatprep.subr.bf16.mxu0 0
  %4947 = vmatpush1.bf16.msra.mxu0 0
  %4948 = vmatprep.subr.bf16.mxu0 0
  %4949 = vmatpush1.bf16.msra.mxu0 0
  %4950 = vmatprep.subr.bf16.mxu0 0
  %4951 = vmatpush1.bf16.msra.mxu0 0
  %4952 = vmatprep.subr.bf16.mxu0 0
  %4953 = vmatpush1.bf16.msra.mxu0 0
  %4954 = vmatprep.subr.bf16.mxu0 0
  %4955 = vmatpush1.bf16.msra.mxu0 0
  %4956 = vmatprep.mubr.bf16.mxu0 0
  %4957 = vmatmul.mubr.bf16.gmra.mrb[0].mxu0 %v4916
  %v4958 = vpop.f32.mrb[0].mxu0
  %v4959 = vadd.f32 0.0, %v4958
  %v4960 = vpop.f32.mrb[0].mxu0
  %v4961 = vpop.f32.mrb[0].mxu0
  %v4962 = vadd.f32 0.0, %v4961
  %v4963 = vpop.f32.mrb[0].mxu0
  %4964 = vmatprep.mubr.bf16.mxu0 0
  %4965 = vmatmul.mubr.bf16.gmra.mrb[0].mxu0 %v4919
  %v4966 = vpop.f32.mrb[0].mxu0
  %v4967 = vadd.f32 0.0, %v4966
  %v4968 = vpop.f32.mrb[0].mxu0
  %v4969 = vpop.f32.mrb[0].mxu0
  %v4970 = vadd.f32 0.0, %v4969
  %v4971 = vpop.f32.mrb[0].mxu0
  %4972 = vmatprep.mubr.bf16.mxu0 0
  %4973 = vmatmul.mubr.bf16.gmra.mrb[0].mxu0 %v4922
  %v4974 = vpop.f32.mrb[0].mxu0
  %v4975 = vadd.f32 0.0, %v4974
  %v4976 = vpop.f32.mrb[0].mxu0
  %v4977 = vpop.f32.mrb[0].mxu0
  %v4978 = vadd.f32 0.0, %v4977
  %v4979 = vpop.f32.mrb[0].mxu0
  %4980 = vdwg.mxu0
  %4981 = vrot.lane.b32.xlu0 %v4285, 112
  %v4982 = vpop.permute.xlu0 %4981
  %4983 = vrot.lane.b32.xlu0 %v4286, 112
  %v4984 = vpop.permute.xlu0 %4983
  %4985 = vrot.lane.b32.xlu0 %v4287, 112
  %v4986 = vpop.permute.xlu0 %4985
  %v4991 = vsel %vm849, %v4897, 0
  %v4994 = vsel %vm849, %v4898, 0
  %v4997 = vsel %vm849, %v4899, 0
  %4999 = vmatprep.subr.bf16.mxu0 0
  %5000 = vmatpush1.bf16.msra.mxu0 %v4982
  %5001 = vmatprep.subr.bf16.mxu0 0
  %5002 = vmatpush1.bf16.msra.mxu0 %v4984
  %5003 = vmatprep.subr.bf16.mxu0 0
  %5004 = vmatpush1.bf16.msra.mxu0 %v4986
  %5005 = vmatprep.subr.bf16.mxu0 0
  %5006 = vmatpush1.bf16.msra.mxu0 0
  %5007 = vmatprep.subr.bf16.mxu0 0
  %5008 = vmatpush1.bf16.msra.mxu0 0
  %5009 = vmatprep.subr.bf16.mxu0 0
  %5010 = vmatpush1.bf16.msra.mxu0 0
  %5011 = vmatprep.subr.bf16.mxu0 0
  %5012 = vmatpush1.bf16.msra.mxu0 0
  %5013 = vmatprep.subr.bf16.mxu0 0
  %5014 = vmatpush1.bf16.msra.mxu0 0
  %5015 = vmatprep.subr.bf16.mxu0 0
  %5016 = vmatpush1.bf16.msra.mxu0 0
  %5017 = vmatprep.subr.bf16.mxu0 0
  %5018 = vmatpush1.bf16.msra.mxu0 0
  %5019 = vmatprep.subr.bf16.mxu0 0
  %5020 = vmatpush1.bf16.msra.mxu0 0
  %5021 = vmatprep.subr.bf16.mxu0 0
  %5022 = vmatpush1.bf16.msra.mxu0 0
  %5023 = vmatprep.subr.bf16.mxu0 0
  %5024 = vmatpush1.bf16.msra.mxu0 0
  %5025 = vmatprep.subr.bf16.mxu0 0
  %5026 = vmatpush1.bf16.msra.mxu0 0
  %5027 = vmatprep.subr.bf16.mxu0 0
  %5028 = vmatpush1.bf16.msra.mxu0 0
  %5029 = vmatprep.subr.bf16.mxu0 0
  %5030 = vmatpush1.bf16.msra.mxu0 0
  %5031 = vmatprep.mubr.bf16.mxu0 0
  %5032 = vmatmul.mubr.bf16.gmra.mrb[0].mxu0 %v4991
  %v5033 = vpop.f32.mrb[0].mxu0
  %v5034 = vadd.f32 0.0, %v5033
  %v5035 = vpop.f32.mrb[0].mxu0
  %v5036 = vpop.f32.mrb[0].mxu0
  %v5037 = vadd.f32 0.0, %v5036
  %v5038 = vpop.f32.mrb[0].mxu0
  %5039 = vmatprep.mubr.bf16.mxu0 0
  %5040 = vmatmul.mubr.bf16.gmra.mrb[0].mxu0 %v4994
  %v5041 = vpop.f32.mrb[0].mxu0
  %v5042 = vadd.f32 0.0, %v5041
  %v5043 = vpop.f32.mrb[0].mxu0
  %v5044 = vpop.f32.mrb[0].mxu0
  %v5045 = vadd.f32 0.0, %v5044
  %v5046 = vpop.f32.mrb[0].mxu0
  %5047 = vmatprep.mubr.bf16.mxu0 0
  %5048 = vmatmul.mubr.bf16.gmra.mrb[0].mxu0 %v4997
  %v5049 = vpop.f32.mrb[0].mxu0
  %v5050 = vadd.f32 0.0, %v5049
  %v5051 = vpop.f32.mrb[0].mxu0
  %v5052 = vpop.f32.mrb[0].mxu0
  %v5053 = vadd.f32 0.0, %v5052
  %v5054 = vpop.f32.mrb[0].mxu0
  %5055 = vdwg.mxu0
  %5056 = vrot.lane.b32.xlu0 %v4288, 112
  %v5057 = vpop.permute.xlu0 %5056
  %5058 = vrot.lane.b32.xlu0 %v4289, 112
  %v5059 = vpop.permute.xlu0 %5058
  %5060 = vrot.lane.b32.xlu0 %v4290, 112
  %v5061 = vpop.permute.xlu0 %5060
  %v5066 = vsel %vm849, %v4900, 0
  %v5069 = vsel %vm849, %v4901, 0
  %v5072 = vsel %vm849, %v4902, 0
  %5074 = vmatprep.subr.bf16.mxu0 0
  %5075 = vmatpush1.bf16.msra.mxu0 %v5057
  %5076 = vmatprep.subr.bf16.mxu0 0
  %5077 = vmatpush1.bf16.msra.mxu0 %v5059
  %5078 = vmatprep.subr.bf16.mxu0 0
  %5079 = vmatpush1.bf16.msra.mxu0 %v5061
  %5080 = vmatprep.subr.bf16.mxu0 0
  %5081 = vmatpush1.bf16.msra.mxu0 0
  %5082 = vmatprep.subr.bf16.mxu0 0
  %5083 = vmatpush1.bf16.msra.mxu0 0
  %5084 = vmatprep.subr.bf16.mxu0 0
  %5085 = vmatpush1.bf16.msra.mxu0 0
  %5086 = vmatprep.subr.bf16.mxu0 0
  %5087 = vmatpush1.bf16.msra.mxu0 0
  %5088 = vmatprep.subr.bf16.mxu0 0
  %5089 = vmatpush1.bf16.msra.mxu0 0
  %5090 = vmatprep.subr.bf16.mxu0 0
  %5091 = vmatpush1.bf16.msra.mxu0 0
  %5092 = vmatprep.subr.bf16.mxu0 0
  %5093 = vmatpush1.bf16.msra.mxu0 0
  %5094 = vmatprep.subr.bf16.mxu0 0
  %5095 = vmatpush1.bf16.msra.mxu0 0
  %5096 = vmatprep.subr.bf16.mxu0 0
  %5097 = vmatpush1.bf16.msra.mxu0 0
  %5098 = vmatprep.subr.bf16.mxu0 0
  %5099 = vmatpush1.bf16.msra.mxu0 0
  %5100 = vmatprep.subr.bf16.mxu0 0
  %5101 = vmatpush1.bf16.msra.mxu0 0
  %5102 = vmatprep.subr.bf16.mxu0 0
  %5103 = vmatpush1.bf16.msra.mxu0 0
  %5104 = vmatprep.subr.bf16.mxu0 0
  %5105 = vmatpush1.bf16.msra.mxu0 0
  %5106 = vmatprep.mubr.bf16.mxu0 0
  %5107 = vmatmul.mubr.bf16.gmra.mrb[0].mxu0 %v5066
  %v5108 = vpop.f32.mrb[0].mxu0
  %v5109 = vadd.f32 0.0, %v5108
  %v5110 = vpop.f32.mrb[0].mxu0
  %v5111 = vpop.f32.mrb[0].mxu0
  %v5112 = vadd.f32 0.0, %v5111
  %v5113 = vpop.f32.mrb[0].mxu0
  %5114 = vmatprep.mubr.bf16.mxu0 0
  %5115 = vmatmul.mubr.bf16.gmra.mrb[0].mxu0 %v5069
  %v5116 = vpop.f32.mrb[0].mxu0
  %v5117 = vadd.f32 0.0, %v5116
  %v5118 = vpop.f32.mrb[0].mxu0
  %v5119 = vpop.f32.mrb[0].mxu0
  %v5120 = vadd.f32 0.0, %v5119
  %v5121 = vpop.f32.mrb[0].mxu0
  %5122 = vmatprep.mubr.bf16.mxu0 0
  %5123 = vmatmul.mubr.bf16.gmra.mrb[0].mxu0 %v5072
  %v5124 = vpop.f32.mrb[0].mxu0
  %v5125 = vadd.f32 0.0, %v5124
  %v5126 = vpop.f32.mrb[0].mxu0
  %v5127 = vpop.f32.mrb[0].mxu0
  %v5128 = vadd.f32 0.0, %v5127
  %v5129 = vpop.f32.mrb[0].mxu0
  %5130 = vdwg.mxu0
  %5131 = vrot.lane.b32.xlu0 %v4291, 112
  %v5132 = vpop.permute.xlu0 %5131
  %5133 = vrot.lane.b32.xlu0 %v4292, 112
  %v5134 = vpop.permute.xlu0 %5133
  %5135 = vrot.lane.b32.xlu0 %v4293, 112
  %v5136 = vpop.permute.xlu0 %5135
  %v5141 = vsel %vm849, %v4903, 0
  %v5144 = vsel %vm849, %v4904, 0
  %v5147 = vsel %vm849, %v4905, 0
  %5149 = vmatprep.subr.bf16.mxu0 0
  %5150 = vmatpush1.bf16.msra.mxu0 %v5132
  %5151 = vmatprep.subr.bf16.mxu0 0
  %5152 = vmatpush1.bf16.msra.mxu0 %v5134
  %5153 = vmatprep.subr.bf16.mxu0 0
  %5154 = vmatpush1.bf16.msra.mxu0 %v5136
  %5155 = vmatprep.subr.bf16.mxu0 0
  %5156 = vmatpush1.bf16.msra.mxu0 0
  %5157 = vmatprep.subr.bf16.mxu0 0
  %5158 = vmatpush1.bf16.msra.mxu0 0
  %5159 = vmatprep.subr.bf16.mxu0 0
  %5160 = vmatpush1.bf16.msra.mxu0 0
  %5161 = vmatprep.subr.bf16.mxu0 0
  %5162 = vmatpush1.bf16.msra.mxu0 0
  %5163 = vmatprep.subr.bf16.mxu0 0
  %5164 = vmatpush1.bf16.msra.mxu0 0
  %5165 = vmatprep.subr.bf16.mxu0 0
  %5166 = vmatpush1.bf16.msra.mxu0 0
  %5167 = vmatprep.subr.bf16.mxu0 0
  %5168 = vmatpush1.bf16.msra.mxu0 0
  %5169 = vmatprep.subr.bf16.mxu0 0
  %5170 = vmatpush1.bf16.msra.mxu0 0
  %5171 = vmatprep.subr.bf16.mxu0 0
  %5172 = vmatpush1.bf16.msra.mxu0 0
  %5173 = vmatprep.subr.bf16.mxu0 0
  %5174 = vmatpush1.bf16.msra.mxu0 0
  %5175 = vmatprep.subr.bf16.mxu0 0
  %5176 = vmatpush1.bf16.msra.mxu0 0
  %5177 = vmatprep.subr.bf16.mxu0 0
  %5178 = vmatpush1.bf16.msra.mxu0 0
  %5179 = vmatprep.subr.bf16.mxu0 0
  %5180 = vmatpush1.bf16.msra.mxu0 0
  %5181 = vmatprep.mubr.bf16.mxu0 0
  %5182 = vmatmul.mubr.bf16.gmra.mrb[0].mxu0 %v5141
  %v5183 = vpop.f32.mrb[0].mxu0
  %v5184 = vadd.f32 0.0, %v5183
  %v5185 = vpop.f32.mrb[0].mxu0
  %v5186 = vpop.f32.mrb[0].mxu0
  %v5187 = vadd.f32 0.0, %v5186
  %v5188 = vpop.f32.mrb[0].mxu0
  %5189 = vmatprep.mubr.bf16.mxu0 0
  %5190 = vmatmul.mubr.bf16.gmra.mrb[0].mxu0 %v5144
  %v5191 = vpop.f32.mrb[0].mxu0
  %v5192 = vadd.f32 0.0, %v5191
  %v5193 = vpop.f32.mrb[0].mxu0
  %v5194 = vpop.f32.mrb[0].mxu0
  %v5195 = vadd.f32 0.0, %v5194
  %v5196 = vpop.f32.mrb[0].mxu0
  %5197 = vmatprep.mubr.bf16.mxu0 0
  %5198 = vmatmul.mubr.bf16.gmra.mrb[0].mxu0 %v5147
  %v5199 = vpop.f32.mrb[0].mxu0
  %v5200 = vadd.f32 0.0, %v5199
  %v5201 = vpop.f32.mrb[0].mxu0
  %v5202 = vpop.f32.mrb[0].mxu0
  %v5203 = vadd.f32 0.0, %v5202
  %v5204 = vpop.f32.mrb[0].mxu0
  %5205 = vdwg.mxu0
  %v5206 = vpack.c.bf16 %v4962, %v4959
  %v5207 = vpack.c.bf16 %v4970, %v4967
  %v5208 = vpack.c.bf16 %v4978, %v4975
  %v5209 = vpack.c.bf16 %v5037, %v5034
  %v5210 = vpack.c.bf16 %v5045, %v5042
  %v5211 = vpack.c.bf16 %v5053, %v5050
  %v5212 = vpack.c.bf16 %v5112, %v5109
  %v5213 = vpack.c.bf16 %v5120, %v5117
  %v5214 = vpack.c.bf16 %v5128, %v5125
  %v5215 = vpack.c.bf16 %v5187, %v5184
  %v5216 = vpack.c.bf16 %v5195, %v5192
  %v5217 = vpack.c.bf16 %v5203, %v5200
  %s5218 = scalar_lea.vmem %s6, 32
  %v5219 = vld [vmem:[%s5218] sm:$0xf]
  %v5220 = vld [vmem:[%s5218 + $0x4] sm:$0xf]
  %v5221 = vld [vmem:[%s5218 + $0x8] sm:$0xf]
  %v5222 = vld [vmem:[%s5218 + $0xc] sm:$0xf]
  %v5224 = vsel %vm521, %v5206, 0
  %v5227 = vsel %vm521, %v5207, 0
  %v5230 = vsel %vm521, %v5208, 0
  %v5233 = vsel %vm1451, %v5219, 0
  %5235 = vmatprep.subr.bf16.mxu0 0
  %5236 = vmatpush1.bf16.msra.mxu0 %v5233
  %5237 = vmatprep.subr.bf16.mxu0 0
  %5238 = vmatpush1.bf16.msra.mxu0 0
  %5239 = vmatprep.subr.bf16.mxu0 0
  %5240 = vmatpush1.bf16.msra.mxu0 0
  %5241 = vmatprep.subr.bf16.mxu0 0
  %5242 = vmatpush1.bf16.msra.mxu0 0
  %5243 = vmatprep.subr.bf16.mxu0 0
  %5244 = vmatpush1.bf16.msra.mxu0 0
  %5245 = vmatprep.subr.bf16.mxu0 0
  %5246 = vmatpush1.bf16.msra.mxu0 0
  %5247 = vmatprep.subr.bf16.mxu0 0
  %5248 = vmatpush1.bf16.msra.mxu0 0
  %5249 = vmatprep.subr.bf16.mxu0 0
  %5250 = vmatpush1.bf16.msra.mxu0 0
  %5251 = vmatprep.subr.bf16.mxu0 0
  %5252 = vmatpush1.bf16.msra.mxu0 0
  %5253 = vmatprep.subr.bf16.mxu0 0
  %5254 = vmatpush1.bf16.msra.mxu0 0
  %5255 = vmatprep.subr.bf16.mxu0 0
  %5256 = vmatpush1.bf16.msra.mxu0 0
  %5257 = vmatprep.subr.bf16.mxu0 0
  %5258 = vmatpush1.bf16.msra.mxu0 0
  %5259 = vmatprep.subr.bf16.mxu0 0
  %5260 = vmatpush1.bf16.msra.mxu0 0
  %5261 = vmatprep.subr.bf16.mxu0 0
  %5262 = vmatpush1.bf16.msra.mxu0 0
  %5263 = vmatprep.subr.bf16.mxu0 0
  %5264 = vmatpush1.bf16.msra.mxu0 0
  %5265 = vmatprep.subr.bf16.mxu0 0
  %5266 = vmatpush1.bf16.msra.mxu0 0
  %5267 = vmatprep.mubr.bf16.mxu0 0
  %5268 = vmatmul.mubr.bf16.gmra.mrb[0].mxu0 %v5224
  %v5269 = vpop.f32.mrb[0].mxu0
  %v5270 = vadd.f32 0.0, %v5269
  %v5271 = vpop.f32.mrb[0].mxu0
  %v5272 = vpop.f32.mrb[0].mxu0
  %v5273 = vadd.f32 0.0, %v5272
  %v5274 = vpop.f32.mrb[0].mxu0
  %5275 = vmatprep.mubr.bf16.mxu0 0
  %5276 = vmatmul.mubr.bf16.gmra.mrb[0].mxu0 %v5227
  %v5277 = vpop.f32.mrb[0].mxu0
  %v5278 = vadd.f32 0.0, %v5277
  %v5279 = vpop.f32.mrb[0].mxu0
  %v5280 = vpop.f32.mrb[0].mxu0
  %v5281 = vadd.f32 0.0, %v5280
  %v5282 = vpop.f32.mrb[0].mxu0
  %5283 = vmatprep.mubr.bf16.mxu0 0
  %5284 = vmatmul.mubr.bf16.gmra.mrb[0].mxu0 %v5230
  %v5285 = vpop.f32.mrb[0].mxu0
  %v5286 = vadd.f32 0.0, %v5285
  %v5287 = vpop.f32.mrb[0].mxu0
  %v5288 = vpop.f32.mrb[0].mxu0
  %v5289 = vadd.f32 0.0, %v5288
  %v5290 = vpop.f32.mrb[0].mxu0
  %5291 = vdwg.mxu0
  %v5293 = vsel %vm521, %v5209, 0
  %v5296 = vsel %vm521, %v5210, 0
  %v5299 = vsel %vm521, %v5211, 0
  %v5302 = vsel %vm1451, %v5220, 0
  %5304 = vmatprep.subr.bf16.mxu0 0
  %5305 = vmatpush1.bf16.msra.mxu0 %v5302
  %5306 = vmatprep.subr.bf16.mxu0 0
  %5307 = vmatpush1.bf16.msra.mxu0 0
  %5308 = vmatprep.subr.bf16.mxu0 0
  %5309 = vmatpush1.bf16.msra.mxu0 0
  %5310 = vmatprep.subr.bf16.mxu0 0
  %5311 = vmatpush1.bf16.msra.mxu0 0
  %5312 = vmatprep.subr.bf16.mxu0 0
  %5313 = vmatpush1.bf16.msra.mxu0 0
  %5314 = vmatprep.subr.bf16.mxu0 0
  %5315 = vmatpush1.bf16.msra.mxu0 0
  %5316 = vmatprep.subr.bf16.mxu0 0
  %5317 = vmatpush1.bf16.msra.mxu0 0
  %5318 = vmatprep.subr.bf16.mxu0 0
  %5319 = vmatpush1.bf16.msra.mxu0 0
  %5320 = vmatprep.subr.bf16.mxu0 0
  %5321 = vmatpush1.bf16.msra.mxu0 0
  %5322 = vmatprep.subr.bf16.mxu0 0
  %5323 = vmatpush1.bf16.msra.mxu0 0
  %5324 = vmatprep.subr.bf16.mxu0 0
  %5325 = vmatpush1.bf16.msra.mxu0 0
  %5326 = vmatprep.subr.bf16.mxu0 0
  %5327 = vmatpush1.bf16.msra.mxu0 0
  %5328 = vmatprep.subr.bf16.mxu0 0
  %5329 = vmatpush1.bf16.msra.mxu0 0
  %5330 = vmatprep.subr.bf16.mxu0 0
  %5331 = vmatpush1.bf16.msra.mxu0 0
  %5332 = vmatprep.subr.bf16.mxu0 0
  %5333 = vmatpush1.bf16.msra.mxu0 0
  %5334 = vmatprep.subr.bf16.mxu0 0
  %5335 = vmatpush1.bf16.msra.mxu0 0
  %5336 = vmatprep.mubr.bf16.mxu0 0
  %5337 = vmatmul.mubr.bf16.gmra.mrb[0].mxu0 %v5293
  %v5338 = vpop.f32.mrb[0].mxu0
  %v5339 = vadd.f32 0.0, %v5338
  %v5340 = vpop.f32.mrb[0].mxu0
  %v5341 = vpop.f32.mrb[0].mxu0
  %v5342 = vadd.f32 0.0, %v5341
  %v5343 = vpop.f32.mrb[0].mxu0
  %5344 = vmatprep.mubr.bf16.mxu0 0
  %5345 = vmatmul.mubr.bf16.gmra.mrb[0].mxu0 %v5296
  %v5346 = vpop.f32.mrb[0].mxu0
  %v5347 = vadd.f32 0.0, %v5346
  %v5348 = vpop.f32.mrb[0].mxu0
  %v5349 = vpop.f32.mrb[0].mxu0
  %v5350 = vadd.f32 0.0, %v5349
  %v5351 = vpop.f32.mrb[0].mxu0
  %5352 = vmatprep.mubr.bf16.mxu0 0
  %5353 = vmatmul.mubr.bf16.gmra.mrb[0].mxu0 %v5299
  %v5354 = vpop.f32.mrb[0].mxu0
  %v5355 = vadd.f32 0.0, %v5354
  %v5356 = vpop.f32.mrb[0].mxu0
  %v5357 = vpop.f32.mrb[0].mxu0
  %v5358 = vadd.f32 0.0, %v5357
  %v5359 = vpop.f32.mrb[0].mxu0
  %5360 = vdwg.mxu0
  %v5362 = vsel %vm521, %v5212, 0
  %v5365 = vsel %vm521, %v5213, 0
  %v5368 = vsel %vm521, %v5214, 0
  %v5371 = vsel %vm1451, %v5221, 0
  %5373 = vmatprep.subr.bf16.mxu0 0
  %5374 = vmatpush1.bf16.msra.mxu0 %v5371
  %5375 = vmatprep.subr.bf16.mxu0 0
  %5376 = vmatpush1.bf16.msra.mxu0 0
  %5377 = vmatprep.subr.bf16.mxu0 0
  %5378 = vmatpush1.bf16.msra.mxu0 0
  %5379 = vmatprep.subr.bf16.mxu0 0
  %5380 = vmatpush1.bf16.msra.mxu0 0
  %5381 = vmatprep.subr.bf16.mxu0 0
  %5382 = vmatpush1.bf16.msra.mxu0 0
  %5383 = vmatprep.subr.bf16.mxu0 0
  %5384 = vmatpush1.bf16.msra.mxu0 0
  %5385 = vmatprep.subr.bf16.mxu0 0
  %5386 = vmatpush1.bf16.msra.mxu0 0
  %5387 = vmatprep.subr.bf16.mxu0 0
  %5388 = vmatpush1.bf16.msra.mxu0 0
  %5389 = vmatprep.subr.bf16.mxu0 0
  %5390 = vmatpush1.bf16.msra.mxu0 0
  %5391 = vmatprep.subr.bf16.mxu0 0
  %5392 = vmatpush1.bf16.msra.mxu0 0
  %5393 = vmatprep.subr.bf16.mxu0 0
  %5394 = vmatpush1.bf16.msra.mxu0 0
  %5395 = vmatprep.subr.bf16.mxu0 0
  %5396 = vmatpush1.bf16.msra.mxu0 0
  %5397 = vmatprep.subr.bf16.mxu0 0
  %5398 = vmatpush1.bf16.msra.mxu0 0
  %5399 = vmatprep.subr.bf16.mxu0 0
  %5400 = vmatpush1.bf16.msra.mxu0 0
  %5401 = vmatprep.subr.bf16.mxu0 0
  %5402 = vmatpush1.bf16.msra.mxu0 0
  %5403 = vmatprep.subr.bf16.mxu0 0
  %5404 = vmatpush1.bf16.msra.mxu0 0
  %5405 = vmatprep.mubr.bf16.mxu0 0
  %5406 = vmatmul.mubr.bf16.gmra.mrb[0].mxu0 %v5362
  %v5407 = vpop.f32.mrb[0].mxu0
  %v5408 = vadd.f32 0.0, %v5407
  %v5409 = vpop.f32.mrb[0].mxu0
  %v5410 = vpop.f32.mrb[0].mxu0
  %v5411 = vadd.f32 0.0, %v5410
  %v5412 = vpop.f32.mrb[0].mxu0
  %5413 = vmatprep.mubr.bf16.mxu0 0
  %5414 = vmatmul.mubr.bf16.gmra.mrb[0].mxu0 %v5365
  %v5415 = vpop.f32.mrb[0].mxu0
  %v5416 = vadd.f32 0.0, %v5415
  %v5417 = vpop.f32.mrb[0].mxu0
  %v5418 = vpop.f32.mrb[0].mxu0
  %v5419 = vadd.f32 0.0, %v5418
  %v5420 = vpop.f32.mrb[0].mxu0
  %5421 = vmatprep.mubr.bf16.mxu0 0
  %5422 = vmatmul.mubr.bf16.gmra.mrb[0].mxu0 %v5368
  %v5423 = vpop.f32.mrb[0].mxu0
  %v5424 = vadd.f32 0.0, %v5423
  %v5425 = vpop.f32.mrb[0].mxu0
  %v5426 = vpop.f32.mrb[0].mxu0
  %v5427 = vadd.f32 0.0, %v5426
  %v5428 = vpop.f32.mrb[0].mxu0
  %5429 = vdwg.mxu0
  %v5431 = vsel %vm521, %v5215, 0
  %v5434 = vsel %vm521, %v5216, 0
  %v5437 = vsel %vm521, %v5217, 0
  %v5440 = vsel %vm1451, %v5222, 0
  %5442 = vmatprep.subr.bf16.mxu0 0
  %5443 = vmatpush1.bf16.msra.mxu0 %v5440
  %5444 = vmatprep.subr.bf16.mxu0 0
  %5445 = vmatpush1.bf16.msra.mxu0 0
  %5446 = vmatprep.subr.bf16.mxu0 0
  %5447 = vmatpush1.bf16.msra.mxu0 0
  %5448 = vmatprep.subr.bf16.mxu0 0
  %5449 = vmatpush1.bf16.msra.mxu0 0
  %5450 = vmatprep.subr.bf16.mxu0 0
  %5451 = vmatpush1.bf16.msra.mxu0 0
  %5452 = vmatprep.subr.bf16.mxu0 0
  %5453 = vmatpush1.bf16.msra.mxu0 0
  %5454 = vmatprep.subr.bf16.mxu0 0
  %5455 = vmatpush1.bf16.msra.mxu0 0
  %5456 = vmatprep.subr.bf16.mxu0 0
  %5457 = vmatpush1.bf16.msra.mxu0 0
  %5458 = vmatprep.subr.bf16.mxu0 0
  %5459 = vmatpush1.bf16.msra.mxu0 0
  %5460 = vmatprep.subr.bf16.mxu0 0
  %5461 = vmatpush1.bf16.msra.mxu0 0
  %5462 = vmatprep.subr.bf16.mxu0 0
  %5463 = vmatpush1.bf16.msra.mxu0 0
  %5464 = vmatprep.subr.bf16.mxu0 0
  %5465 = vmatpush1.bf16.msra.mxu0 0
  %5466 = vmatprep.subr.bf16.mxu0 0
  %5467 = vmatpush1.bf16.msra.mxu0 0
  %5468 = vmatprep.subr.bf16.mxu0 0
  %5469 = vmatpush1.bf16.msra.mxu0 0
  %5470 = vmatprep.subr.bf16.mxu0 0
  %5471 = vmatpush1.bf16.msra.mxu0 0
  %5472 = vmatprep.subr.bf16.mxu0 0
  %5473 = vmatpush1.bf16.msra.mxu0 0
  %5474 = vmatprep.mubr.bf16.mxu0 0
  %5475 = vmatmul.mubr.bf16.gmra.mrb[0].mxu0 %v5431
  %v5476 = vpop.f32.mrb[0].mxu0
  %v5477 = vadd.f32 0.0, %v5476
  %v5478 = vpop.f32.mrb[0].mxu0
  %v5479 = vpop.f32.mrb[0].mxu0
  %v5480 = vadd.f32 0.0, %v5479
  %v5481 = vpop.f32.mrb[0].mxu0
  %5482 = vmatprep.mubr.bf16.mxu0 0
  %5483 = vmatmul.mubr.bf16.gmra.mrb[0].mxu0 %v5434
  %v5484 = vpop.f32.mrb[0].mxu0
  %v5485 = vadd.f32 0.0, %v5484
  %v5486 = vpop.f32.mrb[0].mxu0
  %v5487 = vpop.f32.mrb[0].mxu0
  %v5488 = vadd.f32 0.0, %v5487
  %v5489 = vpop.f32.mrb[0].mxu0
  %5490 = vmatprep.mubr.bf16.mxu0 0
  %5491 = vmatmul.mubr.bf16.gmra.mrb[0].mxu0 %v5437
  %v5492 = vpop.f32.mrb[0].mxu0
  %v5493 = vadd.f32 0.0, %v5492
  %v5494 = vpop.f32.mrb[0].mxu0
  %v5495 = vpop.f32.mrb[0].mxu0
  %v5496 = vadd.f32 0.0, %v5495
  %v5497 = vpop.f32.mrb[0].mxu0
  %5498 = vdwg.mxu0
  %v5499 = vsel %vm62, %v5270, 0.0
  %v5500 = vsel %vm62, %v5339, 0.0
  %v5501 = vadd.f32 %v5499, %v5500
  %v5502 = vsel %vm62, %v5408, 0.0
  %v5503 = vadd.f32 %v5501, %v5502
  %v5504 = vsel %vm62, %v5477, 0.0
  %v5505 = vadd.f32 %v5503, %v5504
  %v5506 = vsel %vm62, %v5273, 0.0
  %v5507 = vsel %vm62, %v5342, 0.0
  %v5508 = vadd.f32 %v5506, %v5507
  %v5509 = vsel %vm62, %v5411, 0.0
  %v5510 = vadd.f32 %v5508, %v5509
  %v5511 = vsel %vm62, %v5480, 0.0
  %v5512 = vadd.f32 %v5510, %v5511
  %v5513 = vsel %vm62, %v5278, 0.0
  %v5514 = vsel %vm62, %v5347, 0.0
  %v5515 = vadd.f32 %v5513, %v5514
  %v5516 = vsel %vm62, %v5416, 0.0
  %v5517 = vadd.f32 %v5515, %v5516
  %v5518 = vsel %vm62, %v5485, 0.0
  %v5519 = vadd.f32 %v5517, %v5518
  %v5520 = vsel %vm62, %v5281, 0.0
  %v5521 = vsel %vm62, %v5350, 0.0
  %v5522 = vadd.f32 %v5520, %v5521
  %v5523 = vsel %vm62, %v5419, 0.0
  %v5524 = vadd.f32 %v5522, %v5523
  %v5525 = vsel %vm62, %v5488, 0.0
  %v5526 = vadd.f32 %v5524, %v5525
  %v5527 = vsel %vm62, %v5286, 0.0
  %v5528 = vsel %vm62, %v5355, 0.0
  %v5529 = vadd.f32 %v5527, %v5528
  %v5530 = vsel %vm62, %v5424, 0.0
  %v5531 = vadd.f32 %v5529, %v5530
  %v5532 = vsel %vm62, %v5493, 0.0
  %v5533 = vadd.f32 %v5531, %v5532
  %v5534 = vsel %vm62, %v5289, 0.0
  %v5535 = vsel %vm62, %v5358, 0.0
  %v5536 = vadd.f32 %v5534, %v5535
  %v5537 = vsel %vm62, %v5427, 0.0
  %v5538 = vadd.f32 %v5536, %v5537
  %v5539 = vsel %vm62, %v5496, 0.0
  %v5540 = vadd.f32 %v5538, %v5539
  %v5542 = vlaneseq
  %v5543 = vshrl.u32 %v5542, 7
  %v5544 = vsub.s32 0, %v5543
  %v5545 = vrot.slane %v60, %v5544
  %v5547 = vadd.f32 %v5505, %v5545
  %v5548 = vadd.f32 %v5512, %v5545
  %v5549 = vadd.f32 %v5519, %v5545
  %v5550 = vadd.f32 %v5526, %v5545
  %v5551 = vadd.f32 %v5533, %v5545
  %v5552 = vadd.f32 %v5540, %v5545
  %v5553 = vadd.f32 %v3495, %v5547
  %v5554 = vadd.f32 %v3496, %v5548
  %v5555 = vadd.f32 %v3497, %v5549
  %v5556 = vadd.f32 %v3498, %v5550
  %v5557 = vadd.f32 %v3499, %v5551
  %v5558 = vadd.f32 %v3500, %v5552
  %v5559 = vsel %vm62, %v5553, 0.0
  %5560 = vadd.xlane.f32.xlu0 %v5559
  %v5561 = vpop.xlane.xlu0 %5560
  %v5562 = vsel %vm62, %v5554, 0.0
  %5563 = vadd.xlane.f32.xlu0 %v5562
  %v5564 = vpop.xlane.xlu0 %5563
  %v5565 = vsel %vm62, %v5555, 0.0
  %5566 = vadd.xlane.f32.xlu0 %v5565
  %v5567 = vpop.xlane.xlu0 %5566
  %v5568 = vsel %vm62, %v5556, 0.0
  %5569 = vadd.xlane.f32.xlu0 %v5568
  %v5570 = vpop.xlane.xlu0 %5569
  %v5571 = vsel %vm62, %v5557, 0.0
  %5572 = vadd.xlane.f32.xlu0 %v5571
  %v5573 = vpop.xlane.xlu0 %5572
  %v5574 = vsel %vm62, %v5558, 0.0
  %5575 = vadd.xlane.f32.xlu0 %v5574
  %v5576 = vpop.xlane.xlu0 %5575
  %v5577 = vmul.f32 %v5561, %v81
  %v5578 = vmul.f32 %v5564, %v81
  %v5579 = vmul.f32 %v5567, %v81
  %v5580 = vmul.f32 %v5570, %v81
  %v5581 = vmul.f32 %v5573, %v81
  %v5582 = vmul.f32 %v5576, %v81
  %v5583 = vsub.f32 %v5553, %v5577
  %v5584 = vsub.f32 %v5554, %v5578
  %v5585 = vsub.f32 %v5555, %v5579
  %v5586 = vsub.f32 %v5556, %v5580
  %v5587 = vsub.f32 %v5557, %v5581
  %v5588 = vsub.f32 %v5558, %v5582
  %v5589 = vmul.f32 %v5583, %v5583
  %v5590 = vmul.f32 %v5584, %v5584
  %v5591 = vmul.f32 %v5585, %v5585
  %v5592 = vmul.f32 %v5586, %v5586
  %v5593 = vmul.f32 %v5587, %v5587
  %v5594 = vmul.f32 %v5588, %v5588
  %v5595 = vsel %vm62, %v5589, 0.0
  %5596 = vadd.xlane.f32.xlu0 %v5595
  %v5597 = vpop.xlane.xlu0 %5596
  %v5598 = vsel %vm62, %v5590, 0.0
  %5599 = vadd.xlane.f32.xlu0 %v5598
  %v5600 = vpop.xlane.xlu0 %5599
  %v5601 = vsel %vm62, %v5591, 0.0
  %5602 = vadd.xlane.f32.xlu0 %v5601
  %v5603 = vpop.xlane.xlu0 %5602
  %v5604 = vsel %vm62, %v5592, 0.0
  %5605 = vadd.xlane.f32.xlu0 %v5604
  %v5606 = vpop.xlane.xlu0 %5605
  %v5607 = vsel %vm62, %v5593, 0.0
  %5608 = vadd.xlane.f32.xlu0 %v5607
  %v5609 = vpop.xlane.xlu0 %5608
  %v5610 = vsel %vm62, %v5594, 0.0
  %5611 = vadd.xlane.f32.xlu0 %v5610
  %v5612 = vpop.xlane.xlu0 %5611
  %v5613 = vmul.f32 %v5597, %v81
  %v5614 = vmul.f32 %v5600, %v81
  %v5615 = vmul.f32 %v5603, %v81
  %v5616 = vmul.f32 %v5606, %v81
  %v5617 = vmul.f32 %v5609, %v81
  %v5618 = vmul.f32 %v5612, %v81
  %v5619 = vadd.f32 %v5613, 1e-05
  %v5620 = vadd.f32 %v5614, 1e-05
  %v5621 = vadd.f32 %v5615, 1e-05
  %v5622 = vadd.f32 %v5616, 1e-05
  %v5623 = vadd.f32 %v5617, 1e-05
  %v5624 = vadd.f32 %v5618, 1e-05
  %v5625 = vrsqrt.pop %v5619
  %v5626 = vrsqrt.pop %v5620
  %v5627 = vrsqrt.pop %v5621
  %v5628 = vrsqrt.pop %v5622
  %v5629 = vrsqrt.pop %v5623
  %v5630 = vrsqrt.pop %v5624
  %v5631 = vmul.f32 %v5583, %v5625
  %v5632 = vmul.f32 %v5584, %v5626
  %v5633 = vmul.f32 %v5585, %v5627
  %v5634 = vmul.f32 %v5586, %v5628
  %v5635 = vmul.f32 %v5587, %v5629
  %v5636 = vmul.f32 %v5588, %v5630
  %v5638 = vlaneseq
  %v5639 = vshrl.u32 %v5638, 7
  %v5640 = vsub.s32 0, %v5639
  %v5641 = vrot.slane %v53, %v5640
  %v5643 = vmul.f32 %v5631, %v5641
  %v5644 = vmul.f32 %v5632, %v5641
  %v5645 = vmul.f32 %v5633, %v5641
  %v5646 = vmul.f32 %v5634, %v5641
  %v5647 = vmul.f32 %v5635, %v5641
  %v5648 = vmul.f32 %v5636, %v5641
  %v5650 = vlaneseq
  %v5651 = vshrl.u32 %v5650, 7
  %v5652 = vsub.s32 0, %v5651
  %v5653 = vrot.slane %v57, %v5652
  %v5655 = vadd.f32 %v5643, %v5653
  %v5656 = vadd.f32 %v5644, %v5653
  %v5657 = vadd.f32 %v5645, %v5653
  %v5658 = vadd.f32 %v5646, %v5653
  %v5659 = vadd.f32 %v5647, %v5653
  %v5660 = vadd.f32 %v5648, %v5653
  %v5661 = vpack.c.bf16 %v5656, %v5655
  %v5662 = vpack.c.bf16 %v5658, %v5657
  %v5663 = vpack.c.bf16 %v5660, %v5659
  %v5664 = vld [vmem:[%s7] sm:$0xf]
  %v5665 = vld [vmem:[%s7 + $0x4] sm:$0xf]
  %v5666 = vld [vmem:[%s7 + $0x8] sm:$0xf]
  %v5667 = vld [vmem:[%s7 + $0xc] sm:$0xf]
  %v5668 = vld [vmem:[%s4] sm:$0x1]
  %v5670 = vlaneseq
  %v5671 = vshrl.u32 %v5670, 7
  %v5672 = vsub.s32 0, %v5671
  %v5673 = vrot.slane %v5668, %v5672
  %v5679 = vunpack.c.l.b16 %v5664
  %v5680 = vunpack.c.l.b16 %v5665
  %v5681 = vunpack.c.l.b16 %v5666
  %v5682 = vunpack.c.l.b16 %v5667
  %v5683 = vpack.c.b16 %v5680, %v5679
  %v5684 = vpack.c.b16 %v5682, %v5681
  %v5688 = vsel %vm62, %v5661, 0
  %v5691 = vsel %vm62, %v5662, 0
  %v5694 = vsel %vm62, %v5663, 0
  %5696 = vmatprep.subr.bf16.mxu0 0
  %5697 = vmatpush1.bf16.msra.mxu0 %v5683
  %5698 = vmatprep.subr.bf16.mxu0 0
  %5699 = vmatpush1.bf16.msra.mxu0 %v5684
  %5700 = vmatprep.subr.bf16.mxu0 0
  %5701 = vmatpush1.bf16.msra.mxu0 0
  %5702 = vmatprep.subr.bf16.mxu0 0
  %5703 = vmatpush1.bf16.msra.mxu0 0
  %5704 = vmatprep.subr.bf16.mxu0 0
  %5705 = vmatpush1.bf16.msra.mxu0 0
  %5706 = vmatprep.subr.bf16.mxu0 0
  %5707 = vmatpush1.bf16.msra.mxu0 0
  %5708 = vmatprep.subr.bf16.mxu0 0
  %5709 = vmatpush1.bf16.msra.mxu0 0
  %5710 = vmatprep.subr.bf16.mxu0 0
  %5711 = vmatpush1.bf16.msra.mxu0 0
  %5712 = vmatprep.subr.bf16.mxu0 0
  %5713 = vmatpush1.bf16.msra.mxu0 0
  %5714 = vmatprep.subr.bf16.mxu0 0
  %5715 = vmatpush1.bf16.msra.mxu0 0
  %5716 = vmatprep.subr.bf16.mxu0 0
  %5717 = vmatpush1.bf16.msra.mxu0 0
  %5718 = vmatprep.subr.bf16.mxu0 0
  %5719 = vmatpush1.bf16.msra.mxu0 0
  %5720 = vmatprep.subr.bf16.mxu0 0
  %5721 = vmatpush1.bf16.msra.mxu0 0
  %5722 = vmatprep.subr.bf16.mxu0 0
  %5723 = vmatpush1.bf16.msra.mxu0 0
  %5724 = vmatprep.subr.bf16.mxu0 0
  %5725 = vmatpush1.bf16.msra.mxu0 0
  %5726 = vmatprep.subr.bf16.mxu0 0
  %5727 = vmatpush1.bf16.msra.mxu0 0
  %5728 = vmatprep.mubr.bf16.mxu0 0
  %5729 = vmatmul.mubr.bf16.gmra.mrb[0].mxu0 %v5688
  %v5730 = vpop.f32.mrb[0].mxu0
  %v5731 = vadd.f32 %v5673, %v5730
  %v5732 = vpop.f32.mrb[0].mxu0
  %v5733 = vpop.f32.mrb[0].mxu0
  %v5734 = vadd.f32 %v5673, %v5733
  %v5735 = vpop.f32.mrb[0].mxu0
  %5736 = vmatprep.mubr.bf16.mxu0 0
  %5737 = vmatmul.mubr.bf16.gmra.mrb[0].mxu0 %v5691
  %v5738 = vpop.f32.mrb[0].mxu0
  %v5739 = vadd.f32 %v5673, %v5738
  %v5740 = vpop.f32.mrb[0].mxu0
  %v5741 = vpop.f32.mrb[0].mxu0
  %v5742 = vadd.f32 %v5673, %v5741
  %v5743 = vpop.f32.mrb[0].mxu0
  %5744 = vmatprep.mubr.bf16.mxu0 0
  %5745 = vmatmul.mubr.bf16.gmra.mrb[0].mxu0 %v5694
  %v5746 = vpop.f32.mrb[0].mxu0
  %v5747 = vadd.f32 %v5673, %v5746
  %v5748 = vpop.f32.mrb[0].mxu0
  %v5749 = vpop.f32.mrb[0].mxu0
  %v5750 = vadd.f32 %v5673, %v5749
  %v5751 = vpop.f32.mrb[0].mxu0
  %5752 = vdwg.mxu0
  %v5753 = vmax.f32 %v5731, 0.0
  %v5754 = vmax.f32 %v5734, 0.0
  %v5755 = vmax.f32 %v5739, 0.0
  %v5756 = vmax.f32 %v5742, 0.0
  %v5757 = vmax.f32 %v5747, 0.0
  %v5758 = vmax.f32 %v5750, 0.0
  %v5759 = vpack.c.bf16 %v5754, %v5753
  %v5760 = vpack.c.bf16 %v5756, %v5755
  %v5761 = vpack.c.bf16 %v5758, %v5757
  %s5762 = scalar_lea.vmem %s7, 16
  %v5763 = vld [vmem:[%s5762] sm:$0xf]
  %v5764 = vld [vmem:[%s5762 + $0x4] sm:$0xf]
  %v5765 = vld [vmem:[%s5762 + $0x8] sm:$0xf]
  %v5766 = vld [vmem:[%s5762 + $0xc] sm:$0xf]
  %v5768 = vlaneseq
  %v5769 = vshrl.u32 %v5768, 7
  %v5770 = vsub.s32 0, %v5769
  %v5771 = vrot.slane %v61, %v5770
  %v5777 = vunpack.c.l.b16 %v5763
  %v5778 = vunpack.c.l.b16 %v5764
  %v5779 = vunpack.c.l.b16 %v5765
  %v5780 = vunpack.c.l.b16 %v5766
  %v5781 = vpack.c.b16 %v5778, %v5777
  %v5782 = vpack.c.b16 %v5780, %v5779
  %5785 = vmatprep.subr.bf16.mxu0 0
  %5786 = vmatpush1.bf16.xpose.msra.mxu0 %v5781
  %5787 = vmatprep.subr.bf16.mxu0 0
  %5788 = vmatpush1.bf16.xpose.msra.mxu0 %v5782
  %5789 = vmatprep.subr.bf16.mxu0 0
  %5790 = vmatpush1.bf16.xpose.msra.mxu0 0
  %5791 = vmatprep.subr.bf16.mxu0 0
  %5792 = vmatpush1.bf16.xpose.msra.mxu0 0
  %5793 = vmatprep.subr.bf16.mxu0 0
  %5794 = vmatpush1.bf16.xpose.msra.mxu0 0
  %5795 = vmatprep.subr.bf16.mxu0 0
  %5796 = vmatpush1.bf16.xpose.msra.mxu0 0
  %5797 = vmatprep.subr.bf16.mxu0 0
  %5798 = vmatpush1.bf16.xpose.msra.mxu0 0
  %5799 = vmatprep.subr.bf16.mxu0 0
  %5800 = vmatpush1.bf16.xpose.msra.mxu0 0
  %5801 = vmatprep.subr.bf16.mxu0 0
  %5802 = vmatpush1.bf16.xpose.msra.mxu0 0
  %5803 = vmatprep.subr.bf16.mxu0 0
  %5804 = vmatpush1.bf16.xpose.msra.mxu0 0
  %5805 = vmatprep.subr.bf16.mxu0 0
  %5806 = vmatpush1.bf16.xpose.msra.mxu0 0
  %5807 = vmatprep.subr.bf16.mxu0 0
  %5808 = vmatpush1.bf16.xpose.msra.mxu0 0
  %5809 = vmatprep.subr.bf16.mxu0 0
  %5810 = vmatpush1.bf16.xpose.msra.mxu0 0
  %5811 = vmatprep.subr.bf16.mxu0 0
  %5812 = vmatpush1.bf16.xpose.msra.mxu0 0
  %5813 = vmatprep.subr.bf16.mxu0 0
  %5814 = vmatpush1.bf16.xpose.msra.mxu0 0
  %5815 = vmatprep.subr.bf16.mxu0 0
  %5816 = vmatpush1.bf16.xpose.msra.mxu0 0
  %5817 = vmatprep.mubr.bf16.mxu0 0
  %5818 = vmatmul.mubr.bf16.gmra.mrb[0].mxu0 %v5759
  %v5819 = vpop.f32.mrb[0].mxu0
  %v5820 = vadd.f32 %v5771, %v5819
  %v5821 = vpop.f32.mrb[0].mxu0
  %v5822 = vpop.f32.mrb[0].mxu0
  %v5823 = vadd.f32 %v5771, %v5822
  %v5824 = vpop.f32.mrb[0].mxu0
  %5825 = vmatprep.mubr.bf16.mxu0 0
  %5826 = vmatmul.mubr.bf16.gmra.mrb[0].mxu0 %v5760
  %v5827 = vpop.f32.mrb[0].mxu0
  %v5828 = vadd.f32 %v5771, %v5827
  %v5829 = vpop.f32.mrb[0].mxu0
  %v5830 = vpop.f32.mrb[0].mxu0
  %v5831 = vadd.f32 %v5771, %v5830
  %v5832 = vpop.f32.mrb[0].mxu0
  %5833 = vmatprep.mubr.bf16.mxu0 0
  %5834 = vmatmul.mubr.bf16.gmra.mrb[0].mxu0 %v5761
  %v5835 = vpop.f32.mrb[0].mxu0
  %v5836 = vadd.f32 %v5771, %v5835
  %v5837 = vpop.f32.mrb[0].mxu0
  %v5838 = vpop.f32.mrb[0].mxu0
  %v5839 = vadd.f32 %v5771, %v5838
  %v5840 = vpop.f32.mrb[0].mxu0
  %5841 = vdwg.mxu0
  %v5842 = vadd.f32 %v5553, %v5820
  %v5843 = vadd.f32 %v5554, %v5823
  %v5844 = vadd.f32 %v5555, %v5828
  %v5845 = vadd.f32 %v5556, %v5831
  %v5846 = vadd.f32 %v5557, %v5836
  %v5847 = vadd.f32 %v5558, %v5839
  %5848 = vst.msk [vmem:[%s8] sm:$0xff] %vm62, %v5842
  %5849 = vst.msk [vmem:[%s8 + $0x8] sm:$0xff] %vm62, %v5843
  %5850 = vst.msk [vmem:[%s8 + $0x10] sm:$0xff] %vm62, %v5844
  %5851 = vst.msk [vmem:[%s8 + $0x18] sm:$0xff] %vm62, %v5845
  %5852 = vst.msk [vmem:[%s8 + $0x20] sm:$0xff] %vm62, %v5846
  %5853 = vst.msk [vmem:[%s8 + $0x28] sm:$0xff] %vm62, %v5847
  // Predicated region
  $region34: #{decoder_layer_forward.1} parent=0 // pred_check
    _
  $region35: #{decoder_layer_forward.1} parent=0 // pred_check_branch
    %5855 = sbr.rel (0) target = $region37
  $region36: #{decoder_layer_forward.1} parent=0 // pred_region
    _
  $region37: #{decoder_layer_forward.1} parent=0 // pred_fallthru
    _
  // Predicated region
  $region38: #{decoder_layer_forward.1} parent=0 // pred_check
    _
  $region39: #{decoder_layer_forward.1} parent=0 // pred_check_branch
    %5857 = sbr.rel (0) target = $region41
  $region40: #{decoder_layer_forward.1} parent=0 // pred_region
    _
  $region41: #{decoder_layer_forward.1} parent=0 // pred_fallthru
    _

</llo_original>
